<compile_context>
chip_gen: v7x
topology: tpu7x:2x2x1
jax: 0.10.0
libtpu: 0.0.40
codegen_flags: <defaults>
</compile_context>

<pallas_src>
import numpy as np
import jax
import jax.numpy as jnp
from jax.experimental import pallas as pl
from jax.experimental.pallas import tpu as pltpu


def _round_up(x, m):
    return (x + m - 1) // m * m


def _fold_bn(bn, eps):
    """Inference BatchNorm -> per-channel (scale, bias)."""
    gamma, beta, mean, var = bn
    s = gamma / jnp.sqrt(var + eps)
    return s, beta - mean * s


def _make_kernel(Cmid, Cin, Qpad, deltas, id_off):
    def kernel(x_ref, mask_ref, w1_ref, w2_ref, w34_ref,
               b1_ref, b2_ref, b34_ref, o_ref,
               y1_ref, col_ref, op_ref):
        f32 = jnp.float32

        # ---- conv1 (1x1x1, BN scale pre-folded into w1) + bias + ReLU -----------
        # x is zero at pad lanes; the mask forces relu(b1) back to zero there so
        # y1 is a correctly zero-padded activation volume for the 3x3x3 conv.
        z1 = jnp.dot(w1_ref[...], x_ref[0], preferred_element_type=f32)
        z1 = jnp.maximum(z1 + b1_ref[...], 0.0) * mask_ref[...]
        y1_ref[...] = z1.astype(y1_ref.dtype)                 # (Cmid, SpIn_pad)

        # ---- identity operand: q-grid window of x (constant flat lane offset) ---
        op_ref[pl.ds(0, Cin), :] = x_ref[0, :, pl.ds(id_off, Qpad)]

        # ---- im2col slab: 27 lane-shifted copies of y1 stacked along K ----------
        for t, delta in enumerate(deltas):
            col_ref[pl.ds(t * Cmid, Cmid), :] = y1_ref[:, pl.ds(delta, Qpad)]

        # ---- conv2 (3x3x3) as ONE K = 27*Cmid matmul, + bias + ReLU -------------
        z2 = jnp.dot(w2_ref[...], col_ref[...], preferred_element_type=f32)
        y2 = jnp.maximum(z2 + b2_ref[...], 0.0)                # (Cmid, Qpad)
        op_ref[pl.ds(Cin, Cmid), :] = y2.astype(op_ref.dtype)

        # ---- fused conv3 + identity mapping (+ combined bias) + final ReLU ------
        z = jnp.dot(w34_ref[...], op_ref[...], preferred_element_type=f32)
        o_ref[0] = jnp.maximum(z + b34_ref[...], 0.0).astype(o_ref.dtype)

    return kernel


def res_bottleneck_forward(x, params, stride=1, eps=1e-5, compute_dtype=jnp.bfloat16):
    """Pallas equivalent of ResBottleneck.forward (eval-mode BN, ReLU)."""
    N, Cin, D, H, W = x.shape
    w1, w2, w3, w4 = params["w1"], params["w2"], params["w3"], params["w4"]
    Cmid, Cout = w1.shape[0], w3.shape[0]
    need_map = (Cin != Cout) or (stride != 1)

    Hp, Wp = H + 2, W + 2
    HpWp = Hp * Wp
    Qlen = D * HpWp                                   # flattened conv-output q-grid
    Qpad = _round_up(Qlen, 128)                       # lane-dense output width
    deltas = [kd * HpWp + kh * Wp + kw
              for kd in range(3) for kh in range(3) for kw in range(3)]
    id_off = HpWp + Wp + 1                            # q-grid -> padded-x center offset
    SpIn = (D + 3) * HpWp                             # 1 leading + 2 trailing depth pad
    SpIn_pad = _round_up(max(SpIn, Qpad + deltas[-1], Qpad + id_off), 128)

    # Zero-pad spatially, flatten, lane-pad, cast matmul operands to compute dtype.
    xp = jnp.pad(x, ((0, 0), (0, 0), (1, 2), (1, 1), (1, 1))).reshape(N, Cin, SpIn)
    xp = jnp.pad(xp, ((0, 0), (0, 0), (0, SpIn_pad - SpIn))).astype(compute_dtype)

    # Interior mask (1 on the D*H*W interior of the padded volume, 0 on pad lanes).
    m = np.zeros((D + 3, Hp, Wp), np.float32)
    m[1:1 + D, 1:1 + H, 1:1 + W] = 1.0
    mask = jnp.asarray(np.pad(m.reshape(SpIn), (0, SpIn_pad - SpIn))[None, :])

    # Fold BN scales into the conv weights; only per-channel biases stay in-kernel.
    s1, b1 = _fold_bn(params["bn1"], eps)
    s2, b2 = _fold_bn(params["bn2"], eps)
    s3, b3 = _fold_bn(params["bn3"], eps)
    w1f = (s1[:, None] * w1).astype(compute_dtype)                        # (Cmid, Cin)
    w2col = w2.reshape(Cmid, Cmid, 27).transpose(0, 2, 1).reshape(Cmid, 27 * Cmid)
    w2f = (s2[:, None] * w2col).astype(compute_dtype)                     # (Cmid, 27*Cmid)
    if need_map:
        s4, b4 = _fold_bn(params["bn4"], eps)
        wid = s4[:, None] * w4
        b34 = b3 + b4
    else:
        wid = jnp.eye(Cout, Cin, dtype=jnp.float32)                       # Cin == Cout here
        b34 = b3
    w34 = jnp.concatenate([wid, s3[:, None] * w3], axis=1).astype(compute_dtype)

    b1c = b1[:, None].astype(jnp.float32)
    b2c = b2[:, None].astype(jnp.float32)
    b34c = b34[:, None].astype(jnp.float32)

    kernel = _make_kernel(Cmid, Cin, Qpad, deltas, id_off)

    isz = jnp.dtype(compute_dtype).itemsize
    flops = 2 * N * (Cmid * Cin * SpIn_pad + Cmid * 27 * Cmid * Qpad
                     + Cout * (Cmid + Cin) * Qpad)
    bytes_acc = (N * Cin * SpIn_pad * isz + N * Cout * Qpad * x.dtype.itemsize
                 + SpIn_pad * 4
                 + (Cmid * Cin + Cmid * 27 * Cmid + Cout * (Cmid + Cin)) * isz
                 + (2 * Cmid + Cout) * 4)

    out_q = pl.pallas_call(
        kernel,
        out_shape=jax.ShapeDtypeStruct((N, Cout, Qpad), x.dtype),
        grid_spec=pltpu.PrefetchScalarGridSpec(
            num_scalar_prefetch=0,
            grid=(N,),
            in_specs=[
                pl.BlockSpec((1, Cin, SpIn_pad), lambda n: (n, 0, 0)),    # x (padded, flat)
                pl.BlockSpec((1, SpIn_pad), lambda n: (0, 0)),            # interior mask
                pl.BlockSpec((Cmid, Cin), lambda n: (0, 0)),              # s1 * w1
                pl.BlockSpec((Cmid, 27 * Cmid), lambda n: (0, 0)),        # s2 * w2 (im2col layout)
                pl.BlockSpec((Cout, Cin + Cmid), lambda n: (0, 0)),       # [s4*w4 | s3*w3]
                pl.BlockSpec((Cmid, 1), lambda n: (0, 0)),                # b1
                pl.BlockSpec((Cmid, 1), lambda n: (0, 0)),                # b2
                pl.BlockSpec((Cout, 1), lambda n: (0, 0)),                # b3 + b4
            ],
            out_specs=pl.BlockSpec((1, Cout, Qpad), lambda n: (n, 0, 0)),
            scratch_shapes=[
                pltpu.VMEM((Cmid, SpIn_pad), compute_dtype),              # y1 (zero-padded)
                pltpu.VMEM((27 * Cmid, Qpad), compute_dtype),             # im2col slab
                pltpu.VMEM((Cin + Cmid, Qpad), compute_dtype),            # [x_q ; y2]
            ],
        ),
        compiler_params=pltpu.CompilerParams(dimension_semantics=("parallel",)),
        cost_estimate=pl.CostEstimate(flops=flops, transcendentals=0,
                                      bytes_accessed=bytes_acc),
    )(xp, mask, w1f, w2f, w34, b1c, b2c, b34c)

    # Lane-dense kernel output (padded q-grid) -> NCDHW, strided subsample for stride>1.
    out = out_q[:, :, :Qlen].reshape(N, Cout, D, Hp, Wp)
    return out[:, :, ::stride, 0:H:stride, 0:W:stride]


def res_bottleneck_reference(x, params, stride=1, eps=1e-5):
    """Pure-JAX reference (same eval-mode BN semantics), f32 throughout."""
    w1, w2, w3, w4 = params["w1"], params["w2"], params["w3"], params["w4"]
    Cout, Cin = w3.shape[0], x.shape[1]
    need_map = (Cin != Cout) or (stride != 1)

    def fold(bn):
        gamma, beta, mean, var = bn
        s = gamma / jnp.sqrt(var + eps)
        return s, beta - mean * s

    def bn_apply(z, sb):
        s, b = sb
        return z * s.reshape(1, -1, 1, 1, 1) + b.reshape(1, -1, 1, 1, 1)

    y1 = jax.nn.relu(bn_apply(jnp.einsum('oc,ncdhw->nodhw', w1, x), fold(params["bn1"])))
    y2 = jax.lax.conv_general_dilated(
        y1, w2, window_strides=(stride,) * 3, padding=[(1, 1)] * 3,
        dimension_numbers=('NCDHW', 'OIDHW', 'NCDHW'))
    y2 = jax.nn.relu(bn_apply(y2, fold(params["bn2"])))
    y3 = bn_apply(jnp.einsum('oc,ncdhw->nodhw', w3, y2), fold(params["bn3"]))
    idt = x[:, :, ::stride, ::stride, ::stride]
    if need_map:
        idt = bn_apply(jnp.einsum('oc,ncdhw->nodhw', w4, idt), fold(params["bn4"]))
    return jax.nn.relu(y3 + idt)


if __name__ == "__main__":
    key = jax.random.PRNGKey(0)
    N, Cin, Cout = 2, 32, 64
    D = H = W = 8
    stride = 1
    Cmid = Cin // 4
    keys = jax.random.split(key, 10)

    w1 = jax.random.normal(keys[0], (Cmid, Cin), jnp.float32) / np.sqrt(Cin)
    w2 = jax.random.normal(keys[1], (Cmid, Cmid, 3, 3, 3), jnp.float32) / np.sqrt(Cmid * 27)
    w3 = jax.random.normal(keys[2], (Cout, Cmid), jnp.float32) / np.sqrt(Cmid)
    w4 = jax.random.normal(keys[3], (Cout, Cin), jnp.float32) / np.sqrt(Cin)

    def bn_params(k, C):
        k1, k2, k3, k4 = jax.random.split(k, 4)
        gamma = 1.0 + 0.2 * jax.random.normal(k1, (C,), jnp.float32)
        beta = 0.1 * jax.random.normal(k2, (C,), jnp.float32)
        mean = 0.1 * jax.random.normal(k3, (C,), jnp.float32)
        var = 0.5 + jax.random.uniform(k4, (C,), jnp.float32)
        return gamma, beta, mean, var

    params = dict(
        w1=w1, w2=w2, w3=w3, w4=w4,
        bn1=bn_params(keys[4], Cmid), bn2=bn_params(keys[5], Cmid),
        bn3=bn_params(keys[6], Cout), bn4=bn_params(keys[7], Cout),
    )
    x = jax.random.normal(keys[8], (N, Cin, D, H, W), jnp.float32)

    y_ref = jax.block_until_ready(res_bottleneck_reference(x, params, stride=stride))
    ref_scale = float(jnp.max(jnp.abs(y_ref)))

    # Exact-semantics check: f32 operands, tight tolerance.
    y32 = jax.block_until_ready(
        res_bottleneck_forward(x, params, stride=stride, compute_dtype=jnp.float32))
    assert y32.shape == (N, Cout, D, H, W), y32.shape
    assert y32.dtype == x.dtype
    err32 = float(jnp.max(jnp.abs(y32 - y_ref)))
    assert err32 < 1e-3, f"f32 path max abs err {err32}"

    # Fast path: bf16 matmul operands / f32 accumulation (tolerance scaled to bf16).
    ybf = jax.block_until_ready(
        res_bottleneck_forward(x, params, stride=stride, compute_dtype=jnp.bfloat16))
    assert ybf.shape == (N, Cout, D, H, W), ybf.shape
    assert ybf.dtype == x.dtype
    errbf = float(jnp.max(jnp.abs(ybf - y_ref)))
    assert errbf < 3e-2 * ref_scale + 1e-3, \
        f"bf16 path max abs err {errbf} (ref scale {ref_scale})"

    print("KERNEL_OK")
</pallas_src>

<mosaic_0001>
module attributes {stable_mosaic.version = 11 : i64} {
  func.func @kernel(%arg0: i32, %arg1: memref<1x32x1152xf32, #tpu.memory_space<vmem>>, %arg2: memref<1x1152xf32, #tpu.memory_space<vmem>>, %arg3: memref<8x32xf32, #tpu.memory_space<vmem>>, %arg4: memref<8x216xf32, #tpu.memory_space<vmem>>, %arg5: memref<64x40xf32, #tpu.memory_space<vmem>>, %arg6: memref<8x1xf32, #tpu.memory_space<vmem>>, %arg7: memref<8x1xf32, #tpu.memory_space<vmem>>, %arg8: memref<64x1xf32, #tpu.memory_space<vmem>>, %arg9: memref<1x64x896xf32, #tpu.memory_space<vmem>>, %arg10: memref<8x1152xf32, #tpu.memory_space<vmem>>, %arg11: memref<216x896xf32, #tpu.memory_space<vmem>>, %arg12: memref<40x896xf32, #tpu.memory_space<vmem>>) attributes {dimension_semantics = [#tpu.dimension_semantics<parallel>], iteration_bounds = array<i64: 2>, scalar_prefetch = 0 : i64, scratch_operands = 3 : i64, tpu.core_type = #tpu.core_type<tc>, window_params = [{transform_indices = @transform_0, window_bounds = array<i64: 1, 32, 1152>}, {pipeline_mode = #tpu.pipeline_mode<synchronous>, transform_indices = @transform_1, window_bounds = array<i64: 1, 1152>}, {pipeline_mode = #tpu.pipeline_mode<synchronous>, transform_indices = @transform_2, window_bounds = array<i64: 8, 32>}, {pipeline_mode = #tpu.pipeline_mode<synchronous>, transform_indices = @transform_3, window_bounds = array<i64: 8, 216>}, {pipeline_mode = #tpu.pipeline_mode<synchronous>, transform_indices = @transform_4, window_bounds = array<i64: 64, 40>}, {pipeline_mode = #tpu.pipeline_mode<synchronous>, transform_indices = @transform_5, window_bounds = array<i64: 8, 1>}, {pipeline_mode = #tpu.pipeline_mode<synchronous>, transform_indices = @transform_6, window_bounds = array<i64: 8, 1>}, {pipeline_mode = #tpu.pipeline_mode<synchronous>, transform_indices = @transform_7, window_bounds = array<i64: 64, 1>}, {transform_indices = @transform_8, window_bounds = array<i64: 1, 64, 896>}]} {
    %c0 = arith.constant 0 : index
    %c0_0 = arith.constant 0 : index
    %0 = vector.load %arg3[%c0, %c0_0] : memref<8x32xf32, #tpu.memory_space<vmem>>, vector<8x32xf32>
    %c0_1 = arith.constant 0 : index
    %c0_2 = arith.constant 0 : index
    %c0_3 = arith.constant 0 : index
    %1 = vector.load %arg1[%c0_1, %c0_2, %c0_3] : memref<1x32x1152xf32, #tpu.memory_space<vmem>>, vector<1x32x1152xf32>
    %2 = vector.shape_cast %1 : vector<1x32x1152xf32> to vector<32x1152xf32>
    %cst = arith.constant dense<0.000000e+00> : vector<8x1152xf32>
    %3 = tpu.matmul %0, %2, %cst {dimension_numbers = #tpu.dot_dimension_numbers<[1], [0], [0], [1], [0, 0, 1, 1], [], []>} : vector<8x32xf32>, vector<32x1152xf32>, vector<8x1152xf32> -> vector<8x1152xf32>
    %c0_4 = arith.constant 0 : index
    %c0_5 = arith.constant 0 : index
    %4 = vector.load %arg6[%c0_4, %c0_5] : memref<8x1xf32, #tpu.memory_space<vmem>>, vector<8x1xf32>
    %5 = vector.broadcast %4 : vector<8x1xf32> to vector<8x1152xf32>
    %6 = arith.addf %3, %5 : vector<8x1152xf32>
    %cst_6 = arith.constant 0.000000e+00 : f32
    %7 = vector.broadcast %cst_6 : f32 to vector<8x1152xf32>
    %8 = arith.maximumf %6, %7 : vector<8x1152xf32>
    %c0_7 = arith.constant 0 : index
    %c0_8 = arith.constant 0 : index
    %9 = vector.load %arg2[%c0_7, %c0_8] : memref<1x1152xf32, #tpu.memory_space<vmem>>, vector<1x1152xf32>
    %10 = vector.broadcast %9 : vector<1x1152xf32> to vector<8x1152xf32>
    %11 = arith.mulf %8, %10 : vector<8x1152xf32>
    %c0_9 = arith.constant 0 : index
    %c0_10 = arith.constant 0 : index
    %12 = vector.load %arg10[%c0_9, %c0_10] : memref<8x1152xf32, #tpu.memory_space<vmem>>, vector<8x1152xf32>
    tpu.vector_store %arg10[%c0_9, %c0_10], %11 {strides = array<i32>} : memref<8x1152xf32, #tpu.memory_space<vmem>>, vector<8x1152xf32>,
    %c0_11 = arith.constant 0 : index
    %c0_12 = arith.constant 0 : index
    %c111 = arith.constant 111 : index
    %13 = vector.load %arg1[%c0_11, %c0_12, %c111] : memref<1x32x1152xf32, #tpu.memory_space<vmem>>, vector<1x32x896xf32>
    %14 = vector.shape_cast %13 : vector<1x32x896xf32> to vector<32x896xf32>
    %c0_13 = arith.constant 0 : index
    %c0_14 = arith.constant 0 : index
    %15 = vector.load %arg12[%c0_13, %c0_14] : memref<40x896xf32, #tpu.memory_space<vmem>>, vector<32x896xf32>
    tpu.vector_store %arg12[%c0_13, %c0_14], %14 {strides = array<i32>} : memref<40x896xf32, #tpu.memory_space<vmem>>, vector<32x896xf32>,
    %c0_15 = arith.constant 0 : index
    %c0_16 = arith.constant 0 : index
    %16 = vector.load %arg10[%c0_15, %c0_16] : memref<8x1152xf32, #tpu.memory_space<vmem>>, vector<8x896xf32>
    %c0_17 = arith.constant 0 : index
    %c0_18 = arith.constant 0 : index
    %17 = vector.load %arg11[%c0_17, %c0_18] : memref<216x896xf32, #tpu.memory_space<vmem>>, vector<8x896xf32>
    tpu.vector_store %arg11[%c0_17, %c0_18], %16 {strides = array<i32>} : memref<216x896xf32, #tpu.memory_space<vmem>>, vector<8x896xf32>,
    %c0_19 = arith.constant 0 : index
    %c1 = arith.constant 1 : index
    %18 = vector.load %arg10[%c0_19, %c1] : memref<8x1152xf32, #tpu.memory_space<vmem>>, vector<8x896xf32>
    %c8 = arith.constant 8 : index
    %c0_20 = arith.constant 0 : index
    %19 = vector.load %arg11[%c8, %c0_20] : memref<216x896xf32, #tpu.memory_space<vmem>>, vector<8x896xf32>
    tpu.vector_store %arg11[%c8, %c0_20], %18 {strides = array<i32>} : memref<216x896xf32, #tpu.memory_space<vmem>>, vector<8x896xf32>,
    %c0_21 = arith.constant 0 : index
    %c2 = arith.constant 2 : index
    %20 = vector.load %arg10[%c0_21, %c2] : memref<8x1152xf32, #tpu.memory_space<vmem>>, vector<8x896xf32>
    %c16 = arith.constant 16 : index
    %c0_22 = arith.constant 0 : index
    %21 = vector.load %arg11[%c16, %c0_22] : memref<216x896xf32, #tpu.memory_space<vmem>>, vector<8x896xf32>
    tpu.vector_store %arg11[%c16, %c0_22], %20 {strides = array<i32>} : memref<216x896xf32, #tpu.memory_space<vmem>>, vector<8x896xf32>,
    %c0_23 = arith.constant 0 : index
    %c10 = arith.constant 10 : index
    %22 = vector.load %arg10[%c0_23, %c10] : memref<8x1152xf32, #tpu.memory_space<vmem>>, vector<8x896xf32>
    %c24 = arith.constant 24 : index
    %c0_24 = arith.constant 0 : index
    %23 = vector.load %arg11[%c24, %c0_24] : memref<216x896xf32, #tpu.memory_space<vmem>>, vector<8x896xf32>
    tpu.vector_store %arg11[%c24, %c0_24], %22 {strides = array<i32>} : memref<216x896xf32, #tpu.memory_space<vmem>>, vector<8x896xf32>,
    %c0_25 = arith.constant 0 : index
    %c11 = arith.constant 11 : index
    %24 = vector.load %arg10[%c0_25, %c11] : memref<8x1152xf32, #tpu.memory_space<vmem>>, vector<8x896xf32>
    %c32 = arith.constant 32 : index
    %c0_26 = arith.constant 0 : index
    %25 = vector.load %arg11[%c32, %c0_26] : memref<216x896xf32, #tpu.memory_space<vmem>>, vector<8x896xf32>
    tpu.vector_store %arg11[%c32, %c0_26], %24 {strides = array<i32>} : memref<216x896xf32, #tpu.memory_space<vmem>>, vector<8x896xf32>,
    %c0_27 = arith.constant 0 : index
    %c12 = arith.constant 12 : index
    %26 = vector.load %arg10[%c0_27, %c12] : memref<8x1152xf32, #tpu.memory_space<vmem>>, vector<8x896xf32>
    %c40 = arith.constant 40 : index
    %c0_28 = arith.constant 0 : index
    %27 = vector.load %arg11[%c40, %c0_28] : memref<216x896xf32, #tpu.memory_space<vmem>>, vector<8x896xf32>
    tpu.vector_store %arg11[%c40, %c0_28], %26 {strides = array<i32>} : memref<216x896xf32, #tpu.memory_space<vmem>>, vector<8x896xf32>,
    %c0_29 = arith.constant 0 : index
    %c20 = arith.constant 20 : index
    %28 = vector.load %arg10[%c0_29, %c20] : memref<8x1152xf32, #tpu.memory_space<vmem>>, vector<8x896xf32>
    %c48 = arith.constant 48 : index
    %c0_30 = arith.constant 0 : index
    %29 = vector.load %arg11[%c48, %c0_30] : memref<216x896xf32, #tpu.memory_space<vmem>>, vector<8x896xf32>
    tpu.vector_store %arg11[%c48, %c0_30], %28 {strides = array<i32>} : memref<216x896xf32, #tpu.memory_space<vmem>>, vector<8x896xf32>,
    %c0_31 = arith.constant 0 : index
    %c21 = arith.constant 21 : index
    %30 = vector.load %arg10[%c0_31, %c21] : memref<8x1152xf32, #tpu.memory_space<vmem>>, vector<8x896xf32>
    %c56 = arith.constant 56 : index
    %c0_32 = arith.constant 0 : index
    %31 = vector.load %arg11[%c56, %c0_32] : memref<216x896xf32, #tpu.memory_space<vmem>>, vector<8x896xf32>
    tpu.vector_store %arg11[%c56, %c0_32], %30 {strides = array<i32>} : memref<216x896xf32, #tpu.memory_space<vmem>>, vector<8x896xf32>,
    %c0_33 = arith.constant 0 : index
    %c22 = arith.constant 22 : index
    %32 = vector.load %arg10[%c0_33, %c22] : memref<8x1152xf32, #tpu.memory_space<vmem>>, vector<8x896xf32>
    %c64 = arith.constant 64 : index
    %c0_34 = arith.constant 0 : index
    %33 = vector.load %arg11[%c64, %c0_34] : memref<216x896xf32, #tpu.memory_space<vmem>>, vector<8x896xf32>
    tpu.vector_store %arg11[%c64, %c0_34], %32 {strides = array<i32>} : memref<216x896xf32, #tpu.memory_space<vmem>>, vector<8x896xf32>,
    %c0_35 = arith.constant 0 : index
    %c100 = arith.constant 100 : index
    %34 = vector.load %arg10[%c0_35, %c100] : memref<8x1152xf32, #tpu.memory_space<vmem>>, vector<8x896xf32>
    %c72 = arith.constant 72 : index
    %c0_36 = arith.constant 0 : index
    %35 = vector.load %arg11[%c72, %c0_36] : memref<216x896xf32, #tpu.memory_space<vmem>>, vector<8x896xf32>
    tpu.vector_store %arg11[%c72, %c0_36], %34 {strides = array<i32>} : memref<216x896xf32, #tpu.memory_space<vmem>>, vector<8x896xf32>,
    %c0_37 = arith.constant 0 : index
    %c101 = arith.constant 101 : index
    %36 = vector.load %arg10[%c0_37, %c101] : memref<8x1152xf32, #tpu.memory_space<vmem>>, vector<8x896xf32>
    %c80 = arith.constant 80 : index
    %c0_38 = arith.constant 0 : index
    %37 = vector.load %arg11[%c80, %c0_38] : memref<216x896xf32, #tpu.memory_space<vmem>>, vector<8x896xf32>
    tpu.vector_store %arg11[%c80, %c0_38], %36 {strides = array<i32>} : memref<216x896xf32, #tpu.memory_space<vmem>>, vector<8x896xf32>,
    %c0_39 = arith.constant 0 : index
    %c102 = arith.constant 102 : index
    %38 = vector.load %arg10[%c0_39, %c102] : memref<8x1152xf32, #tpu.memory_space<vmem>>, vector<8x896xf32>
    %c88 = arith.constant 88 : index
    %c0_40 = arith.constant 0 : index
    %39 = vector.load %arg11[%c88, %c0_40] : memref<216x896xf32, #tpu.memory_space<vmem>>, vector<8x896xf32>
    tpu.vector_store %arg11[%c88, %c0_40], %38 {strides = array<i32>} : memref<216x896xf32, #tpu.memory_space<vmem>>, vector<8x896xf32>,
    %c0_41 = arith.constant 0 : index
    %c110 = arith.constant 110 : index
    %40 = vector.load %arg10[%c0_41, %c110] : memref<8x1152xf32, #tpu.memory_space<vmem>>, vector<8x896xf32>
    %c96 = arith.constant 96 : index
    %c0_42 = arith.constant 0 : index
    %41 = vector.load %arg11[%c96, %c0_42] : memref<216x896xf32, #tpu.memory_space<vmem>>, vector<8x896xf32>
    tpu.vector_store %arg11[%c96, %c0_42], %40 {strides = array<i32>} : memref<216x896xf32, #tpu.memory_space<vmem>>, vector<8x896xf32>,
    %c0_43 = arith.constant 0 : index
    %c111_44 = arith.constant 111 : index
    %42 = vector.load %arg10[%c0_43, %c111_44] : memref<8x1152xf32, #tpu.memory_space<vmem>>, vector<8x896xf32>
    %c104 = arith.constant 104 : index
    %c0_45 = arith.constant 0 : index
    %43 = vector.load %arg11[%c104, %c0_45] : memref<216x896xf32, #tpu.memory_space<vmem>>, vector<8x896xf32>
    tpu.vector_store %arg11[%c104, %c0_45], %42 {strides = array<i32>} : memref<216x896xf32, #tpu.memory_space<vmem>>, vector<8x896xf32>,
    %c0_46 = arith.constant 0 : index
    %c112 = arith.constant 112 : index
    %44 = vector.load %arg10[%c0_46, %c112] : memref<8x1152xf32, #tpu.memory_space<vmem>>, vector<8x896xf32>
    %c112_47 = arith.constant 112 : index
    %c0_48 = arith.constant 0 : index
    %45 = vector.load %arg11[%c112_47, %c0_48] : memref<216x896xf32, #tpu.memory_space<vmem>>, vector<8x896xf32>
    tpu.vector_store %arg11[%c112_47, %c0_48], %44 {strides = array<i32>} : memref<216x896xf32, #tpu.memory_space<vmem>>, vector<8x896xf32>,
    %c0_49 = arith.constant 0 : index
    %c120 = arith.constant 120 : index
    %46 = vector.load %arg10[%c0_49, %c120] : memref<8x1152xf32, #tpu.memory_space<vmem>>, vector<8x896xf32>
    %c120_50 = arith.constant 120 : index
    %c0_51 = arith.constant 0 : index
    %47 = vector.load %arg11[%c120_50, %c0_51] : memref<216x896xf32, #tpu.memory_space<vmem>>, vector<8x896xf32>
    tpu.vector_store %arg11[%c120_50, %c0_51], %46 {strides = array<i32>} : memref<216x896xf32, #tpu.memory_space<vmem>>, vector<8x896xf32>,
    %c0_52 = arith.constant 0 : index
    %c121 = arith.constant 121 : index
    %48 = vector.load %arg10[%c0_52, %c121] : memref<8x1152xf32, #tpu.memory_space<vmem>>, vector<8x896xf32>
    %c128 = arith.constant 128 : index
    %c0_53 = arith.constant 0 : index
    %49 = vector.load %arg11[%c128, %c0_53] : memref<216x896xf32, #tpu.memory_space<vmem>>, vector<8x896xf32>
    tpu.vector_store %arg11[%c128, %c0_53], %48 {strides = array<i32>} : memref<216x896xf32, #tpu.memory_space<vmem>>, vector<8x896xf32>,
    %c0_54 = arith.constant 0 : index
    %c122 = arith.constant 122 : index
    %50 = vector.load %arg10[%c0_54, %c122] : memref<8x1152xf32, #tpu.memory_space<vmem>>, vector<8x896xf32>
    %c136 = arith.constant 136 : index
    %c0_55 = arith.constant 0 : index
    %51 = vector.load %arg11[%c136, %c0_55] : memref<216x896xf32, #tpu.memory_space<vmem>>, vector<8x896xf32>
    tpu.vector_store %arg11[%c136, %c0_55], %50 {strides = array<i32>} : memref<216x896xf32, #tpu.memory_space<vmem>>, vector<8x896xf32>,
    %c0_56 = arith.constant 0 : index
    %c200 = arith.constant 200 : index
    %52 = vector.load %arg10[%c0_56, %c200] : memref<8x1152xf32, #tpu.memory_space<vmem>>, vector<8x896xf32>
    %c144 = arith.constant 144 : index
    %c0_57 = arith.constant 0 : index
    %53 = vector.load %arg11[%c144, %c0_57] : memref<216x896xf32, #tpu.memory_space<vmem>>, vector<8x896xf32>
    tpu.vector_store %arg11[%c144, %c0_57], %52 {strides = array<i32>} : memref<216x896xf32, #tpu.memory_space<vmem>>, vector<8x896xf32>,
    %c0_58 = arith.constant 0 : index
    %c201 = arith.constant 201 : index
    %54 = vector.load %arg10[%c0_58, %c201] : memref<8x1152xf32, #tpu.memory_space<vmem>>, vector<8x896xf32>
    %c152 = arith.constant 152 : index
    %c0_59 = arith.constant 0 : index
    %55 = vector.load %arg11[%c152, %c0_59] : memref<216x896xf32, #tpu.memory_space<vmem>>, vector<8x896xf32>
    tpu.vector_store %arg11[%c152, %c0_59], %54 {strides = array<i32>} : memref<216x896xf32, #tpu.memory_space<vmem>>, vector<8x896xf32>,
    %c0_60 = arith.constant 0 : index
    %c202 = arith.constant 202 : index
    %56 = vector.load %arg10[%c0_60, %c202] : memref<8x1152xf32, #tpu.memory_space<vmem>>, vector<8x896xf32>
    %c160 = arith.constant 160 : index
    %c0_61 = arith.constant 0 : index
    %57 = vector.load %arg11[%c160, %c0_61] : memref<216x896xf32, #tpu.memory_space<vmem>>, vector<8x896xf32>
    tpu.vector_store %arg11[%c160, %c0_61], %56 {strides = array<i32>} : memref<216x896xf32, #tpu.memory_space<vmem>>, vector<8x896xf32>,
    %c0_62 = arith.constant 0 : index
    %c210 = arith.constant 210 : index
    %58 = vector.load %arg10[%c0_62, %c210] : memref<8x1152xf32, #tpu.memory_space<vmem>>, vector<8x896xf32>
    %c168 = arith.constant 168 : index
    %c0_63 = arith.constant 0 : index
    %59 = vector.load %arg11[%c168, %c0_63] : memref<216x896xf32, #tpu.memory_space<vmem>>, vector<8x896xf32>
    tpu.vector_store %arg11[%c168, %c0_63], %58 {strides = array<i32>} : memref<216x896xf32, #tpu.memory_space<vmem>>, vector<8x896xf32>,
    %c0_64 = arith.constant 0 : index
    %c211 = arith.constant 211 : index
    %60 = vector.load %arg10[%c0_64, %c211] : memref<8x1152xf32, #tpu.memory_space<vmem>>, vector<8x896xf32>
    %c176 = arith.constant 176 : index
    %c0_65 = arith.constant 0 : index
    %61 = vector.load %arg11[%c176, %c0_65] : memref<216x896xf32, #tpu.memory_space<vmem>>, vector<8x896xf32>
    tpu.vector_store %arg11[%c176, %c0_65], %60 {strides = array<i32>} : memref<216x896xf32, #tpu.memory_space<vmem>>, vector<8x896xf32>,
    %c0_66 = arith.constant 0 : index
    %c212 = arith.constant 212 : index
    %62 = vector.load %arg10[%c0_66, %c212] : memref<8x1152xf32, #tpu.memory_space<vmem>>, vector<8x896xf32>
    %c184 = arith.constant 184 : index
    %c0_67 = arith.constant 0 : index
    %63 = vector.load %arg11[%c184, %c0_67] : memref<216x896xf32, #tpu.memory_space<vmem>>, vector<8x896xf32>
    tpu.vector_store %arg11[%c184, %c0_67], %62 {strides = array<i32>} : memref<216x896xf32, #tpu.memory_space<vmem>>, vector<8x896xf32>,
    %c0_68 = arith.constant 0 : index
    %c220 = arith.constant 220 : index
    %64 = vector.load %arg10[%c0_68, %c220] : memref<8x1152xf32, #tpu.memory_space<vmem>>, vector<8x896xf32>
    %c192 = arith.constant 192 : index
    %c0_69 = arith.constant 0 : index
    %65 = vector.load %arg11[%c192, %c0_69] : memref<216x896xf32, #tpu.memory_space<vmem>>, vector<8x896xf32>
    tpu.vector_store %arg11[%c192, %c0_69], %64 {strides = array<i32>} : memref<216x896xf32, #tpu.memory_space<vmem>>, vector<8x896xf32>,
    %c0_70 = arith.constant 0 : index
    %c221 = arith.constant 221 : index
    %66 = vector.load %arg10[%c0_70, %c221] : memref<8x1152xf32, #tpu.memory_space<vmem>>, vector<8x896xf32>
    %c200_71 = arith.constant 200 : index
    %c0_72 = arith.constant 0 : index
    %67 = vector.load %arg11[%c200_71, %c0_72] : memref<216x896xf32, #tpu.memory_space<vmem>>, vector<8x896xf32>
    tpu.vector_store %arg11[%c200_71, %c0_72], %66 {strides = array<i32>} : memref<216x896xf32, #tpu.memory_space<vmem>>, vector<8x896xf32>,
    %c0_73 = arith.constant 0 : index
    %c222 = arith.constant 222 : index
    %68 = vector.load %arg10[%c0_73, %c222] : memref<8x1152xf32, #tpu.memory_space<vmem>>, vector<8x896xf32>
    %c208 = arith.constant 208 : index
    %c0_74 = arith.constant 0 : index
    %69 = vector.load %arg11[%c208, %c0_74] : memref<216x896xf32, #tpu.memory_space<vmem>>, vector<8x896xf32>
    tpu.vector_store %arg11[%c208, %c0_74], %68 {strides = array<i32>} : memref<216x896xf32, #tpu.memory_space<vmem>>, vector<8x896xf32>,
    %c0_75 = arith.constant 0 : index
    %c0_76 = arith.constant 0 : index
    %70 = vector.load %arg4[%c0_75, %c0_76] : memref<8x216xf32, #tpu.memory_space<vmem>>, vector<8x216xf32>
    %c0_77 = arith.constant 0 : index
    %c0_78 = arith.constant 0 : index
    %71 = vector.load %arg11[%c0_77, %c0_78] : memref<216x896xf32, #tpu.memory_space<vmem>>, vector<216x896xf32>
    %cst_79 = arith.constant dense<0.000000e+00> : vector<8x896xf32>
    %72 = tpu.matmul %70, %71, %cst_79 {dimension_numbers = #tpu.dot_dimension_numbers<[1], [0], [0], [1], [0, 0, 1, 1], [], []>} : vector<8x216xf32>, vector<216x896xf32>, vector<8x896xf32> -> vector<8x896xf32>
    %c0_80 = arith.constant 0 : index
    %c0_81 = arith.constant 0 : index
    %73 = vector.load %arg7[%c0_80, %c0_81] : memref<8x1xf32, #tpu.memory_space<vmem>>, vector<8x1xf32>
    %74 = vector.broadcast %73 : vector<8x1xf32> to vector<8x896xf32>
    %75 = arith.addf %72, %74 : vector<8x896xf32>
    %cst_82 = arith.constant 0.000000e+00 : f32
    %76 = vector.broadcast %cst_82 : f32 to vector<8x896xf32>
    %77 = arith.maximumf %75, %76 : vector<8x896xf32>
    %c32_83 = arith.constant 32 : index
    %c0_84 = arith.constant 0 : index
    %78 = vector.load %arg12[%c32_83, %c0_84] : memref<40x896xf32, #tpu.memory_space<vmem>>, vector<8x896xf32>
    tpu.vector_store %arg12[%c32_83, %c0_84], %77 {strides = array<i32>} : memref<40x896xf32, #tpu.memory_space<vmem>>, vector<8x896xf32>,
    %c0_85 = arith.constant 0 : index
    %c0_86 = arith.constant 0 : index
    %79 = vector.load %arg5[%c0_85, %c0_86] : memref<64x40xf32, #tpu.memory_space<vmem>>, vector<64x40xf32>
    %c0_87 = arith.constant 0 : index
    %c0_88 = arith.constant 0 : index
    %80 = vector.load %arg12[%c0_87, %c0_88] : memref<40x896xf32, #tpu.memory_space<vmem>>, vector<40x896xf32>
    %cst_89 = arith.constant dense<0.000000e+00> : vector<64x896xf32>
    %81 = tpu.matmul %79, %80, %cst_89 {dimension_numbers = #tpu.dot_dimension_numbers<[1], [0], [0], [1], [0, 0, 1, 1], [], []>} : vector<64x40xf32>, vector<40x896xf32>, vector<64x896xf32> -> vector<64x896xf32>
    %c0_90 = arith.constant 0 : index
    %c0_91 = arith.constant 0 : index
    %82 = vector.load %arg8[%c0_90, %c0_91] : memref<64x1xf32, #tpu.memory_space<vmem>>, vector<64x1xf32>
    %83 = vector.broadcast %82 : vector<64x1xf32> to vector<64x896xf32>
    %84 = arith.addf %81, %83 : vector<64x896xf32>
    %cst_92 = arith.constant 0.000000e+00 : f32
    %85 = vector.broadcast %cst_92 : f32 to vector<64x896xf32>
    %86 = arith.maximumf %84, %85 : vector<64x896xf32>
    %c0_93 = arith.constant 0 : index
    %c0_94 = arith.constant 0 : index
    %c0_95 = arith.constant 0 : index
    %87 = vector.load %arg9[%c0_93, %c0_94, %c0_95] : memref<1x64x896xf32, #tpu.memory_space<vmem>>, vector<1x64x896xf32>
    %88 = vector.shape_cast %87 : vector<1x64x896xf32> to vector<64x896xf32>
    %89 = vector.shape_cast %86 : vector<64x896xf32> to vector<1x64x896xf32>
    tpu.vector_store %arg9[%c0_93, %c0_94, %c0_95], %89 {strides = array<i32>} : memref<1x64x896xf32, #tpu.memory_space<vmem>>, vector<1x64x896xf32>,
    return
  }
  func.func @transform_0(%arg0: i32) -> (i32, i32, i32) {
    %c0_i32 = arith.constant 0 : i32
    %c0_i32_0 = arith.constant 0 : i32
    %c0_i32_1 = arith.constant 0 : i32
    return %arg0, %c0_i32, %c0_i32_0 : i32, i32, i32
  }
  func.func @transform_1(%arg0: i32) -> (i32, i32) {
    %c0_i32 = arith.constant 0 : i32
    %c0_i32_0 = arith.constant 0 : i32
    %c0_i32_1 = arith.constant 0 : i32
    return %c0_i32, %c0_i32_0 : i32, i32
  }
  func.func @transform_2(%arg0: i32) -> (i32, i32) {
    %c0_i32 = arith.constant 0 : i32
    %c0_i32_0 = arith.constant 0 : i32
    %c0_i32_1 = arith.constant 0 : i32
    return %c0_i32, %c0_i32_0 : i32, i32
  }
  func.func @transform_3(%arg0: i32) -> (i32, i32) {
    %c0_i32 = arith.constant 0 : i32
    %c0_i32_0 = arith.constant 0 : i32
    %c0_i32_1 = arith.constant 0 : i32
    return %c0_i32, %c0_i32_0 : i32, i32
  }
  func.func @transform_4(%arg0: i32) -> (i32, i32) {
    %c0_i32 = arith.constant 0 : i32
    %c0_i32_0 = arith.constant 0 : i32
    %c0_i32_1 = arith.constant 0 : i32
    return %c0_i32, %c0_i32_0 : i32, i32
  }
  func.func @transform_5(%arg0: i32) -> (i32, i32) {
    %c0_i32 = arith.constant 0 : i32
    %c0_i32_0 = arith.constant 0 : i32
    %c0_i32_1 = arith.constant 0 : i32
    return %c0_i32, %c0_i32_0 : i32, i32
  }
  func.func @transform_6(%arg0: i32) -> (i32, i32) {
    %c0_i32 = arith.constant 0 : i32
    %c0_i32_0 = arith.constant 0 : i32
    %c0_i32_1 = arith.constant 0 : i32
    return %c0_i32, %c0_i32_0 : i32, i32
  }
  func.func @transform_7(%arg0: i32) -> (i32, i32) {
    %c0_i32 = arith.constant 0 : i32
    %c0_i32_0 = arith.constant 0 : i32
    %c0_i32_1 = arith.constant 0 : i32
    return %c0_i32, %c0_i32_0 : i32, i32
  }
  func.func @transform_8(%arg0: i32) -> (i32, i32, i32) {
    %c0_i32 = arith.constant 0 : i32
    %c0_i32_0 = arith.constant 0 : i32
    %c0_i32_1 = arith.constant 0 : i32
    return %arg0, %c0_i32, %c0_i32_0 : i32, i32, i32
  }
}

</mosaic_0001>

<llo_original>
// kernel: tpu_custom_call.1
$region0: #{tpu_custom_call.1}
  #allocation0 [shape = 'u32[]', space=smem, size = 0x4, offset = 0x4, fixed_abs, tag = 'smem constant byte address 0x4 - core index']
  #allocation1 [shape = 'u32[144,128]{1,0:T(1,128)}', space=vmem, size = 0x12000, scoped, tag = 'internal scratch']
  #allocation2 [shape = 'f32[8,1152]{1,0:T(8,128)}', space=vmem, size = 0x9000, scoped, tag = 'scratch operand']
  #allocation3 [shape = 'f32[216,896]{1,0:T(8,128)}', space=vmem, size = 0xbd000, scoped, tag = 'scratch operand']
  #allocation4 [shape = 'f32[40,896]{1,0:T(8,128)}', space=vmem, size = 0x23000, scoped, tag = 'scratch operand']
  %s0 = inlined_call_operand.hbm [shape: f32[2,32,1152], index: 0, kind: input, shape index: {}]
  %s1 = inlined_call_operand.vmem [shape: f32[1,1152], index: 1, kind: input, shape index: {}]
  %s2 = inlined_call_operand.vmem [shape: f32[8,32], index: 2, kind: input, shape index: {}]
  %s3 = inlined_call_operand.vmem [shape: f32[8,216], index: 3, kind: input, shape index: {}]
  %s4 = inlined_call_operand.vmem [shape: f32[64,40], index: 4, kind: input, shape index: {}]
  %s5 = inlined_call_operand.vmem [shape: f32[8,1], index: 5, kind: input, shape index: {}]
  %s6 = inlined_call_operand.vmem [shape: f32[8,1], index: 6, kind: input, shape index: {}]
  %s7 = inlined_call_operand.vmem [shape: f32[64,1], index: 7, kind: input, shape index: {}]
  %s8 = inlined_call_operand.hbm [shape: f32[2,64,896], index: 8, kind: output, shape index: {}]
  %s9 = sld [smem:[#allocation0]]
  $region69: #{tpu_custom_call.1} parent=0
    _
  %s11 = ssub.s32 1, %s9
  %s12 = scalar_select 0, %s11, %s9
  $region1: #{tpu_custom_call.1} parent=0
    #allocation5 [shape = 'u8[294912]{0}', space=vmem, size = 0x48000, scoped, tag = 'input window, operand 0']
    #allocation6 [shape = 's32[2]{0}', space=sflag, size = 0x8, scoped, tag = 'scoped memory for tpu_custom_call.1']
    #allocation7 [shape = 's32[2]{0}', space=sflag, size = 0x8, scoped, tag = 'scoped memory for tpu_custom_call.1']
    #allocation8 [shape = 'u8[458752]{0}', space=vmem, size = 0x70000, scoped, tag = 'output window, operand 0']
    %13 = vsyncpa [#allocation6], 0
    %s14 = scalar_lea.sflag [#allocation6], 1
    %15 = vsyncpa %s14, 0
    %16 = vsyncpa [#allocation7], 0
    %s17 = scalar_lea.sflag [#allocation7], 1
    %18 = vsyncpa %s17, 0
    loop: start=0, step=1, limit=4
    $region2: #{tpu_custom_call.1} parent=1 // loop_pre_header
      _
    $region3: #{tpu_custom_call.1} parent=1 // loop_header
      %s20 = sphi 0, %s24
      %p21 = scmp.ge.s32.totalorder %s20, 4
      %s30 = sphi 0, %s32
      %s33 = sphi 0, %s30
      %s34 = sphi 0, %s33
      %s50 = sphi 0, %s34
      %s54 = sphi 0, %s54
      %s56 = sphi 0, %s54
      %s57 = sphi 0, %s56
      %s71 = sphi 0, %s57
      %s75 = sphi 0, %s75
      %s77 = sphi 0, %s75
      %s78 = sphi 0, %s77
      %s92 = sphi 0, %s78
      %s96 = sphi 0, %s96
      %s98 = sphi 0, %s96
      %s99 = sphi 0, %s98
      %s113 = sphi 0, %s99
      %s117 = sphi 0, %s117
      %s119 = sphi 0, %s117
      %s120 = sphi 0, %s119
      %s134 = sphi 0, %s120
      %s138 = sphi 0, %s138
      %s140 = sphi 0, %s138
      %s141 = sphi 0, %s140
      %s155 = sphi 0, %s141
      %s159 = sphi 0, %s159
      %s161 = sphi 0, %s159
      %s162 = sphi 0, %s161
      %s176 = sphi 0, %s162
      %s180 = sphi 0, %s180
      %s182 = sphi 0, %s180
      %s183 = sphi 0, %s182
      %s197 = sphi 0, %s183
      %s203 = sphi 0, %s205
      %s206 = sphi 0, %s203
      %s207 = sphi 0, %s206
      %s223 = sphi 0, %s207
    $region4: #{tpu_custom_call.1} parent=1 // loop_header_branch
      %23 = sbr.rel (%p21) target = $region8
    $region5: #{tpu_custom_call.1} parent=1 // loop_body
      %s25 = ssub.s32 %s20, 1
      %s26 = ssub.s32 %s20, 2
      %s27 = sadd.s32 %s20, 1
      %s28 = ssub.s32 %s20, %s27
      %p29 = scmp.eq.s32.totalorder %s28, 0
      %s31 = sadd.s32 %s30, 1
      %s32 = scalar_select %p29, %s30, %s31
      %p35 = pneg %p29
      %p36 = scmp.eq.s32.totalorder %s20, 1
      %p37 = por %p35, %p36
      %p38 = scmp.ne.s32.totalorder %s30, %s33
      %p39 = scmp.eq.s32.totalorder %s20, 0
      %p40 = por %p38, %p39
      %p41 = scmp.ne.s32.totalorder %s30, %s33
      %p42 = scmp.eq.s32.totalorder %s25, 1
      %p43 = por %p41, %p42
      %p44 = scmp.ne.s32.totalorder %s33, %s34
      %p45 = scmp.eq.s32.totalorder %s25, 0
      %p46 = por %p44, %p45
      %p47 = scmp.ne.s32.totalorder %s33, %s34
      %p48 = scmp.eq.s32.totalorder %s26, 1
      %p49 = por %p47, %p48
      %p51 = scmp.ne.s32.totalorder %s34, %s50
      %p52 = scmp.eq.s32.totalorder %s26, 0
      %p53 = por %p51, %p52
      %s55 = sadd.s32 %s54, 1
      %p58 = scmp.eq.s32.totalorder %s20, 1
      %p59 = scmp.ne.s32.totalorder %s54, %s56
      %p60 = scmp.eq.s32.totalorder %s20, 0
      %p61 = por %p59, %p60
      %p62 = scmp.ne.s32.totalorder %s54, %s56
      %p63 = scmp.eq.s32.totalorder %s25, 1
      %p64 = por %p62, %p63
      %p65 = scmp.ne.s32.totalorder %s56, %s57
      %p66 = scmp.eq.s32.totalorder %s25, 0
      %p67 = por %p65, %p66
      %p68 = scmp.ne.s32.totalorder %s56, %s57
      %p69 = scmp.eq.s32.totalorder %s26, 1
      %p70 = por %p68, %p69
      %p72 = scmp.ne.s32.totalorder %s57, %s71
      %p73 = scmp.eq.s32.totalorder %s26, 0
      %p74 = por %p72, %p73
      %s76 = sadd.s32 %s75, 1
      %p79 = scmp.eq.s32.totalorder %s20, 1
      %p80 = scmp.ne.s32.totalorder %s75, %s77
      %p81 = scmp.eq.s32.totalorder %s20, 0
      %p82 = por %p80, %p81
      %p83 = scmp.ne.s32.totalorder %s75, %s77
      %p84 = scmp.eq.s32.totalorder %s25, 1
      %p85 = por %p83, %p84
      %p86 = scmp.ne.s32.totalorder %s77, %s78
      %p87 = scmp.eq.s32.totalorder %s25, 0
      %p88 = por %p86, %p87
      %p89 = scmp.ne.s32.totalorder %s77, %s78
      %p90 = scmp.eq.s32.totalorder %s26, 1
      %p91 = por %p89, %p90
      %p93 = scmp.ne.s32.totalorder %s78, %s92
      %p94 = scmp.eq.s32.totalorder %s26, 0
      %p95 = por %p93, %p94
      %s97 = sadd.s32 %s96, 1
      %p100 = scmp.eq.s32.totalorder %s20, 1
      %p101 = scmp.ne.s32.totalorder %s96, %s98
      %p102 = scmp.eq.s32.totalorder %s20, 0
      %p103 = por %p101, %p102
      %p104 = scmp.ne.s32.totalorder %s96, %s98
      %p105 = scmp.eq.s32.totalorder %s25, 1
      %p106 = por %p104, %p105
      %p107 = scmp.ne.s32.totalorder %s98, %s99
      %p108 = scmp.eq.s32.totalorder %s25, 0
      %p109 = por %p107, %p108
      %p110 = scmp.ne.s32.totalorder %s98, %s99
      %p111 = scmp.eq.s32.totalorder %s26, 1
      %p112 = por %p110, %p111
      %p114 = scmp.ne.s32.totalorder %s99, %s113
      %p115 = scmp.eq.s32.totalorder %s26, 0
      %p116 = por %p114, %p115
      %s118 = sadd.s32 %s117, 1
      %p121 = scmp.eq.s32.totalorder %s20, 1
      %p122 = scmp.ne.s32.totalorder %s117, %s119
      %p123 = scmp.eq.s32.totalorder %s20, 0
      %p124 = por %p122, %p123
      %p125 = scmp.ne.s32.totalorder %s117, %s119
      %p126 = scmp.eq.s32.totalorder %s25, 1
      %p127 = por %p125, %p126
      %p128 = scmp.ne.s32.totalorder %s119, %s120
      %p129 = scmp.eq.s32.totalorder %s25, 0
      %p130 = por %p128, %p129
      %p131 = scmp.ne.s32.totalorder %s119, %s120
      %p132 = scmp.eq.s32.totalorder %s26, 1
      %p133 = por %p131, %p132
      %p135 = scmp.ne.s32.totalorder %s120, %s134
      %p136 = scmp.eq.s32.totalorder %s26, 0
      %p137 = por %p135, %p136
      %s139 = sadd.s32 %s138, 1
      %p142 = scmp.eq.s32.totalorder %s20, 1
      %p143 = scmp.ne.s32.totalorder %s138, %s140
      %p144 = scmp.eq.s32.totalorder %s20, 0
      %p145 = por %p143, %p144
      %p146 = scmp.ne.s32.totalorder %s138, %s140
      %p147 = scmp.eq.s32.totalorder %s25, 1
      %p148 = por %p146, %p147
      %p149 = scmp.ne.s32.totalorder %s140, %s141
      %p150 = scmp.eq.s32.totalorder %s25, 0
      %p151 = por %p149, %p150
      %p152 = scmp.ne.s32.totalorder %s140, %s141
      %p153 = scmp.eq.s32.totalorder %s26, 1
      %p154 = por %p152, %p153
      %p156 = scmp.ne.s32.totalorder %s141, %s155
      %p157 = scmp.eq.s32.totalorder %s26, 0
      %p158 = por %p156, %p157
      %s160 = sadd.s32 %s159, 1
      %p163 = scmp.eq.s32.totalorder %s20, 1
      %p164 = scmp.ne.s32.totalorder %s159, %s161
      %p165 = scmp.eq.s32.totalorder %s20, 0
      %p166 = por %p164, %p165
      %p167 = scmp.ne.s32.totalorder %s159, %s161
      %p168 = scmp.eq.s32.totalorder %s25, 1
      %p169 = por %p167, %p168
      %p170 = scmp.ne.s32.totalorder %s161, %s162
      %p171 = scmp.eq.s32.totalorder %s25, 0
      %p172 = por %p170, %p171
      %p173 = scmp.ne.s32.totalorder %s161, %s162
      %p174 = scmp.eq.s32.totalorder %s26, 1
      %p175 = por %p173, %p174
      %p177 = scmp.ne.s32.totalorder %s162, %s176
      %p178 = scmp.eq.s32.totalorder %s26, 0
      %p179 = por %p177, %p178
      %s181 = sadd.s32 %s180, 1
      %p184 = scmp.eq.s32.totalorder %s20, 1
      %p185 = scmp.ne.s32.totalorder %s180, %s182
      %p186 = scmp.eq.s32.totalorder %s20, 0
      %p187 = por %p185, %p186
      %p188 = scmp.ne.s32.totalorder %s180, %s182
      %p189 = scmp.eq.s32.totalorder %s25, 1
      %p190 = por %p188, %p189
      %p191 = scmp.ne.s32.totalorder %s182, %s183
      %p192 = scmp.eq.s32.totalorder %s25, 0
      %p193 = por %p191, %p192
      %p194 = scmp.ne.s32.totalorder %s182, %s183
      %p195 = scmp.eq.s32.totalorder %s26, 1
      %p196 = por %p194, %p195
      %p198 = scmp.ne.s32.totalorder %s183, %s197
      %p199 = scmp.eq.s32.totalorder %s26, 0
      %p200 = por %p198, %p199
      %s201 = ssub.s32 %s20, %s27
      %p202 = scmp.eq.s32.totalorder %s201, 0
      %s204 = sadd.s32 %s203, 1
      %s205 = scalar_select %p202, %s203, %s204
      %p208 = pneg %p202
      %p209 = scmp.eq.s32.totalorder %s20, 1
      %p210 = por %p208, %p209
      %p211 = scmp.ne.s32.totalorder %s203, %s206
      %p212 = scmp.eq.s32.totalorder %s20, 0
      %p213 = por %p211, %p212
      %p214 = scmp.ne.s32.totalorder %s203, %s206
      %p215 = scmp.eq.s32.totalorder %s25, 1
      %p216 = por %p214, %p215
      %p217 = scmp.ne.s32.totalorder %s206, %s207
      %p218 = scmp.eq.s32.totalorder %s25, 0
      %p219 = por %p217, %p218
      %p220 = scmp.ne.s32.totalorder %s206, %s207
      %p221 = scmp.eq.s32.totalorder %s26, 1
      %p222 = por %p220, %p221
      %p224 = scmp.ne.s32.totalorder %s207, %s223
      %p225 = scmp.eq.s32.totalorder %s26, 0
      %p226 = por %p224, %p225
      %p227 = scmp.le.s32.totalorder 1, %s20
      %p228 = scmp.lt.s32.totalorder %s20, 3
      %p229 = pnand %p227, %p228
      %p230 = pneg %p229
      // Predicated region
      $region9: #{tpu_custom_call.1} parent=5 // pred_check
        _
      $region10: #{tpu_custom_call.1} parent=5 // pred_check_branch
        %232 = sbr.rel (%p229) target = $region12
      $region11: #{tpu_custom_call.1} parent=5 // pred_region
        %s233 = ssub.s32 %s20, 1
        // Predicated region
        $region13: #{tpu_custom_call.1} parent=11 // pred_check
          %p234 = pneg %p67
        $region14: #{tpu_custom_call.1} parent=11 // pred_check_branch
          %236 = sbr.rel (%p234) target = $region16
        $region15: #{tpu_custom_call.1} parent=11 // pred_region
          _
        $region16: #{tpu_custom_call.1} parent=11 // pred_fallthru
          _
        // Predicated region
        $region17: #{tpu_custom_call.1} parent=11 // pred_check
          %p237 = pneg %p88
        $region18: #{tpu_custom_call.1} parent=11 // pred_check_branch
          %239 = sbr.rel (%p237) target = $region20
        $region19: #{tpu_custom_call.1} parent=11 // pred_region
          _
        $region20: #{tpu_custom_call.1} parent=11 // pred_fallthru
          _
        // Predicated region
        $region21: #{tpu_custom_call.1} parent=11 // pred_check
          %p240 = pneg %p109
        $region22: #{tpu_custom_call.1} parent=11 // pred_check_branch
          %242 = sbr.rel (%p240) target = $region24
        $region23: #{tpu_custom_call.1} parent=11 // pred_region
          _
        $region24: #{tpu_custom_call.1} parent=11 // pred_fallthru
          _
        // Predicated region
        $region25: #{tpu_custom_call.1} parent=11 // pred_check
          %p243 = pneg %p130
        $region26: #{tpu_custom_call.1} parent=11 // pred_check_branch
          %245 = sbr.rel (%p243) target = $region28
        $region27: #{tpu_custom_call.1} parent=11 // pred_region
          _
        $region28: #{tpu_custom_call.1} parent=11 // pred_fallthru
          _
        // Predicated region
        $region29: #{tpu_custom_call.1} parent=11 // pred_check
          %p246 = pneg %p151
        $region30: #{tpu_custom_call.1} parent=11 // pred_check_branch
          %248 = sbr.rel (%p246) target = $region32
        $region31: #{tpu_custom_call.1} parent=11 // pred_region
          _
        $region32: #{tpu_custom_call.1} parent=11 // pred_fallthru
          _
        // Predicated region
        $region33: #{tpu_custom_call.1} parent=11 // pred_check
          %p249 = pneg %p172
        $region34: #{tpu_custom_call.1} parent=11 // pred_check_branch
          %251 = sbr.rel (%p249) target = $region36
        $region35: #{tpu_custom_call.1} parent=11 // pred_region
          _
        $region36: #{tpu_custom_call.1} parent=11 // pred_fallthru
          _
        // Predicated region
        $region37: #{tpu_custom_call.1} parent=11 // pred_check
          %p252 = pneg %p193
        $region38: #{tpu_custom_call.1} parent=11 // pred_check_branch
          %254 = sbr.rel (%p252) target = $region40
        $region39: #{tpu_custom_call.1} parent=11 // pred_region
          _
        $region40: #{tpu_custom_call.1} parent=11 // pred_fallthru
          _
      $region12: #{tpu_custom_call.1} parent=5 // pred_fallthru
        _
      %p255 = scmp.lt.s32.totalorder %s20, 2
      // Predicated region
      $region41: #{tpu_custom_call.1} parent=5 // pred_check
        %p256 = pneg %p255
      $region42: #{tpu_custom_call.1} parent=5 // pred_check_branch
        %258 = sbr.rel (%p256) target = $region44
      $region43: #{tpu_custom_call.1} parent=5 // pred_region
        // Predicated region
        $region45: #{tpu_custom_call.1} parent=43 // pred_check
          %p259 = pneg %p40
        $region46: #{tpu_custom_call.1} parent=43 // pred_check_branch
          %261 = sbr.rel (%p259) target = $region48
        $region47: #{tpu_custom_call.1} parent=43 // pred_region
          %s262 = sand.u32 %s30, 1
          %s263 = scalar_lea.sflag [#allocation6], %s262
          %s264 = sand.u32 %s30, 1
          %s265 = smul.addr %s264, 288
          %s266 = scalar_lea.vmem [#allocation5], %s265
          %s268 = ssub.s32 4608, 4608
          %269 = vsyncadd %s263, %s268
          %s270 = smul.addr %s20, 36
          %s271 = smul.addr %s270, 128
          %s272 = scalar_lea.hbm %s0, %s271
          %s273 = sshll.u32 %s266, 4
          %s274 = int_to_ptr.vmem [resolvable:$true] %s273
          %279 = dma.hbm_to_vmem [thread:$0]  %s272, 4608, %s274, %s263, 1152, 1152, 72
        $region48: #{tpu_custom_call.1} parent=43 // pred_fallthru
          _
      $region44: #{tpu_custom_call.1} parent=5 // pred_fallthru
        _
      %p280 = scmp.le.s32.totalorder 1, %s20
      %p281 = scmp.lt.s32.totalorder %s20, 3
      %p282 = pnand %p280, %p281
      %p283 = pneg %p282
      // Predicated region
      $region49: #{tpu_custom_call.1} parent=5 // pred_check
        _
      $region50: #{tpu_custom_call.1} parent=5 // pred_check_branch
        %285 = sbr.rel (%p282) target = $region52
      $region51: #{tpu_custom_call.1} parent=5 // pred_region
        %s286 = ssub.s32 %s20, 1
        %s287 = sand.u32 %s33, 1
        %s288 = scalar_lea.sflag [#allocation6], %s287
        %s289 = sand.u32 %s33, 1
        %s290 = smul.addr %s289, 288
        %s291 = scalar_lea.vmem [#allocation5], %s290
        // Predicated region
        $region53: #{tpu_custom_call.1} parent=51 // pred_check
          %p292 = pneg %p46
        $region54: #{tpu_custom_call.1} parent=51 // pred_check_branch
          %294 = sbr.rel (%p292) target = $region56
        $region55: #{tpu_custom_call.1} parent=51 // pred_region
          %295 = dma.done %s288, 4608
        $region56: #{tpu_custom_call.1} parent=51 // pred_fallthru
          _
        %s296 = sand.u32 %s33, 1
        %s297 = scalar_lea.sflag [#allocation6], %s296
        %s298 = sand.u32 %s33, 1
        %s299 = smul.addr %s298, 288
        %s300 = scalar_lea.vmem [#allocation5], %s299
        %p301 = pneg %p46
        %p302 = pneg %p43
        %p303 = pneg %p67
        %p304 = pneg %p64
        %p305 = pneg %p88
        %p306 = pneg %p85
        %p307 = pneg %p109
        %p308 = pneg %p106
        %p309 = pneg %p130
        %p310 = pneg %p127
        %p311 = pneg %p151
        %p312 = pneg %p148
        %p313 = pneg %p172
        %p314 = pneg %p169
        %p315 = pneg %p193
        %p316 = pneg %p190
        %p317 = pneg %p219
        %p318 = pneg %p216
        %s319 = sand.u32 %s206, 1
        %s320 = scalar_lea.sflag [#allocation7], %s319
        %s321 = sand.u32 %s206, 1
        %s322 = smul.addr %s321, 448
        %s323 = scalar_lea.vmem [#allocation8], %s322
        %v324 = vld [vmem:[%s2] sm:$0xff]
        %v325 = vld [vmem:[%s291] sm:$0xff]
        %v326 = vld [vmem:[%s291 + $0x8] sm:$0xff]
        %v327 = vld [vmem:[%s291 + $0x10] sm:$0xff]
        %v328 = vld [vmem:[%s291 + $0x18] sm:$0xff]
        %v329 = vld [vmem:[%s291 + $0x20] sm:$0xff]
        %v330 = vld [vmem:[%s291 + $0x28] sm:$0xff]
        %v331 = vld [vmem:[%s291 + $0x30] sm:$0xff]
        %v332 = vld [vmem:[%s291 + $0x38] sm:$0xff]
        %v333 = vld [vmem:[%s291 + $0x40] sm:$0xff]
        %v334 = vld [vmem:[%s291 + $0x48] sm:$0xff]
        %v335 = vld [vmem:[%s291 + $0x50] sm:$0xff]
        %v336 = vld [vmem:[%s291 + $0x58] sm:$0xff]
        %v337 = vld [vmem:[%s291 + $0x60] sm:$0xff]
        %v338 = vld [vmem:[%s291 + $0x68] sm:$0xff]
        %v339 = vld [vmem:[%s291 + $0x70] sm:$0xff]
        %v340 = vld [vmem:[%s291 + $0x78] sm:$0xff]
        %v341 = vld [vmem:[%s291 + $0x80] sm:$0xff]
        %v342 = vld [vmem:[%s291 + $0x88] sm:$0xff]
        %v343 = vld [vmem:[%s291 + $0x90] sm:$0xff]
        %v344 = vld [vmem:[%s291 + $0x98] sm:$0xff]
        %v345 = vld [vmem:[%s291 + $0xa0] sm:$0xff]
        %v346 = vld [vmem:[%s291 + $0xa8] sm:$0xff]
        %v347 = vld [vmem:[%s291 + $0xb0] sm:$0xff]
        %v348 = vld [vmem:[%s291 + $0xb8] sm:$0xff]
        %v349 = vld [vmem:[%s291 + $0xc0] sm:$0xff]
        %v350 = vld [vmem:[%s291 + $0xc8] sm:$0xff]
        %v351 = vld [vmem:[%s291 + $0xd0] sm:$0xff]
        %v352 = vld [vmem:[%s291 + $0xd8] sm:$0xff]
        %v353 = vld [vmem:[%s291 + $0xe0] sm:$0xff]
        %v354 = vld [vmem:[%s291 + $0xe8] sm:$0xff]
        %v355 = vld [vmem:[%s291 + $0xf0] sm:$0xff]
        %v356 = vld [vmem:[%s291 + $0xf8] sm:$0xff]
        %v357 = vld [vmem:[%s291 + $0x100] sm:$0xff]
        %v358 = vld [vmem:[%s291 + $0x108] sm:$0xff]
        %v359 = vld [vmem:[%s291 + $0x110] sm:$0xff]
        %v360 = vld [vmem:[%s291 + $0x118] sm:$0xff]
        %v361 = vld [vmem:[%s5] sm:$0xff]
        %363 = vset.pattern.permute.xlu0 0
        %364 = vperm.xlu0 %363, %v361
        %v365 = vpop.permute.xlu0 %364
        %vm367 = vcmask 261120
        %v369 = vsel %vm367, %v324, 0
        %371 = vmatprep.subr.mxu0 %v326
        %372 = vmatpush1.msra.mxu0 %v325
        %373 = vmatprep.subr.mxu0 %v335
        %374 = vmatpush1.msra.mxu0 %v334
        %375 = vmatprep.subr.mxu0 %v344
        %376 = vmatpush1.msra.mxu0 %v343
        %377 = vmatprep.subr.mxu0 %v353
        %378 = vmatpush1.msra.mxu0 %v352
        %379 = vmatprep.subr.mxu0 0.0
        %380 = vmatpush1.msra.mxu0 0.0
        %381 = vmatprep.subr.mxu0 0.0
        %382 = vmatpush1.msra.mxu0 0.0
        %383 = vmatprep.subr.mxu0 0.0
        %384 = vmatpush1.msra.mxu0 0.0
        %385 = vmatprep.subr.mxu0 0.0
        %386 = vmatpush1.msra.mxu0 0.0
        %387 = vmatprep.subr.mxu0 0.0
        %388 = vmatpush1.msra.mxu0 0.0
        %389 = vmatprep.subr.mxu0 0.0
        %390 = vmatpush1.msra.mxu0 0.0
        %391 = vmatprep.subr.mxu0 0.0
        %392 = vmatpush1.msra.mxu0 0.0
        %393 = vmatprep.subr.mxu0 0.0
        %394 = vmatpush1.msra.mxu0 0.0
        %395 = vmatprep.subr.mxu0 0.0
        %396 = vmatpush1.msra.mxu0 0.0
        %397 = vmatprep.subr.mxu0 0.0
        %398 = vmatpush1.msra.mxu0 0.0
        %399 = vmatprep.subr.mxu0 0.0
        %400 = vmatpush1.msra.mxu0 0.0
        %401 = vmatprep.subr.mxu0 0.0
        %402 = vmatpush1.msra.mxu0 0.0
        %403 = vmatprep.subr.mxu0 0.0
        %404 = vmatpush1.msra.mxu0 0.0
        %405 = vmatprep.subr.mxu0 0.0
        %406 = vmatpush1.msra.mxu0 0.0
        %407 = vmatprep.subr.mxu0 0.0
        %408 = vmatpush1.msra.mxu0 0.0
        %409 = vmatprep.subr.mxu0 0.0
        %410 = vmatpush1.msra.mxu0 0.0
        %411 = vmatprep.subr.mxu0 0.0
        %412 = vmatpush1.msra.mxu0 0.0
        %413 = vmatprep.subr.mxu0 0.0
        %414 = vmatpush1.msra.mxu0 0.0
        %415 = vmatprep.subr.mxu0 0.0
        %416 = vmatpush1.msra.mxu0 0.0
        %417 = vmatprep.subr.mxu0 0.0
        %418 = vmatpush1.msra.mxu0 0.0
        %419 = vmatprep.subr.mxu0 0.0
        %420 = vmatpush1.msra.mxu0 0.0
        %421 = vmatprep.subr.mxu0 0.0
        %422 = vmatpush1.msra.mxu0 0.0
        %423 = vmatprep.subr.mxu0 0.0
        %424 = vmatpush1.msra.mxu0 0.0
        %425 = vmatprep.subr.mxu0 0.0
        %426 = vmatpush1.msra.mxu0 0.0
        %427 = vmatprep.subr.mxu0 0.0
        %428 = vmatpush1.msra.mxu0 0.0
        %429 = vmatprep.subr.mxu0 0.0
        %430 = vmatpush1.msra.mxu0 0.0
        %431 = vmatprep.subr.mxu0 0.0
        %432 = vmatpush1.msra.mxu0 0.0
        %433 = vmatprep.subr.mxu0 0.0
        %434 = vmatpush1.msra.mxu0 0.0
        %435 = vmatprep.mubr.f32.mxu0 0.0
        %436 = vmatmul.mubr.f32.gmra.mrb[0].mxu0 %v369
        %v437 = vpop.f32.mrb[0].mxu0
        %v438 = vadd.f32 %v365, %v437
        %v439 = vpop.f32.mrb[0].mxu0
        %v440 = vadd.f32 %v365, %v439
        %441 = vdwg.mxu0
        %442 = vmatprep.subr.mxu0 %v328
        %443 = vmatpush1.msra.mxu0 %v327
        %444 = vmatprep.subr.mxu0 %v337
        %445 = vmatpush1.msra.mxu0 %v336
        %446 = vmatprep.subr.mxu0 %v346
        %447 = vmatpush1.msra.mxu0 %v345
        %448 = vmatprep.subr.mxu0 %v355
        %449 = vmatpush1.msra.mxu0 %v354
        %450 = vmatprep.subr.mxu0 0.0
        %451 = vmatpush1.msra.mxu0 0.0
        %452 = vmatprep.subr.mxu0 0.0
        %453 = vmatpush1.msra.mxu0 0.0
        %454 = vmatprep.subr.mxu0 0.0
        %455 = vmatpush1.msra.mxu0 0.0
        %456 = vmatprep.subr.mxu0 0.0
        %457 = vmatpush1.msra.mxu0 0.0
        %458 = vmatprep.subr.mxu0 0.0
        %459 = vmatpush1.msra.mxu0 0.0
        %460 = vmatprep.subr.mxu0 0.0
        %461 = vmatpush1.msra.mxu0 0.0
        %462 = vmatprep.subr.mxu0 0.0
        %463 = vmatpush1.msra.mxu0 0.0
        %464 = vmatprep.subr.mxu0 0.0
        %465 = vmatpush1.msra.mxu0 0.0
        %466 = vmatprep.subr.mxu0 0.0
        %467 = vmatpush1.msra.mxu0 0.0
        %468 = vmatprep.subr.mxu0 0.0
        %469 = vmatpush1.msra.mxu0 0.0
        %470 = vmatprep.subr.mxu0 0.0
        %471 = vmatpush1.msra.mxu0 0.0
        %472 = vmatprep.subr.mxu0 0.0
        %473 = vmatpush1.msra.mxu0 0.0
        %474 = vmatprep.subr.mxu0 0.0
        %475 = vmatpush1.msra.mxu0 0.0
        %476 = vmatprep.subr.mxu0 0.0
        %477 = vmatpush1.msra.mxu0 0.0
        %478 = vmatprep.subr.mxu0 0.0
        %479 = vmatpush1.msra.mxu0 0.0
        %480 = vmatprep.subr.mxu0 0.0
        %481 = vmatpush1.msra.mxu0 0.0
        %482 = vmatprep.subr.mxu0 0.0
        %483 = vmatpush1.msra.mxu0 0.0
        %484 = vmatprep.subr.mxu0 0.0
        %485 = vmatpush1.msra.mxu0 0.0
        %486 = vmatprep.subr.mxu0 0.0
        %487 = vmatpush1.msra.mxu0 0.0
        %488 = vmatprep.subr.mxu0 0.0
        %489 = vmatpush1.msra.mxu0 0.0
        %490 = vmatprep.subr.mxu0 0.0
        %491 = vmatpush1.msra.mxu0 0.0
        %492 = vmatprep.subr.mxu0 0.0
        %493 = vmatpush1.msra.mxu0 0.0
        %494 = vmatprep.subr.mxu0 0.0
        %495 = vmatpush1.msra.mxu0 0.0
        %496 = vmatprep.subr.mxu0 0.0
        %497 = vmatpush1.msra.mxu0 0.0
        %498 = vmatprep.subr.mxu0 0.0
        %499 = vmatpush1.msra.mxu0 0.0
        %500 = vmatprep.subr.mxu0 0.0
        %501 = vmatpush1.msra.mxu0 0.0
        %502 = vmatprep.subr.mxu0 0.0
        %503 = vmatpush1.msra.mxu0 0.0
        %504 = vmatprep.subr.mxu0 0.0
        %505 = vmatpush1.msra.mxu0 0.0
        %506 = vmatprep.mubr.f32.mxu0 0.0
        %507 = vmatmul.mubr.f32.gmra.mrb[0].mxu0 %v369
        %v508 = vpop.f32.mrb[0].mxu0
        %v509 = vadd.f32 %v365, %v508
        %v510 = vpop.f32.mrb[0].mxu0
        %v511 = vadd.f32 %v365, %v510
        %512 = vdwg.mxu0
        %513 = vmatprep.subr.mxu0 %v330
        %514 = vmatpush1.msra.mxu0 %v329
        %515 = vmatprep.subr.mxu0 %v339
        %516 = vmatpush1.msra.mxu0 %v338
        %517 = vmatprep.subr.mxu0 %v348
        %518 = vmatpush1.msra.mxu0 %v347
        %519 = vmatprep.subr.mxu0 %v357
        %520 = vmatpush1.msra.mxu0 %v356
        %521 = vmatprep.subr.mxu0 0.0
        %522 = vmatpush1.msra.mxu0 0.0
        %523 = vmatprep.subr.mxu0 0.0
        %524 = vmatpush1.msra.mxu0 0.0
        %525 = vmatprep.subr.mxu0 0.0
        %526 = vmatpush1.msra.mxu0 0.0
        %527 = vmatprep.subr.mxu0 0.0
        %528 = vmatpush1.msra.mxu0 0.0
        %529 = vmatprep.subr.mxu0 0.0
        %530 = vmatpush1.msra.mxu0 0.0
        %531 = vmatprep.subr.mxu0 0.0
        %532 = vmatpush1.msra.mxu0 0.0
        %533 = vmatprep.subr.mxu0 0.0
        %534 = vmatpush1.msra.mxu0 0.0
        %535 = vmatprep.subr.mxu0 0.0
        %536 = vmatpush1.msra.mxu0 0.0
        %537 = vmatprep.subr.mxu0 0.0
        %538 = vmatpush1.msra.mxu0 0.0
        %539 = vmatprep.subr.mxu0 0.0
        %540 = vmatpush1.msra.mxu0 0.0
        %541 = vmatprep.subr.mxu0 0.0
        %542 = vmatpush1.msra.mxu0 0.0
        %543 = vmatprep.subr.mxu0 0.0
        %544 = vmatpush1.msra.mxu0 0.0
        %545 = vmatprep.subr.mxu0 0.0
        %546 = vmatpush1.msra.mxu0 0.0
        %547 = vmatprep.subr.mxu0 0.0
        %548 = vmatpush1.msra.mxu0 0.0
        %549 = vmatprep.subr.mxu0 0.0
        %550 = vmatpush1.msra.mxu0 0.0
        %551 = vmatprep.subr.mxu0 0.0
        %552 = vmatpush1.msra.mxu0 0.0
        %553 = vmatprep.subr.mxu0 0.0
        %554 = vmatpush1.msra.mxu0 0.0
        %555 = vmatprep.subr.mxu0 0.0
        %556 = vmatpush1.msra.mxu0 0.0
        %557 = vmatprep.subr.mxu0 0.0
        %558 = vmatpush1.msra.mxu0 0.0
        %559 = vmatprep.subr.mxu0 0.0
        %560 = vmatpush1.msra.mxu0 0.0
        %561 = vmatprep.subr.mxu0 0.0
        %562 = vmatpush1.msra.mxu0 0.0
        %563 = vmatprep.subr.mxu0 0.0
        %564 = vmatpush1.msra.mxu0 0.0
        %565 = vmatprep.subr.mxu0 0.0
        %566 = vmatpush1.msra.mxu0 0.0
        %567 = vmatprep.subr.mxu0 0.0
        %568 = vmatpush1.msra.mxu0 0.0
        %569 = vmatprep.subr.mxu0 0.0
        %570 = vmatpush1.msra.mxu0 0.0
        %571 = vmatprep.subr.mxu0 0.0
        %572 = vmatpush1.msra.mxu0 0.0
        %573 = vmatprep.subr.mxu0 0.0
        %574 = vmatpush1.msra.mxu0 0.0
        %575 = vmatprep.subr.mxu0 0.0
        %576 = vmatpush1.msra.mxu0 0.0
        %577 = vmatprep.mubr.f32.mxu0 0.0
        %578 = vmatmul.mubr.f32.gmra.mrb[0].mxu0 %v369
        %v579 = vpop.f32.mrb[0].mxu0
        %v580 = vadd.f32 %v365, %v579
        %v581 = vpop.f32.mrb[0].mxu0
        %v582 = vadd.f32 %v365, %v581
        %583 = vdwg.mxu0
        %584 = vmatprep.subr.mxu0 %v332
        %585 = vmatpush1.msra.mxu0 %v331
        %586 = vmatprep.subr.mxu0 %v341
        %587 = vmatpush1.msra.mxu0 %v340
        %588 = vmatprep.subr.mxu0 %v350
        %589 = vmatpush1.msra.mxu0 %v349
        %590 = vmatprep.subr.mxu0 %v359
        %591 = vmatpush1.msra.mxu0 %v358
        %592 = vmatprep.subr.mxu0 0.0
        %593 = vmatpush1.msra.mxu0 0.0
        %594 = vmatprep.subr.mxu0 0.0
        %595 = vmatpush1.msra.mxu0 0.0
        %596 = vmatprep.subr.mxu0 0.0
        %597 = vmatpush1.msra.mxu0 0.0
        %598 = vmatprep.subr.mxu0 0.0
        %599 = vmatpush1.msra.mxu0 0.0
        %600 = vmatprep.subr.mxu0 0.0
        %601 = vmatpush1.msra.mxu0 0.0
        %602 = vmatprep.subr.mxu0 0.0
        %603 = vmatpush1.msra.mxu0 0.0
        %604 = vmatprep.subr.mxu0 0.0
        %605 = vmatpush1.msra.mxu0 0.0
        %606 = vmatprep.subr.mxu0 0.0
        %607 = vmatpush1.msra.mxu0 0.0
        %608 = vmatprep.subr.mxu0 0.0
        %609 = vmatpush1.msra.mxu0 0.0
        %610 = vmatprep.subr.mxu0 0.0
        %611 = vmatpush1.msra.mxu0 0.0
        %612 = vmatprep.subr.mxu0 0.0
        %613 = vmatpush1.msra.mxu0 0.0
        %614 = vmatprep.subr.mxu0 0.0
        %615 = vmatpush1.msra.mxu0 0.0
        %616 = vmatprep.subr.mxu0 0.0
        %617 = vmatpush1.msra.mxu0 0.0
        %618 = vmatprep.subr.mxu0 0.0
        %619 = vmatpush1.msra.mxu0 0.0
        %620 = vmatprep.subr.mxu0 0.0
        %621 = vmatpush1.msra.mxu0 0.0
        %622 = vmatprep.subr.mxu0 0.0
        %623 = vmatpush1.msra.mxu0 0.0
        %624 = vmatprep.subr.mxu0 0.0
        %625 = vmatpush1.msra.mxu0 0.0
        %626 = vmatprep.subr.mxu0 0.0
        %627 = vmatpush1.msra.mxu0 0.0
        %628 = vmatprep.subr.mxu0 0.0
        %629 = vmatpush1.msra.mxu0 0.0
        %630 = vmatprep.subr.mxu0 0.0
        %631 = vmatpush1.msra.mxu0 0.0
        %632 = vmatprep.subr.mxu0 0.0
        %633 = vmatpush1.msra.mxu0 0.0
        %634 = vmatprep.subr.mxu0 0.0
        %635 = vmatpush1.msra.mxu0 0.0
        %636 = vmatprep.subr.mxu0 0.0
        %637 = vmatpush1.msra.mxu0 0.0
        %638 = vmatprep.subr.mxu0 0.0
        %639 = vmatpush1.msra.mxu0 0.0
        %640 = vmatprep.subr.mxu0 0.0
        %641 = vmatpush1.msra.mxu0 0.0
        %642 = vmatprep.subr.mxu0 0.0
        %643 = vmatpush1.msra.mxu0 0.0
        %644 = vmatprep.subr.mxu0 0.0
        %645 = vmatpush1.msra.mxu0 0.0
        %646 = vmatprep.subr.mxu0 0.0
        %647 = vmatpush1.msra.mxu0 0.0
        %648 = vmatprep.mubr.f32.mxu0 0.0
        %649 = vmatmul.mubr.f32.gmra.mrb[0].mxu0 %v369
        %v650 = vpop.f32.mrb[0].mxu0
        %v651 = vadd.f32 %v365, %v650
        %v652 = vpop.f32.mrb[0].mxu0
        %v653 = vadd.f32 %v365, %v652
        %654 = vdwg.mxu0
        %655 = vmatprep.subr.mxu0 0.0
        %656 = vmatpush1.msra.mxu0 %v333
        %657 = vmatprep.subr.mxu0 0.0
        %658 = vmatpush1.msra.mxu0 %v342
        %659 = vmatprep.subr.mxu0 0.0
        %660 = vmatpush1.msra.mxu0 %v351
        %661 = vmatprep.subr.mxu0 0.0
        %662 = vmatpush1.msra.mxu0 %v360
        %663 = vmatprep.subr.mxu0 0.0
        %664 = vmatpush1.msra.mxu0 0.0
        %665 = vmatprep.subr.mxu0 0.0
        %666 = vmatpush1.msra.mxu0 0.0
        %667 = vmatprep.subr.mxu0 0.0
        %668 = vmatpush1.msra.mxu0 0.0
        %669 = vmatprep.subr.mxu0 0.0
        %670 = vmatpush1.msra.mxu0 0.0
        %671 = vmatprep.subr.mxu0 0.0
        %672 = vmatpush1.msra.mxu0 0.0
        %673 = vmatprep.subr.mxu0 0.0
        %674 = vmatpush1.msra.mxu0 0.0
        %675 = vmatprep.subr.mxu0 0.0
        %676 = vmatpush1.msra.mxu0 0.0
        %677 = vmatprep.subr.mxu0 0.0
        %678 = vmatpush1.msra.mxu0 0.0
        %679 = vmatprep.subr.mxu0 0.0
        %680 = vmatpush1.msra.mxu0 0.0
        %681 = vmatprep.subr.mxu0 0.0
        %682 = vmatpush1.msra.mxu0 0.0
        %683 = vmatprep.subr.mxu0 0.0
        %684 = vmatpush1.msra.mxu0 0.0
        %685 = vmatprep.subr.mxu0 0.0
        %686 = vmatpush1.msra.mxu0 0.0
        %687 = vmatprep.subr.mxu0 0.0
        %688 = vmatpush1.msra.mxu0 0.0
        %689 = vmatprep.subr.mxu0 0.0
        %690 = vmatpush1.msra.mxu0 0.0
        %691 = vmatprep.subr.mxu0 0.0
        %692 = vmatpush1.msra.mxu0 0.0
        %693 = vmatprep.subr.mxu0 0.0
        %694 = vmatpush1.msra.mxu0 0.0
        %695 = vmatprep.subr.mxu0 0.0
        %696 = vmatpush1.msra.mxu0 0.0
        %697 = vmatprep.subr.mxu0 0.0
        %698 = vmatpush1.msra.mxu0 0.0
        %699 = vmatprep.subr.mxu0 0.0
        %700 = vmatpush1.msra.mxu0 0.0
        %701 = vmatprep.subr.mxu0 0.0
        %702 = vmatpush1.msra.mxu0 0.0
        %703 = vmatprep.subr.mxu0 0.0
        %704 = vmatpush1.msra.mxu0 0.0
        %705 = vmatprep.subr.mxu0 0.0
        %706 = vmatpush1.msra.mxu0 0.0
        %707 = vmatprep.subr.mxu0 0.0
        %708 = vmatpush1.msra.mxu0 0.0
        %709 = vmatprep.subr.mxu0 0.0
        %710 = vmatpush1.msra.mxu0 0.0
        %711 = vmatprep.subr.mxu0 0.0
        %712 = vmatpush1.msra.mxu0 0.0
        %713 = vmatprep.subr.mxu0 0.0
        %714 = vmatpush1.msra.mxu0 0.0
        %715 = vmatprep.subr.mxu0 0.0
        %716 = vmatpush1.msra.mxu0 0.0
        %717 = vmatprep.subr.mxu0 0.0
        %718 = vmatpush1.msra.mxu0 0.0
        %719 = vmatprep.mubr.f32.mxu0 0.0
        %720 = vmatmul.mubr.f32.gmra.mrb[0].mxu0 %v369
        %v721 = vpop.f32.mrb[0].mxu0
        %v722 = vadd.f32 %v365, %v721
        %v723 = vpop.f32.mrb[0].mxu0
        %724 = vdwg.mxu0
        %v725 = vmax.f32 %v438, 0.0
        %v726 = vmax.f32 %v440, 0.0
        %v727 = vmax.f32 %v509, 0.0
        %v728 = vmax.f32 %v511, 0.0
        %v729 = vmax.f32 %v580, 0.0
        %v730 = vmax.f32 %v582, 0.0
        %v731 = vmax.f32 %v651, 0.0
        %v732 = vmax.f32 %v653, 0.0
        %v733 = vmax.f32 %v722, 0.0
        %v734 = vld [vmem:[%s1] sm:$0xff]
        %v735 = vld [vmem:[%s1 + $0x8] sm:$0x1]
        %v738 = vlaneseq
        %v739 = vshrl.u32 %v738, 7
        %v740 = vsub.s32 0, %v739
        %v741 = vrot.slane %v734, %v740
        %v742 = vlaneseq
        %v743 = vshrl.u32 %v742, 7
        %v744 = vsub.s32 1, %v743
        %v745 = vrot.slane %v734, %v744
        %v746 = vlaneseq
        %v747 = vshrl.u32 %v746, 7
        %v748 = vsub.s32 2, %v747
        %v749 = vrot.slane %v734, %v748
        %v750 = vlaneseq
        %v751 = vshrl.u32 %v750, 7
        %v752 = vsub.s32 3, %v751
        %v753 = vrot.slane %v734, %v752
        %v754 = vlaneseq
        %v755 = vshrl.u32 %v754, 7
        %v756 = vsub.s32 4, %v755
        %v757 = vrot.slane %v734, %v756
        %v758 = vlaneseq
        %v759 = vshrl.u32 %v758, 7
        %v760 = vsub.s32 5, %v759
        %v761 = vrot.slane %v734, %v760
        %v762 = vlaneseq
        %v763 = vshrl.u32 %v762, 7
        %v764 = vsub.s32 6, %v763
        %v765 = vrot.slane %v734, %v764
        %v766 = vlaneseq
        %v767 = vshrl.u32 %v766, 7
        %v768 = vsub.s32 7, %v767
        %v769 = vrot.slane %v734, %v768
        %v770 = vlaneseq
        %v771 = vshrl.u32 %v770, 7
        %v772 = vsub.s32 0, %v771
        %v773 = vrot.slane %v735, %v772
        %v783 = vmul.f32 %v725, %v741
        %v784 = vmul.f32 %v726, %v745
        %v785 = vmul.f32 %v727, %v749
        %v786 = vmul.f32 %v728, %v753
        %v787 = vmul.f32 %v729, %v757
        %v788 = vmul.f32 %v730, %v761
        %v789 = vmul.f32 %v731, %v765
        %v790 = vmul.f32 %v732, %v769
        %v791 = vmul.f32 %v733, %v773
        %792 = vst [vmem:[#allocation2] sm:$0xff] %v783
        %793 = vst [vmem:[#allocation2 + $0x8] sm:$0xff] %v784
        %794 = vst [vmem:[#allocation2 + $0x10] sm:$0xff] %v785
        %795 = vst [vmem:[#allocation2 + $0x18] sm:$0xff] %v786
        %796 = vst [vmem:[#allocation2 + $0x20] sm:$0xff] %v787
        %797 = vst [vmem:[#allocation2 + $0x28] sm:$0xff] %v788
        %798 = vst [vmem:[#allocation2 + $0x30] sm:$0xff] %v789
        %799 = vst [vmem:[#allocation2 + $0x38] sm:$0xff] %v790
        %800 = vst [vmem:[#allocation2 + $0x40] sm:$0xff] %v791
        %v801 = vld [vmem:[%s291] sm:$0xff]
        %v802 = vld [vmem:[%s291 + $0x8] sm:$0xff]
        %v803 = vld [vmem:[%s291 + $0x10] sm:$0xff]
        %v804 = vld [vmem:[%s291 + $0x18] sm:$0xff]
        %v805 = vld [vmem:[%s291 + $0x20] sm:$0xff]
        %v806 = vld [vmem:[%s291 + $0x28] sm:$0xff]
        %v807 = vld [vmem:[%s291 + $0x30] sm:$0xff]
        %v808 = vld [vmem:[%s291 + $0x38] sm:$0xff]
        %v809 = vld [vmem:[%s291 + $0x48] sm:$0xff]
        %v810 = vld [vmem:[%s291 + $0x50] sm:$0xff]
        %v811 = vld [vmem:[%s291 + $0x58] sm:$0xff]
        %v812 = vld [vmem:[%s291 + $0x60] sm:$0xff]
        %v813 = vld [vmem:[%s291 + $0x68] sm:$0xff]
        %v814 = vld [vmem:[%s291 + $0x70] sm:$0xff]
        %v815 = vld [vmem:[%s291 + $0x78] sm:$0xff]
        %v816 = vld [vmem:[%s291 + $0x80] sm:$0xff]
        %v817 = vld [vmem:[%s291 + $0x90] sm:$0xff]
        %v818 = vld [vmem:[%s291 + $0x98] sm:$0xff]
        %v819 = vld [vmem:[%s291 + $0xa0] sm:$0xff]
        %v820 = vld [vmem:[%s291 + $0xa8] sm:$0xff]
        %v821 = vld [vmem:[%s291 + $0xb0] sm:$0xff]
        %v822 = vld [vmem:[%s291 + $0xb8] sm:$0xff]
        %v823 = vld [vmem:[%s291 + $0xc0] sm:$0xff]
        %v824 = vld [vmem:[%s291 + $0xc8] sm:$0xff]
        %v825 = vld [vmem:[%s291 + $0xd8] sm:$0xff]
        %v826 = vld [vmem:[%s291 + $0xe0] sm:$0xff]
        %v827 = vld [vmem:[%s291 + $0xe8] sm:$0xff]
        %v828 = vld [vmem:[%s291 + $0xf0] sm:$0xff]
        %v829 = vld [vmem:[%s291 + $0xf8] sm:$0xff]
        %v830 = vld [vmem:[%s291 + $0x100] sm:$0xff]
        %v831 = vld [vmem:[%s291 + $0x108] sm:$0xff]
        %v832 = vld [vmem:[%s291 + $0x110] sm:$0xff]
        %865 = vrot.lane.b32.xlu0 %v801, 17
        %v866 = vpop.permute.xlu0 %865
        %867 = vrot.lane.b32.xlu0 %v802, 17
        %v868 = vpop.permute.xlu0 %867
        %869 = vrot.lane.b32.xlu0 %v803, 17
        %v870 = vpop.permute.xlu0 %869
        %871 = vrot.lane.b32.xlu0 %v804, 17
        %v872 = vpop.permute.xlu0 %871
        %873 = vrot.lane.b32.xlu0 %v805, 17
        %v874 = vpop.permute.xlu0 %873
        %875 = vrot.lane.b32.xlu0 %v806, 17
        %v876 = vpop.permute.xlu0 %875
        %877 = vrot.lane.b32.xlu0 %v807, 17
        %v878 = vpop.permute.xlu0 %877
        %879 = vrot.lane.b32.xlu0 %v808, 17
        %v880 = vpop.permute.xlu0 %879
        %881 = vrot.lane.b32.xlu0 %v809, 17
        %v882 = vpop.permute.xlu0 %881
        %883 = vrot.lane.b32.xlu0 %v810, 17
        %v884 = vpop.permute.xlu0 %883
        %885 = vrot.lane.b32.xlu0 %v811, 17
        %v886 = vpop.permute.xlu0 %885
        %887 = vrot.lane.b32.xlu0 %v812, 17
        %v888 = vpop.permute.xlu0 %887
        %889 = vrot.lane.b32.xlu0 %v813, 17
        %v890 = vpop.permute.xlu0 %889
        %891 = vrot.lane.b32.xlu0 %v814, 17
        %v892 = vpop.permute.xlu0 %891
        %893 = vrot.lane.b32.xlu0 %v815, 17
        %v894 = vpop.permute.xlu0 %893
        %895 = vrot.lane.b32.xlu0 %v816, 17
        %v896 = vpop.permute.xlu0 %895
        %897 = vrot.lane.b32.xlu0 %v817, 17
        %v898 = vpop.permute.xlu0 %897
        %899 = vrot.lane.b32.xlu0 %v818, 17
        %v900 = vpop.permute.xlu0 %899
        %901 = vrot.lane.b32.xlu0 %v819, 17
        %v902 = vpop.permute.xlu0 %901
        %903 = vrot.lane.b32.xlu0 %v820, 17
        %v904 = vpop.permute.xlu0 %903
        %905 = vrot.lane.b32.xlu0 %v821, 17
        %v906 = vpop.permute.xlu0 %905
        %907 = vrot.lane.b32.xlu0 %v822, 17
        %v908 = vpop.permute.xlu0 %907
        %909 = vrot.lane.b32.xlu0 %v823, 17
        %v910 = vpop.permute.xlu0 %909
        %911 = vrot.lane.b32.xlu0 %v824, 17
        %v912 = vpop.permute.xlu0 %911
        %913 = vrot.lane.b32.xlu0 %v825, 17
        %v914 = vpop.permute.xlu0 %913
        %915 = vrot.lane.b32.xlu0 %v826, 17
        %v916 = vpop.permute.xlu0 %915
        %917 = vrot.lane.b32.xlu0 %v827, 17
        %v918 = vpop.permute.xlu0 %917
        %919 = vrot.lane.b32.xlu0 %v828, 17
        %v920 = vpop.permute.xlu0 %919
        %921 = vrot.lane.b32.xlu0 %v829, 17
        %v922 = vpop.permute.xlu0 %921
        %923 = vrot.lane.b32.xlu0 %v830, 17
        %v924 = vpop.permute.xlu0 %923
        %925 = vrot.lane.b32.xlu0 %v831, 17
        %v926 = vpop.permute.xlu0 %925
        %927 = vrot.lane.b32.xlu0 %v832, 17
        %v928 = vpop.permute.xlu0 %927
        %vm929 = vcmask 138240
        %v930 = vsel %vm929, %v866, %v868
        %v931 = vsel %vm929, %v868, %v870
        %v932 = vsel %vm929, %v870, %v872
        %v933 = vsel %vm929, %v872, %v874
        %v934 = vsel %vm929, %v874, %v876
        %v935 = vsel %vm929, %v876, %v878
        %v936 = vsel %vm929, %v878, %v880
        %v937 = vsel %vm929, %v882, %v884
        %v938 = vsel %vm929, %v884, %v886
        %v939 = vsel %vm929, %v886, %v888
        %v940 = vsel %vm929, %v888, %v890
        %v941 = vsel %vm929, %v890, %v892
        %v942 = vsel %vm929, %v892, %v894
        %v943 = vsel %vm929, %v894, %v896
        %v944 = vsel %vm929, %v898, %v900
        %v945 = vsel %vm929, %v900, %v902
        %v946 = vsel %vm929, %v902, %v904
        %v947 = vsel %vm929, %v904, %v906
        %v948 = vsel %vm929, %v906, %v908
        %v949 = vsel %vm929, %v908, %v910
        %v950 = vsel %vm929, %v910, %v912
        %v951 = vsel %vm929, %v914, %v916
        %v952 = vsel %vm929, %v916, %v918
        %v953 = vsel %vm929, %v918, %v920
        %v954 = vsel %vm929, %v920, %v922
        %v955 = vsel %vm929, %v922, %v924
        %v956 = vsel %vm929, %v924, %v926
        %v957 = vsel %vm929, %v926, %v928
        %986 = vst [vmem:[#allocation4] sm:$0xff] %v930
        %987 = vst [vmem:[#allocation4 + $0x8] sm:$0xff] %v931
        %988 = vst [vmem:[#allocation4 + $0x10] sm:$0xff] %v932
        %989 = vst [vmem:[#allocation4 + $0x18] sm:$0xff] %v933
        %990 = vst [vmem:[#allocation4 + $0x20] sm:$0xff] %v934
        %991 = vst [vmem:[#allocation4 + $0x28] sm:$0xff] %v935
        %992 = vst [vmem:[#allocation4 + $0x30] sm:$0xff] %v936
        %993 = vst [vmem:[#allocation4 + $0x38] sm:$0xff] %v937
        %994 = vst [vmem:[#allocation4 + $0x40] sm:$0xff] %v938
        %995 = vst [vmem:[#allocation4 + $0x48] sm:$0xff] %v939
        %996 = vst [vmem:[#allocation4 + $0x50] sm:$0xff] %v940
        %997 = vst [vmem:[#allocation4 + $0x58] sm:$0xff] %v941
        %998 = vst [vmem:[#allocation4 + $0x60] sm:$0xff] %v942
        %999 = vst [vmem:[#allocation4 + $0x68] sm:$0xff] %v943
        %1000 = vst [vmem:[#allocation4 + $0x70] sm:$0xff] %v944
        %1001 = vst [vmem:[#allocation4 + $0x78] sm:$0xff] %v945
        %1002 = vst [vmem:[#allocation4 + $0x80] sm:$0xff] %v946
        %1003 = vst [vmem:[#allocation4 + $0x88] sm:$0xff] %v947
        %1004 = vst [vmem:[#allocation4 + $0x90] sm:$0xff] %v948
        %1005 = vst [vmem:[#allocation4 + $0x98] sm:$0xff] %v949
        %1006 = vst [vmem:[#allocation4 + $0xa0] sm:$0xff] %v950
        %1007 = vst [vmem:[#allocation4 + $0xa8] sm:$0xff] %v951
        %1008 = vst [vmem:[#allocation4 + $0xb0] sm:$0xff] %v952
        %1009 = vst [vmem:[#allocation4 + $0xb8] sm:$0xff] %v953
        %1010 = vst [vmem:[#allocation4 + $0xc0] sm:$0xff] %v954
        %1011 = vst [vmem:[#allocation4 + $0xc8] sm:$0xff] %v955
        %1012 = vst [vmem:[#allocation4 + $0xd0] sm:$0xff] %v956
        %1013 = vst [vmem:[#allocation4 + $0xd8] sm:$0xff] %v957
        %v1014 = vld [vmem:[#allocation2] sm:$0xff]
        %v1015 = vld [vmem:[#allocation2 + $0x8] sm:$0xff]
        %v1016 = vld [vmem:[#allocation2 + $0x10] sm:$0xff]
        %v1017 = vld [vmem:[#allocation2 + $0x18] sm:$0xff]
        %v1018 = vld [vmem:[#allocation2 + $0x20] sm:$0xff]
        %v1019 = vld [vmem:[#allocation2 + $0x28] sm:$0xff]
        %v1020 = vld [vmem:[#allocation2 + $0x30] sm:$0xff]
        %1021 = vst [vmem:[#allocation3] sm:$0xff] %v1014
        %1022 = vst [vmem:[#allocation3 + $0x8] sm:$0xff] %v1015
        %1023 = vst [vmem:[#allocation3 + $0x10] sm:$0xff] %v1016
        %1024 = vst [vmem:[#allocation3 + $0x18] sm:$0xff] %v1017
        %1025 = vst [vmem:[#allocation3 + $0x20] sm:$0xff] %v1018
        %1026 = vst [vmem:[#allocation3 + $0x28] sm:$0xff] %v1019
        %1027 = vst [vmem:[#allocation3 + $0x30] sm:$0xff] %v1020
        %v1028 = vld [vmem:[#allocation2] sm:$0xff]
        %v1029 = vld [vmem:[#allocation2 + $0x8] sm:$0xff]
        %v1030 = vld [vmem:[#allocation2 + $0x10] sm:$0xff]
        %v1031 = vld [vmem:[#allocation2 + $0x18] sm:$0xff]
        %v1032 = vld [vmem:[#allocation2 + $0x20] sm:$0xff]
        %v1033 = vld [vmem:[#allocation2 + $0x28] sm:$0xff]
        %v1034 = vld [vmem:[#allocation2 + $0x30] sm:$0xff]
        %v1035 = vld [vmem:[#allocation2 + $0x38] sm:$0xff]
        %1044 = vrot.lane.b32.xlu0 %v1028, 127
        %v1045 = vpop.permute.xlu0 %1044
        %1046 = vrot.lane.b32.xlu0 %v1029, 127
        %v1047 = vpop.permute.xlu0 %1046
        %1048 = vrot.lane.b32.xlu0 %v1030, 127
        %v1049 = vpop.permute.xlu0 %1048
        %1050 = vrot.lane.b32.xlu0 %v1031, 127
        %v1051 = vpop.permute.xlu0 %1050
        %1052 = vrot.lane.b32.xlu0 %v1032, 127
        %v1053 = vpop.permute.xlu0 %1052
        %1054 = vrot.lane.b32.xlu0 %v1033, 127
        %v1055 = vpop.permute.xlu0 %1054
        %1056 = vrot.lane.b32.xlu0 %v1034, 127
        %v1057 = vpop.permute.xlu0 %1056
        %1058 = vrot.lane.b32.xlu0 %v1035, 127
        %v1059 = vpop.permute.xlu0 %1058
        %vm1060 = vcmask 1039360
        %v1061 = vsel %vm1060, %v1045, %v1047
        %v1062 = vsel %vm1060, %v1047, %v1049
        %v1063 = vsel %vm1060, %v1049, %v1051
        %v1064 = vsel %vm1060, %v1051, %v1053
        %v1065 = vsel %vm1060, %v1053, %v1055
        %v1066 = vsel %vm1060, %v1055, %v1057
        %v1067 = vsel %vm1060, %v1057, %v1059
        %1075 = vst [vmem:[#allocation3 + $0x38] sm:$0xff] %v1061
        %1076 = vst [vmem:[#allocation3 + $0x40] sm:$0xff] %v1062
        %1077 = vst [vmem:[#allocation3 + $0x48] sm:$0xff] %v1063
        %1078 = vst [vmem:[#allocation3 + $0x50] sm:$0xff] %v1064
        %1079 = vst [vmem:[#allocation3 + $0x58] sm:$0xff] %v1065
        %1080 = vst [vmem:[#allocation3 + $0x60] sm:$0xff] %v1066
        %1081 = vst [vmem:[#allocation3 + $0x68] sm:$0xff] %v1067
        %v1082 = vld [vmem:[#allocation2] sm:$0xff]
        %v1083 = vld [vmem:[#allocation2 + $0x8] sm:$0xff]
        %v1084 = vld [vmem:[#allocation2 + $0x10] sm:$0xff]
        %v1085 = vld [vmem:[#allocation2 + $0x18] sm:$0xff]
        %v1086 = vld [vmem:[#allocation2 + $0x20] sm:$0xff]
        %v1087 = vld [vmem:[#allocation2 + $0x28] sm:$0xff]
        %v1088 = vld [vmem:[#allocation2 + $0x30] sm:$0xff]
        %v1089 = vld [vmem:[#allocation2 + $0x38] sm:$0xff]
        %1098 = vrot.lane.b32.xlu0 %v1082, 126
        %v1099 = vpop.permute.xlu0 %1098
        %1100 = vrot.lane.b32.xlu0 %v1083, 126
        %v1101 = vpop.permute.xlu0 %1100
        %1102 = vrot.lane.b32.xlu0 %v1084, 126
        %v1103 = vpop.permute.xlu0 %1102
        %1104 = vrot.lane.b32.xlu0 %v1085, 126
        %v1105 = vpop.permute.xlu0 %1104
        %1106 = vrot.lane.b32.xlu0 %v1086, 126
        %v1107 = vpop.permute.xlu0 %1106
        %1108 = vrot.lane.b32.xlu0 %v1087, 126
        %v1109 = vpop.permute.xlu0 %1108
        %1110 = vrot.lane.b32.xlu0 %v1088, 126
        %v1111 = vpop.permute.xlu0 %1110
        %1112 = vrot.lane.b32.xlu0 %v1089, 126
        %v1113 = vpop.permute.xlu0 %1112
        %vm1114 = vcmask 1031168
        %v1115 = vsel %vm1114, %v1099, %v1101
        %v1116 = vsel %vm1114, %v1101, %v1103
        %v1117 = vsel %vm1114, %v1103, %v1105
        %v1118 = vsel %vm1114, %v1105, %v1107
        %v1119 = vsel %vm1114, %v1107, %v1109
        %v1120 = vsel %vm1114, %v1109, %v1111
        %v1121 = vsel %vm1114, %v1111, %v1113
        %1129 = vst [vmem:[#allocation3 + $0x70] sm:$0xff] %v1115
        %1130 = vst [vmem:[#allocation3 + $0x78] sm:$0xff] %v1116
        %1131 = vst [vmem:[#allocation3 + $0x80] sm:$0xff] %v1117
        %1132 = vst [vmem:[#allocation3 + $0x88] sm:$0xff] %v1118
        %1133 = vst [vmem:[#allocation3 + $0x90] sm:$0xff] %v1119
        %1134 = vst [vmem:[#allocation3 + $0x98] sm:$0xff] %v1120
        %1135 = vst [vmem:[#allocation3 + $0xa0] sm:$0xff] %v1121
        %v1136 = vld [vmem:[#allocation2] sm:$0xff]
        %v1137 = vld [vmem:[#allocation2 + $0x8] sm:$0xff]
        %v1138 = vld [vmem:[#allocation2 + $0x10] sm:$0xff]
        %v1139 = vld [vmem:[#allocation2 + $0x18] sm:$0xff]
        %v1140 = vld [vmem:[#allocation2 + $0x20] sm:$0xff]
        %v1141 = vld [vmem:[#allocation2 + $0x28] sm:$0xff]
        %v1142 = vld [vmem:[#allocation2 + $0x30] sm:$0xff]
        %v1143 = vld [vmem:[#allocation2 + $0x38] sm:$0xff]
        %1152 = vrot.lane.b32.xlu0 %v1136, 118
        %v1153 = vpop.permute.xlu0 %1152
        %1154 = vrot.lane.b32.xlu0 %v1137, 118
        %v1155 = vpop.permute.xlu0 %1154
        %1156 = vrot.lane.b32.xlu0 %v1138, 118
        %v1157 = vpop.permute.xlu0 %1156
        %1158 = vrot.lane.b32.xlu0 %v1139, 118
        %v1159 = vpop.permute.xlu0 %1158
        %1160 = vrot.lane.b32.xlu0 %v1140, 118
        %v1161 = vpop.permute.xlu0 %1160
        %1162 = vrot.lane.b32.xlu0 %v1141, 118
        %v1163 = vpop.permute.xlu0 %1162
        %1164 = vrot.lane.b32.xlu0 %v1142, 118
        %v1165 = vpop.permute.xlu0 %1164
        %1166 = vrot.lane.b32.xlu0 %v1143, 118
        %v1167 = vpop.permute.xlu0 %1166
        %vm1168 = vcmask 965632
        %v1169 = vsel %vm1168, %v1153, %v1155
        %v1170 = vsel %vm1168, %v1155, %v1157
        %v1171 = vsel %vm1168, %v1157, %v1159
        %v1172 = vsel %vm1168, %v1159, %v1161
        %v1173 = vsel %vm1168, %v1161, %v1163
        %v1174 = vsel %vm1168, %v1163, %v1165
        %v1175 = vsel %vm1168, %v1165, %v1167
        %1183 = vst [vmem:[#allocation3 + $0xa8] sm:$0xff] %v1169
        %1184 = vst [vmem:[#allocation3 + $0xb0] sm:$0xff] %v1170
        %1185 = vst [vmem:[#allocation3 + $0xb8] sm:$0xff] %v1171
        %1186 = vst [vmem:[#allocation3 + $0xc0] sm:$0xff] %v1172
        %1187 = vst [vmem:[#allocation3 + $0xc8] sm:$0xff] %v1173
        %1188 = vst [vmem:[#allocation3 + $0xd0] sm:$0xff] %v1174
        %1189 = vst [vmem:[#allocation3 + $0xd8] sm:$0xff] %v1175
        %v1190 = vld [vmem:[#allocation2] sm:$0xff]
        %v1191 = vld [vmem:[#allocation2 + $0x8] sm:$0xff]
        %v1192 = vld [vmem:[#allocation2 + $0x10] sm:$0xff]
        %v1193 = vld [vmem:[#allocation2 + $0x18] sm:$0xff]
        %v1194 = vld [vmem:[#allocation2 + $0x20] sm:$0xff]
        %v1195 = vld [vmem:[#allocation2 + $0x28] sm:$0xff]
        %v1196 = vld [vmem:[#allocation2 + $0x30] sm:$0xff]
        %v1197 = vld [vmem:[#allocation2 + $0x38] sm:$0xff]
        %1206 = vrot.lane.b32.xlu0 %v1190, 117
        %v1207 = vpop.permute.xlu0 %1206
        %1208 = vrot.lane.b32.xlu0 %v1191, 117
        %v1209 = vpop.permute.xlu0 %1208
        %1210 = vrot.lane.b32.xlu0 %v1192, 117
        %v1211 = vpop.permute.xlu0 %1210
        %1212 = vrot.lane.b32.xlu0 %v1193, 117
        %v1213 = vpop.permute.xlu0 %1212
        %1214 = vrot.lane.b32.xlu0 %v1194, 117
        %v1215 = vpop.permute.xlu0 %1214
        %1216 = vrot.lane.b32.xlu0 %v1195, 117
        %v1217 = vpop.permute.xlu0 %1216
        %1218 = vrot.lane.b32.xlu0 %v1196, 117
        %v1219 = vpop.permute.xlu0 %1218
        %1220 = vrot.lane.b32.xlu0 %v1197, 117
        %v1221 = vpop.permute.xlu0 %1220
        %vm1222 = vcmask 957440
        %v1223 = vsel %vm1222, %v1207, %v1209
        %v1224 = vsel %vm1222, %v1209, %v1211
        %v1225 = vsel %vm1222, %v1211, %v1213
        %v1226 = vsel %vm1222, %v1213, %v1215
        %v1227 = vsel %vm1222, %v1215, %v1217
        %v1228 = vsel %vm1222, %v1217, %v1219
        %v1229 = vsel %vm1222, %v1219, %v1221
        %1237 = vst [vmem:[#allocation3 + $0xe0] sm:$0xff] %v1223
        %1238 = vst [vmem:[#allocation3 + $0xe8] sm:$0xff] %v1224
        %1239 = vst [vmem:[#allocation3 + $0xf0] sm:$0xff] %v1225
        %1240 = vst [vmem:[#allocation3 + $0xf8] sm:$0xff] %v1226
        %1241 = vst [vmem:[#allocation3 + $0x100] sm:$0xff] %v1227
        %1242 = vst [vmem:[#allocation3 + $0x108] sm:$0xff] %v1228
        %1243 = vst [vmem:[#allocation3 + $0x110] sm:$0xff] %v1229
        %v1244 = vld [vmem:[#allocation2] sm:$0xff]
        %v1245 = vld [vmem:[#allocation2 + $0x8] sm:$0xff]
        %v1246 = vld [vmem:[#allocation2 + $0x10] sm:$0xff]
        %v1247 = vld [vmem:[#allocation2 + $0x18] sm:$0xff]
        %v1248 = vld [vmem:[#allocation2 + $0x20] sm:$0xff]
        %v1249 = vld [vmem:[#allocation2 + $0x28] sm:$0xff]
        %v1250 = vld [vmem:[#allocation2 + $0x30] sm:$0xff]
        %v1251 = vld [vmem:[#allocation2 + $0x38] sm:$0xff]
        %1260 = vrot.lane.b32.xlu0 %v1244, 116
        %v1261 = vpop.permute.xlu0 %1260
        %1262 = vrot.lane.b32.xlu0 %v1245, 116
        %v1263 = vpop.permute.xlu0 %1262
        %1264 = vrot.lane.b32.xlu0 %v1246, 116
        %v1265 = vpop.permute.xlu0 %1264
        %1266 = vrot.lane.b32.xlu0 %v1247, 116
        %v1267 = vpop.permute.xlu0 %1266
        %1268 = vrot.lane.b32.xlu0 %v1248, 116
        %v1269 = vpop.permute.xlu0 %1268
        %1270 = vrot.lane.b32.xlu0 %v1249, 116
        %v1271 = vpop.permute.xlu0 %1270
        %1272 = vrot.lane.b32.xlu0 %v1250, 116
        %v1273 = vpop.permute.xlu0 %1272
        %1274 = vrot.lane.b32.xlu0 %v1251, 116
        %v1275 = vpop.permute.xlu0 %1274
        %vm1276 = vcmask 949248
        %v1277 = vsel %vm1276, %v1261, %v1263
        %v1278 = vsel %vm1276, %v1263, %v1265
        %v1279 = vsel %vm1276, %v1265, %v1267
        %v1280 = vsel %vm1276, %v1267, %v1269
        %v1281 = vsel %vm1276, %v1269, %v1271
        %v1282 = vsel %vm1276, %v1271, %v1273
        %v1283 = vsel %vm1276, %v1273, %v1275
        %1291 = vst [vmem:[#allocation3 + $0x118] sm:$0xff] %v1277
        %1292 = vst [vmem:[#allocation3 + $0x120] sm:$0xff] %v1278
        %1293 = vst [vmem:[#allocation3 + $0x128] sm:$0xff] %v1279
        %1294 = vst [vmem:[#allocation3 + $0x130] sm:$0xff] %v1280
        %1295 = vst [vmem:[#allocation3 + $0x138] sm:$0xff] %v1281
        %1296 = vst [vmem:[#allocation3 + $0x140] sm:$0xff] %v1282
        %1297 = vst [vmem:[#allocation3 + $0x148] sm:$0xff] %v1283
        %v1298 = vld [vmem:[#allocation2] sm:$0xff]
        %v1299 = vld [vmem:[#allocation2 + $0x8] sm:$0xff]
        %v1300 = vld [vmem:[#allocation2 + $0x10] sm:$0xff]
        %v1301 = vld [vmem:[#allocation2 + $0x18] sm:$0xff]
        %v1302 = vld [vmem:[#allocation2 + $0x20] sm:$0xff]
        %v1303 = vld [vmem:[#allocation2 + $0x28] sm:$0xff]
        %v1304 = vld [vmem:[#allocation2 + $0x30] sm:$0xff]
        %v1305 = vld [vmem:[#allocation2 + $0x38] sm:$0xff]
        %1314 = vrot.lane.b32.xlu0 %v1298, 108
        %v1315 = vpop.permute.xlu0 %1314
        %1316 = vrot.lane.b32.xlu0 %v1299, 108
        %v1317 = vpop.permute.xlu0 %1316
        %1318 = vrot.lane.b32.xlu0 %v1300, 108
        %v1319 = vpop.permute.xlu0 %1318
        %1320 = vrot.lane.b32.xlu0 %v1301, 108
        %v1321 = vpop.permute.xlu0 %1320
        %1322 = vrot.lane.b32.xlu0 %v1302, 108
        %v1323 = vpop.permute.xlu0 %1322
        %1324 = vrot.lane.b32.xlu0 %v1303, 108
        %v1325 = vpop.permute.xlu0 %1324
        %1326 = vrot.lane.b32.xlu0 %v1304, 108
        %v1327 = vpop.permute.xlu0 %1326
        %1328 = vrot.lane.b32.xlu0 %v1305, 108
        %v1329 = vpop.permute.xlu0 %1328
        %vm1330 = vcmask 883712
        %v1331 = vsel %vm1330, %v1315, %v1317
        %v1332 = vsel %vm1330, %v1317, %v1319
        %v1333 = vsel %vm1330, %v1319, %v1321
        %v1334 = vsel %vm1330, %v1321, %v1323
        %v1335 = vsel %vm1330, %v1323, %v1325
        %v1336 = vsel %vm1330, %v1325, %v1327
        %v1337 = vsel %vm1330, %v1327, %v1329
        %1345 = vst [vmem:[#allocation3 + $0x150] sm:$0xff] %v1331
        %1346 = vst [vmem:[#allocation3 + $0x158] sm:$0xff] %v1332
        %1347 = vst [vmem:[#allocation3 + $0x160] sm:$0xff] %v1333
        %1348 = vst [vmem:[#allocation3 + $0x168] sm:$0xff] %v1334
        %1349 = vst [vmem:[#allocation3 + $0x170] sm:$0xff] %v1335
        %1350 = vst [vmem:[#allocation3 + $0x178] sm:$0xff] %v1336
        %1351 = vst [vmem:[#allocation3 + $0x180] sm:$0xff] %v1337
        %v1352 = vld [vmem:[#allocation2] sm:$0xff]
        %v1353 = vld [vmem:[#allocation2 + $0x8] sm:$0xff]
        %v1354 = vld [vmem:[#allocation2 + $0x10] sm:$0xff]
        %v1355 = vld [vmem:[#allocation2 + $0x18] sm:$0xff]
        %v1356 = vld [vmem:[#allocation2 + $0x20] sm:$0xff]
        %v1357 = vld [vmem:[#allocation2 + $0x28] sm:$0xff]
        %v1358 = vld [vmem:[#allocation2 + $0x30] sm:$0xff]
        %v1359 = vld [vmem:[#allocation2 + $0x38] sm:$0xff]
        %1368 = vrot.lane.b32.xlu0 %v1352, 107
        %v1369 = vpop.permute.xlu0 %1368
        %1370 = vrot.lane.b32.xlu0 %v1353, 107
        %v1371 = vpop.permute.xlu0 %1370
        %1372 = vrot.lane.b32.xlu0 %v1354, 107
        %v1373 = vpop.permute.xlu0 %1372
        %1374 = vrot.lane.b32.xlu0 %v1355, 107
        %v1375 = vpop.permute.xlu0 %1374
        %1376 = vrot.lane.b32.xlu0 %v1356, 107
        %v1377 = vpop.permute.xlu0 %1376
        %1378 = vrot.lane.b32.xlu0 %v1357, 107
        %v1379 = vpop.permute.xlu0 %1378
        %1380 = vrot.lane.b32.xlu0 %v1358, 107
        %v1381 = vpop.permute.xlu0 %1380
        %1382 = vrot.lane.b32.xlu0 %v1359, 107
        %v1383 = vpop.permute.xlu0 %1382
        %vm1384 = vcmask 875520
        %v1385 = vsel %vm1384, %v1369, %v1371
        %v1386 = vsel %vm1384, %v1371, %v1373
        %v1387 = vsel %vm1384, %v1373, %v1375
        %v1388 = vsel %vm1384, %v1375, %v1377
        %v1389 = vsel %vm1384, %v1377, %v1379
        %v1390 = vsel %vm1384, %v1379, %v1381
        %v1391 = vsel %vm1384, %v1381, %v1383
        %1399 = vst [vmem:[#allocation3 + $0x188] sm:$0xff] %v1385
        %1400 = vst [vmem:[#allocation3 + $0x190] sm:$0xff] %v1386
        %1401 = vst [vmem:[#allocation3 + $0x198] sm:$0xff] %v1387
        %1402 = vst [vmem:[#allocation3 + $0x1a0] sm:$0xff] %v1388
        %1403 = vst [vmem:[#allocation3 + $0x1a8] sm:$0xff] %v1389
        %1404 = vst [vmem:[#allocation3 + $0x1b0] sm:$0xff] %v1390
        %1405 = vst [vmem:[#allocation3 + $0x1b8] sm:$0xff] %v1391
        %v1406 = vld [vmem:[#allocation2] sm:$0xff]
        %v1407 = vld [vmem:[#allocation2 + $0x8] sm:$0xff]
        %v1408 = vld [vmem:[#allocation2 + $0x10] sm:$0xff]
        %v1409 = vld [vmem:[#allocation2 + $0x18] sm:$0xff]
        %v1410 = vld [vmem:[#allocation2 + $0x20] sm:$0xff]
        %v1411 = vld [vmem:[#allocation2 + $0x28] sm:$0xff]
        %v1412 = vld [vmem:[#allocation2 + $0x30] sm:$0xff]
        %v1413 = vld [vmem:[#allocation2 + $0x38] sm:$0xff]
        %1422 = vrot.lane.b32.xlu0 %v1406, 106
        %v1423 = vpop.permute.xlu0 %1422
        %1424 = vrot.lane.b32.xlu0 %v1407, 106
        %v1425 = vpop.permute.xlu0 %1424
        %1426 = vrot.lane.b32.xlu0 %v1408, 106
        %v1427 = vpop.permute.xlu0 %1426
        %1428 = vrot.lane.b32.xlu0 %v1409, 106
        %v1429 = vpop.permute.xlu0 %1428
        %1430 = vrot.lane.b32.xlu0 %v1410, 106
        %v1431 = vpop.permute.xlu0 %1430
        %1432 = vrot.lane.b32.xlu0 %v1411, 106
        %v1433 = vpop.permute.xlu0 %1432
        %1434 = vrot.lane.b32.xlu0 %v1412, 106
        %v1435 = vpop.permute.xlu0 %1434
        %1436 = vrot.lane.b32.xlu0 %v1413, 106
        %v1437 = vpop.permute.xlu0 %1436
        %vm1438 = vcmask 867328
        %v1439 = vsel %vm1438, %v1423, %v1425
        %v1440 = vsel %vm1438, %v1425, %v1427
        %v1441 = vsel %vm1438, %v1427, %v1429
        %v1442 = vsel %vm1438, %v1429, %v1431
        %v1443 = vsel %vm1438, %v1431, %v1433
        %v1444 = vsel %vm1438, %v1433, %v1435
        %v1445 = vsel %vm1438, %v1435, %v1437
        %1453 = vst [vmem:[#allocation3 + $0x1c0] sm:$0xff] %v1439
        %1454 = vst [vmem:[#allocation3 + $0x1c8] sm:$0xff] %v1440
        %1455 = vst [vmem:[#allocation3 + $0x1d0] sm:$0xff] %v1441
        %1456 = vst [vmem:[#allocation3 + $0x1d8] sm:$0xff] %v1442
        %1457 = vst [vmem:[#allocation3 + $0x1e0] sm:$0xff] %v1443
        %1458 = vst [vmem:[#allocation3 + $0x1e8] sm:$0xff] %v1444
        %1459 = vst [vmem:[#allocation3 + $0x1f0] sm:$0xff] %v1445
        %v1460 = vld [vmem:[#allocation2] sm:$0xff]
        %v1461 = vld [vmem:[#allocation2 + $0x8] sm:$0xff]
        %v1462 = vld [vmem:[#allocation2 + $0x10] sm:$0xff]
        %v1463 = vld [vmem:[#allocation2 + $0x18] sm:$0xff]
        %v1464 = vld [vmem:[#allocation2 + $0x20] sm:$0xff]
        %v1465 = vld [vmem:[#allocation2 + $0x28] sm:$0xff]
        %v1466 = vld [vmem:[#allocation2 + $0x30] sm:$0xff]
        %v1467 = vld [vmem:[#allocation2 + $0x38] sm:$0xff]
        %1476 = vrot.lane.b32.xlu0 %v1460, 28
        %v1477 = vpop.permute.xlu0 %1476
        %1478 = vrot.lane.b32.xlu0 %v1461, 28
        %v1479 = vpop.permute.xlu0 %1478
        %1480 = vrot.lane.b32.xlu0 %v1462, 28
        %v1481 = vpop.permute.xlu0 %1480
        %1482 = vrot.lane.b32.xlu0 %v1463, 28
        %v1483 = vpop.permute.xlu0 %1482
        %1484 = vrot.lane.b32.xlu0 %v1464, 28
        %v1485 = vpop.permute.xlu0 %1484
        %1486 = vrot.lane.b32.xlu0 %v1465, 28
        %v1487 = vpop.permute.xlu0 %1486
        %1488 = vrot.lane.b32.xlu0 %v1466, 28
        %v1489 = vpop.permute.xlu0 %1488
        %1490 = vrot.lane.b32.xlu0 %v1467, 28
        %v1491 = vpop.permute.xlu0 %1490
        %vm1492 = vcmask 228352
        %v1493 = vsel %vm1492, %v1477, %v1479
        %v1494 = vsel %vm1492, %v1479, %v1481
        %v1495 = vsel %vm1492, %v1481, %v1483
        %v1496 = vsel %vm1492, %v1483, %v1485
        %v1497 = vsel %vm1492, %v1485, %v1487
        %v1498 = vsel %vm1492, %v1487, %v1489
        %v1499 = vsel %vm1492, %v1489, %v1491
        %1507 = vst [vmem:[#allocation3 + $0x1f8] sm:$0xff] %v1493
        %1508 = vst [vmem:[#allocation3 + $0x200] sm:$0xff] %v1494
        %1509 = vst [vmem:[#allocation3 + $0x208] sm:$0xff] %v1495
        %1510 = vst [vmem:[#allocation3 + $0x210] sm:$0xff] %v1496
        %1511 = vst [vmem:[#allocation3 + $0x218] sm:$0xff] %v1497
        %1512 = vst [vmem:[#allocation3 + $0x220] sm:$0xff] %v1498
        %1513 = vst [vmem:[#allocation3 + $0x228] sm:$0xff] %v1499
        %v1514 = vld [vmem:[#allocation2] sm:$0xff]
        %v1515 = vld [vmem:[#allocation2 + $0x8] sm:$0xff]
        %v1516 = vld [vmem:[#allocation2 + $0x10] sm:$0xff]
        %v1517 = vld [vmem:[#allocation2 + $0x18] sm:$0xff]
        %v1518 = vld [vmem:[#allocation2 + $0x20] sm:$0xff]
        %v1519 = vld [vmem:[#allocation2 + $0x28] sm:$0xff]
        %v1520 = vld [vmem:[#allocation2 + $0x30] sm:$0xff]
        %v1521 = vld [vmem:[#allocation2 + $0x38] sm:$0xff]
        %1530 = vrot.lane.b32.xlu0 %v1514, 27
        %v1531 = vpop.permute.xlu0 %1530
        %1532 = vrot.lane.b32.xlu0 %v1515, 27
        %v1533 = vpop.permute.xlu0 %1532
        %1534 = vrot.lane.b32.xlu0 %v1516, 27
        %v1535 = vpop.permute.xlu0 %1534
        %1536 = vrot.lane.b32.xlu0 %v1517, 27
        %v1537 = vpop.permute.xlu0 %1536
        %1538 = vrot.lane.b32.xlu0 %v1518, 27
        %v1539 = vpop.permute.xlu0 %1538
        %1540 = vrot.lane.b32.xlu0 %v1519, 27
        %v1541 = vpop.permute.xlu0 %1540
        %1542 = vrot.lane.b32.xlu0 %v1520, 27
        %v1543 = vpop.permute.xlu0 %1542
        %1544 = vrot.lane.b32.xlu0 %v1521, 27
        %v1545 = vpop.permute.xlu0 %1544
        %vm1546 = vcmask 220160
        %v1547 = vsel %vm1546, %v1531, %v1533
        %v1548 = vsel %vm1546, %v1533, %v1535
        %v1549 = vsel %vm1546, %v1535, %v1537
        %v1550 = vsel %vm1546, %v1537, %v1539
        %v1551 = vsel %vm1546, %v1539, %v1541
        %v1552 = vsel %vm1546, %v1541, %v1543
        %v1553 = vsel %vm1546, %v1543, %v1545
        %1561 = vst [vmem:[#allocation3 + $0x230] sm:$0xff] %v1547
        %1562 = vst [vmem:[#allocation3 + $0x238] sm:$0xff] %v1548
        %1563 = vst [vmem:[#allocation3 + $0x240] sm:$0xff] %v1549
        %1564 = vst [vmem:[#allocation3 + $0x248] sm:$0xff] %v1550
        %1565 = vst [vmem:[#allocation3 + $0x250] sm:$0xff] %v1551
        %1566 = vst [vmem:[#allocation3 + $0x258] sm:$0xff] %v1552
        %1567 = vst [vmem:[#allocation3 + $0x260] sm:$0xff] %v1553
        %v1568 = vld [vmem:[#allocation2] sm:$0xff]
        %v1569 = vld [vmem:[#allocation2 + $0x8] sm:$0xff]
        %v1570 = vld [vmem:[#allocation2 + $0x10] sm:$0xff]
        %v1571 = vld [vmem:[#allocation2 + $0x18] sm:$0xff]
        %v1572 = vld [vmem:[#allocation2 + $0x20] sm:$0xff]
        %v1573 = vld [vmem:[#allocation2 + $0x28] sm:$0xff]
        %v1574 = vld [vmem:[#allocation2 + $0x30] sm:$0xff]
        %v1575 = vld [vmem:[#allocation2 + $0x38] sm:$0xff]
        %1584 = vrot.lane.b32.xlu0 %v1568, 26
        %v1585 = vpop.permute.xlu0 %1584
        %1586 = vrot.lane.b32.xlu0 %v1569, 26
        %v1587 = vpop.permute.xlu0 %1586
        %1588 = vrot.lane.b32.xlu0 %v1570, 26
        %v1589 = vpop.permute.xlu0 %1588
        %1590 = vrot.lane.b32.xlu0 %v1571, 26
        %v1591 = vpop.permute.xlu0 %1590
        %1592 = vrot.lane.b32.xlu0 %v1572, 26
        %v1593 = vpop.permute.xlu0 %1592
        %1594 = vrot.lane.b32.xlu0 %v1573, 26
        %v1595 = vpop.permute.xlu0 %1594
        %1596 = vrot.lane.b32.xlu0 %v1574, 26
        %v1597 = vpop.permute.xlu0 %1596
        %1598 = vrot.lane.b32.xlu0 %v1575, 26
        %v1599 = vpop.permute.xlu0 %1598
        %vm1600 = vcmask 211968
        %v1601 = vsel %vm1600, %v1585, %v1587
        %v1602 = vsel %vm1600, %v1587, %v1589
        %v1603 = vsel %vm1600, %v1589, %v1591
        %v1604 = vsel %vm1600, %v1591, %v1593
        %v1605 = vsel %vm1600, %v1593, %v1595
        %v1606 = vsel %vm1600, %v1595, %v1597
        %v1607 = vsel %vm1600, %v1597, %v1599
        %1615 = vst [vmem:[#allocation3 + $0x268] sm:$0xff] %v1601
        %1616 = vst [vmem:[#allocation3 + $0x270] sm:$0xff] %v1602
        %1617 = vst [vmem:[#allocation3 + $0x278] sm:$0xff] %v1603
        %1618 = vst [vmem:[#allocation3 + $0x280] sm:$0xff] %v1604
        %1619 = vst [vmem:[#allocation3 + $0x288] sm:$0xff] %v1605
        %1620 = vst [vmem:[#allocation3 + $0x290] sm:$0xff] %v1606
        %1621 = vst [vmem:[#allocation3 + $0x298] sm:$0xff] %v1607
        %v1622 = vld [vmem:[#allocation2] sm:$0xff]
        %v1623 = vld [vmem:[#allocation2 + $0x8] sm:$0xff]
        %v1624 = vld [vmem:[#allocation2 + $0x10] sm:$0xff]
        %v1625 = vld [vmem:[#allocation2 + $0x18] sm:$0xff]
        %v1626 = vld [vmem:[#allocation2 + $0x20] sm:$0xff]
        %v1627 = vld [vmem:[#allocation2 + $0x28] sm:$0xff]
        %v1628 = vld [vmem:[#allocation2 + $0x30] sm:$0xff]
        %v1629 = vld [vmem:[#allocation2 + $0x38] sm:$0xff]
        %1638 = vrot.lane.b32.xlu0 %v1622, 18
        %v1639 = vpop.permute.xlu0 %1638
        %1640 = vrot.lane.b32.xlu0 %v1623, 18
        %v1641 = vpop.permute.xlu0 %1640
        %1642 = vrot.lane.b32.xlu0 %v1624, 18
        %v1643 = vpop.permute.xlu0 %1642
        %1644 = vrot.lane.b32.xlu0 %v1625, 18
        %v1645 = vpop.permute.xlu0 %1644
        %1646 = vrot.lane.b32.xlu0 %v1626, 18
        %v1647 = vpop.permute.xlu0 %1646
        %1648 = vrot.lane.b32.xlu0 %v1627, 18
        %v1649 = vpop.permute.xlu0 %1648
        %1650 = vrot.lane.b32.xlu0 %v1628, 18
        %v1651 = vpop.permute.xlu0 %1650
        %1652 = vrot.lane.b32.xlu0 %v1629, 18
        %v1653 = vpop.permute.xlu0 %1652
        %vm1654 = vcmask 146432
        %v1655 = vsel %vm1654, %v1639, %v1641
        %v1656 = vsel %vm1654, %v1641, %v1643
        %v1657 = vsel %vm1654, %v1643, %v1645
        %v1658 = vsel %vm1654, %v1645, %v1647
        %v1659 = vsel %vm1654, %v1647, %v1649
        %v1660 = vsel %vm1654, %v1649, %v1651
        %v1661 = vsel %vm1654, %v1651, %v1653
        %1669 = vst [vmem:[#allocation3 + $0x2a0] sm:$0xff] %v1655
        %1670 = vst [vmem:[#allocation3 + $0x2a8] sm:$0xff] %v1656
        %1671 = vst [vmem:[#allocation3 + $0x2b0] sm:$0xff] %v1657
        %1672 = vst [vmem:[#allocation3 + $0x2b8] sm:$0xff] %v1658
        %1673 = vst [vmem:[#allocation3 + $0x2c0] sm:$0xff] %v1659
        %1674 = vst [vmem:[#allocation3 + $0x2c8] sm:$0xff] %v1660
        %1675 = vst [vmem:[#allocation3 + $0x2d0] sm:$0xff] %v1661
        %v1676 = vld [vmem:[#allocation2] sm:$0xff]
        %v1677 = vld [vmem:[#allocation2 + $0x8] sm:$0xff]
        %v1678 = vld [vmem:[#allocation2 + $0x10] sm:$0xff]
        %v1679 = vld [vmem:[#allocation2 + $0x18] sm:$0xff]
        %v1680 = vld [vmem:[#allocation2 + $0x20] sm:$0xff]
        %v1681 = vld [vmem:[#allocation2 + $0x28] sm:$0xff]
        %v1682 = vld [vmem:[#allocation2 + $0x30] sm:$0xff]
        %v1683 = vld [vmem:[#allocation2 + $0x38] sm:$0xff]
        %1692 = vrot.lane.b32.xlu0 %v1676, 17
        %v1693 = vpop.permute.xlu0 %1692
        %1694 = vrot.lane.b32.xlu0 %v1677, 17
        %v1695 = vpop.permute.xlu0 %1694
        %1696 = vrot.lane.b32.xlu0 %v1678, 17
        %v1697 = vpop.permute.xlu0 %1696
        %1698 = vrot.lane.b32.xlu0 %v1679, 17
        %v1699 = vpop.permute.xlu0 %1698
        %1700 = vrot.lane.b32.xlu0 %v1680, 17
        %v1701 = vpop.permute.xlu0 %1700
        %1702 = vrot.lane.b32.xlu0 %v1681, 17
        %v1703 = vpop.permute.xlu0 %1702
        %1704 = vrot.lane.b32.xlu0 %v1682, 17
        %v1705 = vpop.permute.xlu0 %1704
        %1706 = vrot.lane.b32.xlu0 %v1683, 17
        %v1707 = vpop.permute.xlu0 %1706
        %v1708 = vsel %vm929, %v1693, %v1695
        %v1709 = vsel %vm929, %v1695, %v1697
        %v1710 = vsel %vm929, %v1697, %v1699
        %v1711 = vsel %vm929, %v1699, %v1701
        %v1712 = vsel %vm929, %v1701, %v1703
        %v1713 = vsel %vm929, %v1703, %v1705
        %v1714 = vsel %vm929, %v1705, %v1707
        %1722 = vst [vmem:[#allocation3 + $0x2d8] sm:$0xff] %v1708
        %1723 = vst [vmem:[#allocation3 + $0x2e0] sm:$0xff] %v1709
        %1724 = vst [vmem:[#allocation3 + $0x2e8] sm:$0xff] %v1710
        %1725 = vst [vmem:[#allocation3 + $0x2f0] sm:$0xff] %v1711
        %1726 = vst [vmem:[#allocation3 + $0x2f8] sm:$0xff] %v1712
        %1727 = vst [vmem:[#allocation3 + $0x300] sm:$0xff] %v1713
        %1728 = vst [vmem:[#allocation3 + $0x308] sm:$0xff] %v1714
        %v1729 = vld [vmem:[#allocation2] sm:$0xff]
        %v1730 = vld [vmem:[#allocation2 + $0x8] sm:$0xff]
        %v1731 = vld [vmem:[#allocation2 + $0x10] sm:$0xff]
        %v1732 = vld [vmem:[#allocation2 + $0x18] sm:$0xff]
        %v1733 = vld [vmem:[#allocation2 + $0x20] sm:$0xff]
        %v1734 = vld [vmem:[#allocation2 + $0x28] sm:$0xff]
        %v1735 = vld [vmem:[#allocation2 + $0x30] sm:$0xff]
        %v1736 = vld [vmem:[#allocation2 + $0x38] sm:$0xff]
        %1745 = vrot.lane.b32.xlu0 %v1729, 16
        %v1746 = vpop.permute.xlu0 %1745
        %1747 = vrot.lane.b32.xlu0 %v1730, 16
        %v1748 = vpop.permute.xlu0 %1747
        %1749 = vrot.lane.b32.xlu0 %v1731, 16
        %v1750 = vpop.permute.xlu0 %1749
        %1751 = vrot.lane.b32.xlu0 %v1732, 16
        %v1752 = vpop.permute.xlu0 %1751
        %1753 = vrot.lane.b32.xlu0 %v1733, 16
        %v1754 = vpop.permute.xlu0 %1753
        %1755 = vrot.lane.b32.xlu0 %v1734, 16
        %v1756 = vpop.permute.xlu0 %1755
        %1757 = vrot.lane.b32.xlu0 %v1735, 16
        %v1758 = vpop.permute.xlu0 %1757
        %1759 = vrot.lane.b32.xlu0 %v1736, 16
        %v1760 = vpop.permute.xlu0 %1759
        %vm1761 = vcmask 130048
        %v1762 = vsel %vm1761, %v1746, %v1748
        %v1763 = vsel %vm1761, %v1748, %v1750
        %v1764 = vsel %vm1761, %v1750, %v1752
        %v1765 = vsel %vm1761, %v1752, %v1754
        %v1766 = vsel %vm1761, %v1754, %v1756
        %v1767 = vsel %vm1761, %v1756, %v1758
        %v1768 = vsel %vm1761, %v1758, %v1760
        %1776 = vst [vmem:[#allocation3 + $0x310] sm:$0xff] %v1762
        %1777 = vst [vmem:[#allocation3 + $0x318] sm:$0xff] %v1763
        %1778 = vst [vmem:[#allocation3 + $0x320] sm:$0xff] %v1764
        %1779 = vst [vmem:[#allocation3 + $0x328] sm:$0xff] %v1765
        %1780 = vst [vmem:[#allocation3 + $0x330] sm:$0xff] %v1766
        %1781 = vst [vmem:[#allocation3 + $0x338] sm:$0xff] %v1767
        %1782 = vst [vmem:[#allocation3 + $0x340] sm:$0xff] %v1768
        %v1783 = vld [vmem:[#allocation2] sm:$0xff]
        %v1784 = vld [vmem:[#allocation2 + $0x8] sm:$0xff]
        %v1785 = vld [vmem:[#allocation2 + $0x10] sm:$0xff]
        %v1786 = vld [vmem:[#allocation2 + $0x18] sm:$0xff]
        %v1787 = vld [vmem:[#allocation2 + $0x20] sm:$0xff]
        %v1788 = vld [vmem:[#allocation2 + $0x28] sm:$0xff]
        %v1789 = vld [vmem:[#allocation2 + $0x30] sm:$0xff]
        %v1790 = vld [vmem:[#allocation2 + $0x38] sm:$0xff]
        %1799 = vrot.lane.b32.xlu0 %v1783, 8
        %v1800 = vpop.permute.xlu0 %1799
        %1801 = vrot.lane.b32.xlu0 %v1784, 8
        %v1802 = vpop.permute.xlu0 %1801
        %1803 = vrot.lane.b32.xlu0 %v1785, 8
        %v1804 = vpop.permute.xlu0 %1803
        %1805 = vrot.lane.b32.xlu0 %v1786, 8
        %v1806 = vpop.permute.xlu0 %1805
        %1807 = vrot.lane.b32.xlu0 %v1787, 8
        %v1808 = vpop.permute.xlu0 %1807
        %1809 = vrot.lane.b32.xlu0 %v1788, 8
        %v1810 = vpop.permute.xlu0 %1809
        %1811 = vrot.lane.b32.xlu0 %v1789, 8
        %v1812 = vpop.permute.xlu0 %1811
        %1813 = vrot.lane.b32.xlu0 %v1790, 8
        %v1814 = vpop.permute.xlu0 %1813
        %vm1815 = vcmask 64512
        %v1816 = vsel %vm1815, %v1800, %v1802
        %v1817 = vsel %vm1815, %v1802, %v1804
        %v1818 = vsel %vm1815, %v1804, %v1806
        %v1819 = vsel %vm1815, %v1806, %v1808
        %v1820 = vsel %vm1815, %v1808, %v1810
        %v1821 = vsel %vm1815, %v1810, %v1812
        %v1822 = vsel %vm1815, %v1812, %v1814
        %1830 = vst [vmem:[#allocation3 + $0x348] sm:$0xff] %v1816
        %1831 = vst [vmem:[#allocation3 + $0x350] sm:$0xff] %v1817
        %1832 = vst [vmem:[#allocation3 + $0x358] sm:$0xff] %v1818
        %1833 = vst [vmem:[#allocation3 + $0x360] sm:$0xff] %v1819
        %1834 = vst [vmem:[#allocation3 + $0x368] sm:$0xff] %v1820
        %1835 = vst [vmem:[#allocation3 + $0x370] sm:$0xff] %v1821
        %1836 = vst [vmem:[#allocation3 + $0x378] sm:$0xff] %v1822
        %v1837 = vld [vmem:[#allocation2] sm:$0xff]
        %v1838 = vld [vmem:[#allocation2 + $0x8] sm:$0xff]
        %v1839 = vld [vmem:[#allocation2 + $0x10] sm:$0xff]
        %v1840 = vld [vmem:[#allocation2 + $0x18] sm:$0xff]
        %v1841 = vld [vmem:[#allocation2 + $0x20] sm:$0xff]
        %v1842 = vld [vmem:[#allocation2 + $0x28] sm:$0xff]
        %v1843 = vld [vmem:[#allocation2 + $0x30] sm:$0xff]
        %v1844 = vld [vmem:[#allocation2 + $0x38] sm:$0xff]
        %1853 = vrot.lane.b32.xlu0 %v1837, 7
        %v1854 = vpop.permute.xlu0 %1853
        %1855 = vrot.lane.b32.xlu0 %v1838, 7
        %v1856 = vpop.permute.xlu0 %1855
        %1857 = vrot.lane.b32.xlu0 %v1839, 7
        %v1858 = vpop.permute.xlu0 %1857
        %1859 = vrot.lane.b32.xlu0 %v1840, 7
        %v1860 = vpop.permute.xlu0 %1859
        %1861 = vrot.lane.b32.xlu0 %v1841, 7
        %v1862 = vpop.permute.xlu0 %1861
        %1863 = vrot.lane.b32.xlu0 %v1842, 7
        %v1864 = vpop.permute.xlu0 %1863
        %1865 = vrot.lane.b32.xlu0 %v1843, 7
        %v1866 = vpop.permute.xlu0 %1865
        %1867 = vrot.lane.b32.xlu0 %v1844, 7
        %v1868 = vpop.permute.xlu0 %1867
        %vm1869 = vcmask 56320
        %v1870 = vsel %vm1869, %v1854, %v1856
        %v1871 = vsel %vm1869, %v1856, %v1858
        %v1872 = vsel %vm1869, %v1858, %v1860
        %v1873 = vsel %vm1869, %v1860, %v1862
        %v1874 = vsel %vm1869, %v1862, %v1864
        %v1875 = vsel %vm1869, %v1864, %v1866
        %v1876 = vsel %vm1869, %v1866, %v1868
        %1884 = vst [vmem:[#allocation3 + $0x380] sm:$0xff] %v1870
        %1885 = vst [vmem:[#allocation3 + $0x388] sm:$0xff] %v1871
        %1886 = vst [vmem:[#allocation3 + $0x390] sm:$0xff] %v1872
        %1887 = vst [vmem:[#allocation3 + $0x398] sm:$0xff] %v1873
        %1888 = vst [vmem:[#allocation3 + $0x3a0] sm:$0xff] %v1874
        %1889 = vst [vmem:[#allocation3 + $0x3a8] sm:$0xff] %v1875
        %1890 = vst [vmem:[#allocation3 + $0x3b0] sm:$0xff] %v1876
        %v1891 = vld [vmem:[#allocation2] sm:$0xff]
        %v1892 = vld [vmem:[#allocation2 + $0x8] sm:$0xff]
        %v1893 = vld [vmem:[#allocation2 + $0x10] sm:$0xff]
        %v1894 = vld [vmem:[#allocation2 + $0x18] sm:$0xff]
        %v1895 = vld [vmem:[#allocation2 + $0x20] sm:$0xff]
        %v1896 = vld [vmem:[#allocation2 + $0x28] sm:$0xff]
        %v1897 = vld [vmem:[#allocation2 + $0x30] sm:$0xff]
        %v1898 = vld [vmem:[#allocation2 + $0x38] sm:$0xff]
        %1907 = vrot.lane.b32.xlu0 %v1891, 6
        %v1908 = vpop.permute.xlu0 %1907
        %1909 = vrot.lane.b32.xlu0 %v1892, 6
        %v1910 = vpop.permute.xlu0 %1909
        %1911 = vrot.lane.b32.xlu0 %v1893, 6
        %v1912 = vpop.permute.xlu0 %1911
        %1913 = vrot.lane.b32.xlu0 %v1894, 6
        %v1914 = vpop.permute.xlu0 %1913
        %1915 = vrot.lane.b32.xlu0 %v1895, 6
        %v1916 = vpop.permute.xlu0 %1915
        %1917 = vrot.lane.b32.xlu0 %v1896, 6
        %v1918 = vpop.permute.xlu0 %1917
        %1919 = vrot.lane.b32.xlu0 %v1897, 6
        %v1920 = vpop.permute.xlu0 %1919
        %1921 = vrot.lane.b32.xlu0 %v1898, 6
        %v1922 = vpop.permute.xlu0 %1921
        %vm1923 = vcmask 48128
        %v1924 = vsel %vm1923, %v1908, %v1910
        %v1925 = vsel %vm1923, %v1910, %v1912
        %v1926 = vsel %vm1923, %v1912, %v1914
        %v1927 = vsel %vm1923, %v1914, %v1916
        %v1928 = vsel %vm1923, %v1916, %v1918
        %v1929 = vsel %vm1923, %v1918, %v1920
        %v1930 = vsel %vm1923, %v1920, %v1922
        %1938 = vst [vmem:[#allocation3 + $0x3b8] sm:$0xff] %v1924
        %1939 = vst [vmem:[#allocation3 + $0x3c0] sm:$0xff] %v1925
        %1940 = vst [vmem:[#allocation3 + $0x3c8] sm:$0xff] %v1926
        %1941 = vst [vmem:[#allocation3 + $0x3d0] sm:$0xff] %v1927
        %1942 = vst [vmem:[#allocation3 + $0x3d8] sm:$0xff] %v1928
        %1943 = vst [vmem:[#allocation3 + $0x3e0] sm:$0xff] %v1929
        %1944 = vst [vmem:[#allocation3 + $0x3e8] sm:$0xff] %v1930
        %v1945 = vld [vmem:[#allocation2 + $0x8] sm:$0xff]
        %v1946 = vld [vmem:[#allocation2 + $0x10] sm:$0xff]
        %v1947 = vld [vmem:[#allocation2 + $0x18] sm:$0xff]
        %v1948 = vld [vmem:[#allocation2 + $0x20] sm:$0xff]
        %v1949 = vld [vmem:[#allocation2 + $0x28] sm:$0xff]
        %v1950 = vld [vmem:[#allocation2 + $0x30] sm:$0xff]
        %v1951 = vld [vmem:[#allocation2 + $0x38] sm:$0xff]
        %v1952 = vld [vmem:[#allocation2 + $0x40] sm:$0xff]
        %1961 = vrot.lane.b32.xlu0 %v1945, 56
        %v1962 = vpop.permute.xlu0 %1961
        %1963 = vrot.lane.b32.xlu0 %v1946, 56
        %v1964 = vpop.permute.xlu0 %1963
        %1965 = vrot.lane.b32.xlu0 %v1947, 56
        %v1966 = vpop.permute.xlu0 %1965
        %1967 = vrot.lane.b32.xlu0 %v1948, 56
        %v1968 = vpop.permute.xlu0 %1967
        %1969 = vrot.lane.b32.xlu0 %v1949, 56
        %v1970 = vpop.permute.xlu0 %1969
        %1971 = vrot.lane.b32.xlu0 %v1950, 56
        %v1972 = vpop.permute.xlu0 %1971
        %1973 = vrot.lane.b32.xlu0 %v1951, 56
        %v1974 = vpop.permute.xlu0 %1973
        %1975 = vrot.lane.b32.xlu0 %v1952, 56
        %v1976 = vpop.permute.xlu0 %1975
        %vm1977 = vcmask 457728
        %v1978 = vsel %vm1977, %v1962, %v1964
        %v1979 = vsel %vm1977, %v1964, %v1966
        %v1980 = vsel %vm1977, %v1966, %v1968
        %v1981 = vsel %vm1977, %v1968, %v1970
        %v1982 = vsel %vm1977, %v1970, %v1972
        %v1983 = vsel %vm1977, %v1972, %v1974
        %v1984 = vsel %vm1977, %v1974, %v1976
        %1992 = vst [vmem:[#allocation3 + $0x3f0] sm:$0xff] %v1978
        %1993 = vst [vmem:[#allocation3 + $0x3f8] sm:$0xff] %v1979
        %1994 = vst [vmem:[#allocation3 + $0x400] sm:$0xff] %v1980
        %1995 = vst [vmem:[#allocation3 + $0x408] sm:$0xff] %v1981
        %1996 = vst [vmem:[#allocation3 + $0x410] sm:$0xff] %v1982
        %1997 = vst [vmem:[#allocation3 + $0x418] sm:$0xff] %v1983
        %1998 = vst [vmem:[#allocation3 + $0x420] sm:$0xff] %v1984
        %v1999 = vld [vmem:[#allocation2 + $0x8] sm:$0xff]
        %v2000 = vld [vmem:[#allocation2 + $0x10] sm:$0xff]
        %v2001 = vld [vmem:[#allocation2 + $0x18] sm:$0xff]
        %v2002 = vld [vmem:[#allocation2 + $0x20] sm:$0xff]
        %v2003 = vld [vmem:[#allocation2 + $0x28] sm:$0xff]
        %v2004 = vld [vmem:[#allocation2 + $0x30] sm:$0xff]
        %v2005 = vld [vmem:[#allocation2 + $0x38] sm:$0xff]
        %v2006 = vld [vmem:[#allocation2 + $0x40] sm:$0xff]
        %2015 = vrot.lane.b32.xlu0 %v1999, 55
        %v2016 = vpop.permute.xlu0 %2015
        %2017 = vrot.lane.b32.xlu0 %v2000, 55
        %v2018 = vpop.permute.xlu0 %2017
        %2019 = vrot.lane.b32.xlu0 %v2001, 55
        %v2020 = vpop.permute.xlu0 %2019
        %2021 = vrot.lane.b32.xlu0 %v2002, 55
        %v2022 = vpop.permute.xlu0 %2021
        %2023 = vrot.lane.b32.xlu0 %v2003, 55
        %v2024 = vpop.permute.xlu0 %2023
        %2025 = vrot.lane.b32.xlu0 %v2004, 55
        %v2026 = vpop.permute.xlu0 %2025
        %2027 = vrot.lane.b32.xlu0 %v2005, 55
        %v2028 = vpop.permute.xlu0 %2027
        %2029 = vrot.lane.b32.xlu0 %v2006, 55
        %v2030 = vpop.permute.xlu0 %2029
        %vm2031 = vcmask 449536
        %v2032 = vsel %vm2031, %v2016, %v2018
        %v2033 = vsel %vm2031, %v2018, %v2020
        %v2034 = vsel %vm2031, %v2020, %v2022
        %v2035 = vsel %vm2031, %v2022, %v2024
        %v2036 = vsel %vm2031, %v2024, %v2026
        %v2037 = vsel %vm2031, %v2026, %v2028
        %v2038 = vsel %vm2031, %v2028, %v2030
        %2046 = vst [vmem:[#allocation3 + $0x428] sm:$0xff] %v2032
        %2047 = vst [vmem:[#allocation3 + $0x430] sm:$0xff] %v2033
        %2048 = vst [vmem:[#allocation3 + $0x438] sm:$0xff] %v2034
        %2049 = vst [vmem:[#allocation3 + $0x440] sm:$0xff] %v2035
        %2050 = vst [vmem:[#allocation3 + $0x448] sm:$0xff] %v2036
        %2051 = vst [vmem:[#allocation3 + $0x450] sm:$0xff] %v2037
        %2052 = vst [vmem:[#allocation3 + $0x458] sm:$0xff] %v2038
        %v2053 = vld [vmem:[#allocation2 + $0x8] sm:$0xff]
        %v2054 = vld [vmem:[#allocation2 + $0x10] sm:$0xff]
        %v2055 = vld [vmem:[#allocation2 + $0x18] sm:$0xff]
        %v2056 = vld [vmem:[#allocation2 + $0x20] sm:$0xff]
        %v2057 = vld [vmem:[#allocation2 + $0x28] sm:$0xff]
        %v2058 = vld [vmem:[#allocation2 + $0x30] sm:$0xff]
        %v2059 = vld [vmem:[#allocation2 + $0x38] sm:$0xff]
        %v2060 = vld [vmem:[#allocation2 + $0x40] sm:$0xff]
        %2069 = vrot.lane.b32.xlu0 %v2053, 54
        %v2070 = vpop.permute.xlu0 %2069
        %2071 = vrot.lane.b32.xlu0 %v2054, 54
        %v2072 = vpop.permute.xlu0 %2071
        %2073 = vrot.lane.b32.xlu0 %v2055, 54
        %v2074 = vpop.permute.xlu0 %2073
        %2075 = vrot.lane.b32.xlu0 %v2056, 54
        %v2076 = vpop.permute.xlu0 %2075
        %2077 = vrot.lane.b32.xlu0 %v2057, 54
        %v2078 = vpop.permute.xlu0 %2077
        %2079 = vrot.lane.b32.xlu0 %v2058, 54
        %v2080 = vpop.permute.xlu0 %2079
        %2081 = vrot.lane.b32.xlu0 %v2059, 54
        %v2082 = vpop.permute.xlu0 %2081
        %2083 = vrot.lane.b32.xlu0 %v2060, 54
        %v2084 = vpop.permute.xlu0 %2083
        %vm2085 = vcmask 441344
        %v2086 = vsel %vm2085, %v2070, %v2072
        %v2087 = vsel %vm2085, %v2072, %v2074
        %v2088 = vsel %vm2085, %v2074, %v2076
        %v2089 = vsel %vm2085, %v2076, %v2078
        %v2090 = vsel %vm2085, %v2078, %v2080
        %v2091 = vsel %vm2085, %v2080, %v2082
        %v2092 = vsel %vm2085, %v2082, %v2084
        %2100 = vst [vmem:[#allocation3 + $0x460] sm:$0xff] %v2086
        %2101 = vst [vmem:[#allocation3 + $0x468] sm:$0xff] %v2087
        %2102 = vst [vmem:[#allocation3 + $0x470] sm:$0xff] %v2088
        %2103 = vst [vmem:[#allocation3 + $0x478] sm:$0xff] %v2089
        %2104 = vst [vmem:[#allocation3 + $0x480] sm:$0xff] %v2090
        %2105 = vst [vmem:[#allocation3 + $0x488] sm:$0xff] %v2091
        %2106 = vst [vmem:[#allocation3 + $0x490] sm:$0xff] %v2092
        %v2107 = vld [vmem:[#allocation2 + $0x8] sm:$0xff]
        %v2108 = vld [vmem:[#allocation2 + $0x10] sm:$0xff]
        %v2109 = vld [vmem:[#allocation2 + $0x18] sm:$0xff]
        %v2110 = vld [vmem:[#allocation2 + $0x20] sm:$0xff]
        %v2111 = vld [vmem:[#allocation2 + $0x28] sm:$0xff]
        %v2112 = vld [vmem:[#allocation2 + $0x30] sm:$0xff]
        %v2113 = vld [vmem:[#allocation2 + $0x38] sm:$0xff]
        %v2114 = vld [vmem:[#allocation2 + $0x40] sm:$0xff]
        %2123 = vrot.lane.b32.xlu0 %v2107, 46
        %v2124 = vpop.permute.xlu0 %2123
        %2125 = vrot.lane.b32.xlu0 %v2108, 46
        %v2126 = vpop.permute.xlu0 %2125
        %2127 = vrot.lane.b32.xlu0 %v2109, 46
        %v2128 = vpop.permute.xlu0 %2127
        %2129 = vrot.lane.b32.xlu0 %v2110, 46
        %v2130 = vpop.permute.xlu0 %2129
        %2131 = vrot.lane.b32.xlu0 %v2111, 46
        %v2132 = vpop.permute.xlu0 %2131
        %2133 = vrot.lane.b32.xlu0 %v2112, 46
        %v2134 = vpop.permute.xlu0 %2133
        %2135 = vrot.lane.b32.xlu0 %v2113, 46
        %v2136 = vpop.permute.xlu0 %2135
        %2137 = vrot.lane.b32.xlu0 %v2114, 46
        %v2138 = vpop.permute.xlu0 %2137
        %vm2139 = vcmask 375808
        %v2140 = vsel %vm2139, %v2124, %v2126
        %v2141 = vsel %vm2139, %v2126, %v2128
        %v2142 = vsel %vm2139, %v2128, %v2130
        %v2143 = vsel %vm2139, %v2130, %v2132
        %v2144 = vsel %vm2139, %v2132, %v2134
        %v2145 = vsel %vm2139, %v2134, %v2136
        %v2146 = vsel %vm2139, %v2136, %v2138
        %2154 = vst [vmem:[#allocation3 + $0x498] sm:$0xff] %v2140
        %2155 = vst [vmem:[#allocation3 + $0x4a0] sm:$0xff] %v2141
        %2156 = vst [vmem:[#allocation3 + $0x4a8] sm:$0xff] %v2142
        %2157 = vst [vmem:[#allocation3 + $0x4b0] sm:$0xff] %v2143
        %2158 = vst [vmem:[#allocation3 + $0x4b8] sm:$0xff] %v2144
        %2159 = vst [vmem:[#allocation3 + $0x4c0] sm:$0xff] %v2145
        %2160 = vst [vmem:[#allocation3 + $0x4c8] sm:$0xff] %v2146
        %v2161 = vld [vmem:[#allocation2 + $0x8] sm:$0xff]
        %v2162 = vld [vmem:[#allocation2 + $0x10] sm:$0xff]
        %v2163 = vld [vmem:[#allocation2 + $0x18] sm:$0xff]
        %v2164 = vld [vmem:[#allocation2 + $0x20] sm:$0xff]
        %v2165 = vld [vmem:[#allocation2 + $0x28] sm:$0xff]
        %v2166 = vld [vmem:[#allocation2 + $0x30] sm:$0xff]
        %v2167 = vld [vmem:[#allocation2 + $0x38] sm:$0xff]
        %v2168 = vld [vmem:[#allocation2 + $0x40] sm:$0xff]
        %2177 = vrot.lane.b32.xlu0 %v2161, 45
        %v2178 = vpop.permute.xlu0 %2177
        %2179 = vrot.lane.b32.xlu0 %v2162, 45
        %v2180 = vpop.permute.xlu0 %2179
        %2181 = vrot.lane.b32.xlu0 %v2163, 45
        %v2182 = vpop.permute.xlu0 %2181
        %2183 = vrot.lane.b32.xlu0 %v2164, 45
        %v2184 = vpop.permute.xlu0 %2183
        %2185 = vrot.lane.b32.xlu0 %v2165, 45
        %v2186 = vpop.permute.xlu0 %2185
        %2187 = vrot.lane.b32.xlu0 %v2166, 45
        %v2188 = vpop.permute.xlu0 %2187
        %2189 = vrot.lane.b32.xlu0 %v2167, 45
        %v2190 = vpop.permute.xlu0 %2189
        %2191 = vrot.lane.b32.xlu0 %v2168, 45
        %v2192 = vpop.permute.xlu0 %2191
        %vm2193 = vcmask 367616
        %v2194 = vsel %vm2193, %v2178, %v2180
        %v2195 = vsel %vm2193, %v2180, %v2182
        %v2196 = vsel %vm2193, %v2182, %v2184
        %v2197 = vsel %vm2193, %v2184, %v2186
        %v2198 = vsel %vm2193, %v2186, %v2188
        %v2199 = vsel %vm2193, %v2188, %v2190
        %v2200 = vsel %vm2193, %v2190, %v2192
        %2208 = vst [vmem:[#allocation3 + $0x4d0] sm:$0xff] %v2194
        %2209 = vst [vmem:[#allocation3 + $0x4d8] sm:$0xff] %v2195
        %2210 = vst [vmem:[#allocation3 + $0x4e0] sm:$0xff] %v2196
        %2211 = vst [vmem:[#allocation3 + $0x4e8] sm:$0xff] %v2197
        %2212 = vst [vmem:[#allocation3 + $0x4f0] sm:$0xff] %v2198
        %2213 = vst [vmem:[#allocation3 + $0x4f8] sm:$0xff] %v2199
        %2214 = vst [vmem:[#allocation3 + $0x500] sm:$0xff] %v2200
        %v2215 = vld [vmem:[#allocation2 + $0x8] sm:$0xff]
        %v2216 = vld [vmem:[#allocation2 + $0x10] sm:$0xff]
        %v2217 = vld [vmem:[#allocation2 + $0x18] sm:$0xff]
        %v2218 = vld [vmem:[#allocation2 + $0x20] sm:$0xff]
        %v2219 = vld [vmem:[#allocation2 + $0x28] sm:$0xff]
        %v2220 = vld [vmem:[#allocation2 + $0x30] sm:$0xff]
        %v2221 = vld [vmem:[#allocation2 + $0x38] sm:$0xff]
        %v2222 = vld [vmem:[#allocation2 + $0x40] sm:$0xff]
        %2231 = vrot.lane.b32.xlu0 %v2215, 44
        %v2232 = vpop.permute.xlu0 %2231
        %2233 = vrot.lane.b32.xlu0 %v2216, 44
        %v2234 = vpop.permute.xlu0 %2233
        %2235 = vrot.lane.b32.xlu0 %v2217, 44
        %v2236 = vpop.permute.xlu0 %2235
        %2237 = vrot.lane.b32.xlu0 %v2218, 44
        %v2238 = vpop.permute.xlu0 %2237
        %2239 = vrot.lane.b32.xlu0 %v2219, 44
        %v2240 = vpop.permute.xlu0 %2239
        %2241 = vrot.lane.b32.xlu0 %v2220, 44
        %v2242 = vpop.permute.xlu0 %2241
        %2243 = vrot.lane.b32.xlu0 %v2221, 44
        %v2244 = vpop.permute.xlu0 %2243
        %2245 = vrot.lane.b32.xlu0 %v2222, 44
        %v2246 = vpop.permute.xlu0 %2245
        %vm2247 = vcmask 359424
        %v2248 = vsel %vm2247, %v2232, %v2234
        %v2249 = vsel %vm2247, %v2234, %v2236
        %v2250 = vsel %vm2247, %v2236, %v2238
        %v2251 = vsel %vm2247, %v2238, %v2240
        %v2252 = vsel %vm2247, %v2240, %v2242
        %v2253 = vsel %vm2247, %v2242, %v2244
        %v2254 = vsel %vm2247, %v2244, %v2246
        %2262 = vst [vmem:[#allocation3 + $0x508] sm:$0xff] %v2248
        %2263 = vst [vmem:[#allocation3 + $0x510] sm:$0xff] %v2249
        %2264 = vst [vmem:[#allocation3 + $0x518] sm:$0xff] %v2250
        %2265 = vst [vmem:[#allocation3 + $0x520] sm:$0xff] %v2251
        %2266 = vst [vmem:[#allocation3 + $0x528] sm:$0xff] %v2252
        %2267 = vst [vmem:[#allocation3 + $0x530] sm:$0xff] %v2253
        %2268 = vst [vmem:[#allocation3 + $0x538] sm:$0xff] %v2254
        %v2269 = vld [vmem:[#allocation2 + $0x8] sm:$0xff]
        %v2270 = vld [vmem:[#allocation2 + $0x10] sm:$0xff]
        %v2271 = vld [vmem:[#allocation2 + $0x18] sm:$0xff]
        %v2272 = vld [vmem:[#allocation2 + $0x20] sm:$0xff]
        %v2273 = vld [vmem:[#allocation2 + $0x28] sm:$0xff]
        %v2274 = vld [vmem:[#allocation2 + $0x30] sm:$0xff]
        %v2275 = vld [vmem:[#allocation2 + $0x38] sm:$0xff]
        %v2276 = vld [vmem:[#allocation2 + $0x40] sm:$0xff]
        %2285 = vrot.lane.b32.xlu0 %v2269, 36
        %v2286 = vpop.permute.xlu0 %2285
        %2287 = vrot.lane.b32.xlu0 %v2270, 36
        %v2288 = vpop.permute.xlu0 %2287
        %2289 = vrot.lane.b32.xlu0 %v2271, 36
        %v2290 = vpop.permute.xlu0 %2289
        %2291 = vrot.lane.b32.xlu0 %v2272, 36
        %v2292 = vpop.permute.xlu0 %2291
        %2293 = vrot.lane.b32.xlu0 %v2273, 36
        %v2294 = vpop.permute.xlu0 %2293
        %2295 = vrot.lane.b32.xlu0 %v2274, 36
        %v2296 = vpop.permute.xlu0 %2295
        %2297 = vrot.lane.b32.xlu0 %v2275, 36
        %v2298 = vpop.permute.xlu0 %2297
        %2299 = vrot.lane.b32.xlu0 %v2276, 36
        %v2300 = vpop.permute.xlu0 %2299
        %vm2301 = vcmask 293888
        %v2302 = vsel %vm2301, %v2286, %v2288
        %v2303 = vsel %vm2301, %v2288, %v2290
        %v2304 = vsel %vm2301, %v2290, %v2292
        %v2305 = vsel %vm2301, %v2292, %v2294
        %v2306 = vsel %vm2301, %v2294, %v2296
        %v2307 = vsel %vm2301, %v2296, %v2298
        %v2308 = vsel %vm2301, %v2298, %v2300
        %2316 = vst [vmem:[#allocation3 + $0x540] sm:$0xff] %v2302
        %2317 = vst [vmem:[#allocation3 + $0x548] sm:$0xff] %v2303
        %2318 = vst [vmem:[#allocation3 + $0x550] sm:$0xff] %v2304
        %2319 = vst [vmem:[#allocation3 + $0x558] sm:$0xff] %v2305
        %2320 = vst [vmem:[#allocation3 + $0x560] sm:$0xff] %v2306
        %2321 = vst [vmem:[#allocation3 + $0x568] sm:$0xff] %v2307
        %2322 = vst [vmem:[#allocation3 + $0x570] sm:$0xff] %v2308
        %v2323 = vld [vmem:[#allocation2 + $0x8] sm:$0xff]
        %v2324 = vld [vmem:[#allocation2 + $0x10] sm:$0xff]
        %v2325 = vld [vmem:[#allocation2 + $0x18] sm:$0xff]
        %v2326 = vld [vmem:[#allocation2 + $0x20] sm:$0xff]
        %v2327 = vld [vmem:[#allocation2 + $0x28] sm:$0xff]
        %v2328 = vld [vmem:[#allocation2 + $0x30] sm:$0xff]
        %v2329 = vld [vmem:[#allocation2 + $0x38] sm:$0xff]
        %v2330 = vld [vmem:[#allocation2 + $0x40] sm:$0xff]
        %2339 = vrot.lane.b32.xlu0 %v2323, 35
        %v2340 = vpop.permute.xlu0 %2339
        %2341 = vrot.lane.b32.xlu0 %v2324, 35
        %v2342 = vpop.permute.xlu0 %2341
        %2343 = vrot.lane.b32.xlu0 %v2325, 35
        %v2344 = vpop.permute.xlu0 %2343
        %2345 = vrot.lane.b32.xlu0 %v2326, 35
        %v2346 = vpop.permute.xlu0 %2345
        %2347 = vrot.lane.b32.xlu0 %v2327, 35
        %v2348 = vpop.permute.xlu0 %2347
        %2349 = vrot.lane.b32.xlu0 %v2328, 35
        %v2350 = vpop.permute.xlu0 %2349
        %2351 = vrot.lane.b32.xlu0 %v2329, 35
        %v2352 = vpop.permute.xlu0 %2351
        %2353 = vrot.lane.b32.xlu0 %v2330, 35
        %v2354 = vpop.permute.xlu0 %2353
        %vm2355 = vcmask 285696
        %v2356 = vsel %vm2355, %v2340, %v2342
        %v2357 = vsel %vm2355, %v2342, %v2344
        %v2358 = vsel %vm2355, %v2344, %v2346
        %v2359 = vsel %vm2355, %v2346, %v2348
        %v2360 = vsel %vm2355, %v2348, %v2350
        %v2361 = vsel %vm2355, %v2350, %v2352
        %v2362 = vsel %vm2355, %v2352, %v2354
        %2370 = vst [vmem:[#allocation3 + $0x578] sm:$0xff] %v2356
        %2371 = vst [vmem:[#allocation3 + $0x580] sm:$0xff] %v2357
        %2372 = vst [vmem:[#allocation3 + $0x588] sm:$0xff] %v2358
        %2373 = vst [vmem:[#allocation3 + $0x590] sm:$0xff] %v2359
        %2374 = vst [vmem:[#allocation3 + $0x598] sm:$0xff] %v2360
        %2375 = vst [vmem:[#allocation3 + $0x5a0] sm:$0xff] %v2361
        %2376 = vst [vmem:[#allocation3 + $0x5a8] sm:$0xff] %v2362
        %v2377 = vld [vmem:[#allocation2 + $0x8] sm:$0xff]
        %v2378 = vld [vmem:[#allocation2 + $0x10] sm:$0xff]
        %v2379 = vld [vmem:[#allocation2 + $0x18] sm:$0xff]
        %v2380 = vld [vmem:[#allocation2 + $0x20] sm:$0xff]
        %v2381 = vld [vmem:[#allocation2 + $0x28] sm:$0xff]
        %v2382 = vld [vmem:[#allocation2 + $0x30] sm:$0xff]
        %v2383 = vld [vmem:[#allocation2 + $0x38] sm:$0xff]
        %v2384 = vld [vmem:[#allocation2 + $0x40] sm:$0xff]
        %2393 = vrot.lane.b32.xlu0 %v2377, 34
        %v2394 = vpop.permute.xlu0 %2393
        %2395 = vrot.lane.b32.xlu0 %v2378, 34
        %v2396 = vpop.permute.xlu0 %2395
        %2397 = vrot.lane.b32.xlu0 %v2379, 34
        %v2398 = vpop.permute.xlu0 %2397
        %2399 = vrot.lane.b32.xlu0 %v2380, 34
        %v2400 = vpop.permute.xlu0 %2399
        %2401 = vrot.lane.b32.xlu0 %v2381, 34
        %v2402 = vpop.permute.xlu0 %2401
        %2403 = vrot.lane.b32.xlu0 %v2382, 34
        %v2404 = vpop.permute.xlu0 %2403
        %2405 = vrot.lane.b32.xlu0 %v2383, 34
        %v2406 = vpop.permute.xlu0 %2405
        %2407 = vrot.lane.b32.xlu0 %v2384, 34
        %v2408 = vpop.permute.xlu0 %2407
        %vm2409 = vcmask 277504
        %v2410 = vsel %vm2409, %v2394, %v2396
        %v2411 = vsel %vm2409, %v2396, %v2398
        %v2412 = vsel %vm2409, %v2398, %v2400
        %v2413 = vsel %vm2409, %v2400, %v2402
        %v2414 = vsel %vm2409, %v2402, %v2404
        %v2415 = vsel %vm2409, %v2404, %v2406
        %v2416 = vsel %vm2409, %v2406, %v2408
        %2424 = vst [vmem:[#allocation3 + $0x5b0] sm:$0xff] %v2410
        %2425 = vst [vmem:[#allocation3 + $0x5b8] sm:$0xff] %v2411
        %2426 = vst [vmem:[#allocation3 + $0x5c0] sm:$0xff] %v2412
        %2427 = vst [vmem:[#allocation3 + $0x5c8] sm:$0xff] %v2413
        %2428 = vst [vmem:[#allocation3 + $0x5d0] sm:$0xff] %v2414
        %2429 = vst [vmem:[#allocation3 + $0x5d8] sm:$0xff] %v2415
        %2430 = vst [vmem:[#allocation3 + $0x5e0] sm:$0xff] %v2416
        %v2431 = vld [vmem:[%s3] sm:$0xff]
        %v2432 = vld [vmem:[%s3 + $0x8] sm:$0xff]
        %v2433 = vld [vmem:[#allocation3] sm:$0xff]
        %v2434 = vld [vmem:[#allocation3 + $0x8] sm:$0xff]
        %v2435 = vld [vmem:[#allocation3 + $0x10] sm:$0xff]
        %v2436 = vld [vmem:[#allocation3 + $0x18] sm:$0xff]
        %v2437 = vld [vmem:[#allocation3 + $0x20] sm:$0xff]
        %v2438 = vld [vmem:[#allocation3 + $0x28] sm:$0xff]
        %v2439 = vld [vmem:[#allocation3 + $0x30] sm:$0xff]
        %v2440 = vld [vmem:[#allocation3 + $0x38] sm:$0xff]
        %v2441 = vld [vmem:[#allocation3 + $0x40] sm:$0xff]
        %v2442 = vld [vmem:[#allocation3 + $0x48] sm:$0xff]
        %v2443 = vld [vmem:[#allocation3 + $0x50] sm:$0xff]
        %v2444 = vld [vmem:[#allocation3 + $0x58] sm:$0xff]
        %v2445 = vld [vmem:[#allocation3 + $0x60] sm:$0xff]
        %v2446 = vld [vmem:[#allocation3 + $0x68] sm:$0xff]
        %v2447 = vld [vmem:[#allocation3 + $0x70] sm:$0xff]
        %v2448 = vld [vmem:[#allocation3 + $0x78] sm:$0xff]
        %v2449 = vld [vmem:[#allocation3 + $0x80] sm:$0xff]
        %v2450 = vld [vmem:[#allocation3 + $0x88] sm:$0xff]
        %v2451 = vld [vmem:[#allocation3 + $0x90] sm:$0xff]
        %v2452 = vld [vmem:[#allocation3 + $0x98] sm:$0xff]
        %v2453 = vld [vmem:[#allocation3 + $0xa0] sm:$0xff]
        %v2454 = vld [vmem:[#allocation3 + $0xa8] sm:$0xff]
        %v2455 = vld [vmem:[#allocation3 + $0xb0] sm:$0xff]
        %v2456 = vld [vmem:[#allocation3 + $0xb8] sm:$0xff]
        %v2457 = vld [vmem:[#allocation3 + $0xc0] sm:$0xff]
        %v2458 = vld [vmem:[#allocation3 + $0xc8] sm:$0xff]
        %v2459 = vld [vmem:[#allocation3 + $0xd0] sm:$0xff]
        %v2460 = vld [vmem:[#allocation3 + $0xd8] sm:$0xff]
        %v2461 = vld [vmem:[#allocation3 + $0xe0] sm:$0xff]
        %v2462 = vld [vmem:[#allocation3 + $0xe8] sm:$0xff]
        %v2463 = vld [vmem:[#allocation3 + $0xf0] sm:$0xff]
        %v2464 = vld [vmem:[#allocation3 + $0xf8] sm:$0xff]
        %v2465 = vld [vmem:[#allocation3 + $0x100] sm:$0xff]
        %v2466 = vld [vmem:[#allocation3 + $0x108] sm:$0xff]
        %v2467 = vld [vmem:[#allocation3 + $0x110] sm:$0xff]
        %v2468 = vld [vmem:[#allocation3 + $0x118] sm:$0xff]
        %v2469 = vld [vmem:[#allocation3 + $0x120] sm:$0xff]
        %v2470 = vld [vmem:[#allocation3 + $0x128] sm:$0xff]
        %v2471 = vld [vmem:[#allocation3 + $0x130] sm:$0xff]
        %v2472 = vld [vmem:[#allocation3 + $0x138] sm:$0xff]
        %v2473 = vld [vmem:[#allocation3 + $0x140] sm:$0xff]
        %v2474 = vld [vmem:[#allocation3 + $0x148] sm:$0xff]
        %v2475 = vld [vmem:[#allocation3 + $0x150] sm:$0xff]
        %v2476 = vld [vmem:[#allocation3 + $0x158] sm:$0xff]
        %v2477 = vld [vmem:[#allocation3 + $0x160] sm:$0xff]
        %v2478 = vld [vmem:[#allocation3 + $0x168] sm:$0xff]
        %v2479 = vld [vmem:[#allocation3 + $0x170] sm:$0xff]
        %v2480 = vld [vmem:[#allocation3 + $0x178] sm:$0xff]
        %v2481 = vld [vmem:[#allocation3 + $0x180] sm:$0xff]
        %v2482 = vld [vmem:[#allocation3 + $0x188] sm:$0xff]
        %v2483 = vld [vmem:[#allocation3 + $0x190] sm:$0xff]
        %v2484 = vld [vmem:[#allocation3 + $0x198] sm:$0xff]
        %v2485 = vld [vmem:[#allocation3 + $0x1a0] sm:$0xff]
        %v2486 = vld [vmem:[#allocation3 + $0x1a8] sm:$0xff]
        %v2487 = vld [vmem:[#allocation3 + $0x1b0] sm:$0xff]
        %v2488 = vld [vmem:[#allocation3 + $0x1b8] sm:$0xff]
        %v2489 = vld [vmem:[#allocation3 + $0x1c0] sm:$0xff]
        %v2490 = vld [vmem:[#allocation3 + $0x1c8] sm:$0xff]
        %v2491 = vld [vmem:[#allocation3 + $0x1d0] sm:$0xff]
        %v2492 = vld [vmem:[#allocation3 + $0x1d8] sm:$0xff]
        %v2493 = vld [vmem:[#allocation3 + $0x1e0] sm:$0xff]
        %v2494 = vld [vmem:[#allocation3 + $0x1e8] sm:$0xff]
        %v2495 = vld [vmem:[#allocation3 + $0x1f0] sm:$0xff]
        %v2496 = vld [vmem:[#allocation3 + $0x1f8] sm:$0xff]
        %v2497 = vld [vmem:[#allocation3 + $0x200] sm:$0xff]
        %v2498 = vld [vmem:[#allocation3 + $0x208] sm:$0xff]
        %v2499 = vld [vmem:[#allocation3 + $0x210] sm:$0xff]
        %v2500 = vld [vmem:[#allocation3 + $0x218] sm:$0xff]
        %v2501 = vld [vmem:[#allocation3 + $0x220] sm:$0xff]
        %v2502 = vld [vmem:[#allocation3 + $0x228] sm:$0xff]
        %v2503 = vld [vmem:[#allocation3 + $0x230] sm:$0xff]
        %v2504 = vld [vmem:[#allocation3 + $0x238] sm:$0xff]
        %v2505 = vld [vmem:[#allocation3 + $0x240] sm:$0xff]
        %v2506 = vld [vmem:[#allocation3 + $0x248] sm:$0xff]
        %v2507 = vld [vmem:[#allocation3 + $0x250] sm:$0xff]
        %v2508 = vld [vmem:[#allocation3 + $0x258] sm:$0xff]
        %v2509 = vld [vmem:[#allocation3 + $0x260] sm:$0xff]
        %v2510 = vld [vmem:[#allocation3 + $0x268] sm:$0xff]
        %v2511 = vld [vmem:[#allocation3 + $0x270] sm:$0xff]
        %v2512 = vld [vmem:[#allocation3 + $0x278] sm:$0xff]
        %v2513 = vld [vmem:[#allocation3 + $0x280] sm:$0xff]
        %v2514 = vld [vmem:[#allocation3 + $0x288] sm:$0xff]
        %v2515 = vld [vmem:[#allocation3 + $0x290] sm:$0xff]
        %v2516 = vld [vmem:[#allocation3 + $0x298] sm:$0xff]
        %v2517 = vld [vmem:[#allocation3 + $0x2a0] sm:$0xff]
        %v2518 = vld [vmem:[#allocation3 + $0x2a8] sm:$0xff]
        %v2519 = vld [vmem:[#allocation3 + $0x2b0] sm:$0xff]
        %v2520 = vld [vmem:[#allocation3 + $0x2b8] sm:$0xff]
        %v2521 = vld [vmem:[#allocation3 + $0x2c0] sm:$0xff]
        %v2522 = vld [vmem:[#allocation3 + $0x2c8] sm:$0xff]
        %v2523 = vld [vmem:[#allocation3 + $0x2d0] sm:$0xff]
        %v2524 = vld [vmem:[#allocation3 + $0x2d8] sm:$0xff]
        %v2525 = vld [vmem:[#allocation3 + $0x2e0] sm:$0xff]
        %v2526 = vld [vmem:[#allocation3 + $0x2e8] sm:$0xff]
        %v2527 = vld [vmem:[#allocation3 + $0x2f0] sm:$0xff]
        %v2528 = vld [vmem:[#allocation3 + $0x2f8] sm:$0xff]
        %v2529 = vld [vmem:[#allocation3 + $0x300] sm:$0xff]
        %v2530 = vld [vmem:[#allocation3 + $0x308] sm:$0xff]
        %v2531 = vld [vmem:[#allocation3 + $0x310] sm:$0xff]
        %v2532 = vld [vmem:[#allocation3 + $0x318] sm:$0xff]
        %v2533 = vld [vmem:[#allocation3 + $0x320] sm:$0xff]
        %v2534 = vld [vmem:[#allocation3 + $0x328] sm:$0xff]
        %v2535 = vld [vmem:[#allocation3 + $0x330] sm:$0xff]
        %v2536 = vld [vmem:[#allocation3 + $0x338] sm:$0xff]
        %v2537 = vld [vmem:[#allocation3 + $0x340] sm:$0xff]
        %v2538 = vld [vmem:[#allocation3 + $0x348] sm:$0xff]
        %v2539 = vld [vmem:[#allocation3 + $0x350] sm:$0xff]
        %v2540 = vld [vmem:[#allocation3 + $0x358] sm:$0xff]
        %v2541 = vld [vmem:[#allocation3 + $0x360] sm:$0xff]
        %v2542 = vld [vmem:[#allocation3 + $0x368] sm:$0xff]
        %v2543 = vld [vmem:[#allocation3 + $0x370] sm:$0xff]
        %v2544 = vld [vmem:[#allocation3 + $0x378] sm:$0xff]
        %v2545 = vld [vmem:[#allocation3 + $0x380] sm:$0xff]
        %v2546 = vld [vmem:[#allocation3 + $0x388] sm:$0xff]
        %v2547 = vld [vmem:[#allocation3 + $0x390] sm:$0xff]
        %v2548 = vld [vmem:[#allocation3 + $0x398] sm:$0xff]
        %v2549 = vld [vmem:[#allocation3 + $0x3a0] sm:$0xff]
        %v2550 = vld [vmem:[#allocation3 + $0x3a8] sm:$0xff]
        %v2551 = vld [vmem:[#allocation3 + $0x3b0] sm:$0xff]
        %v2552 = vld [vmem:[#allocation3 + $0x3b8] sm:$0xff]
        %v2553 = vld [vmem:[#allocation3 + $0x3c0] sm:$0xff]
        %v2554 = vld [vmem:[#allocation3 + $0x3c8] sm:$0xff]
        %v2555 = vld [vmem:[#allocation3 + $0x3d0] sm:$0xff]
        %v2556 = vld [vmem:[#allocation3 + $0x3d8] sm:$0xff]
        %v2557 = vld [vmem:[#allocation3 + $0x3e0] sm:$0xff]
        %v2558 = vld [vmem:[#allocation3 + $0x3e8] sm:$0xff]
        %v2559 = vld [vmem:[#allocation3 + $0x3f0] sm:$0xff]
        %v2560 = vld [vmem:[#allocation3 + $0x3f8] sm:$0xff]
        %v2561 = vld [vmem:[#allocation3 + $0x400] sm:$0xff]
        %v2562 = vld [vmem:[#allocation3 + $0x408] sm:$0xff]
        %v2563 = vld [vmem:[#allocation3 + $0x410] sm:$0xff]
        %v2564 = vld [vmem:[#allocation3 + $0x418] sm:$0xff]
        %v2565 = vld [vmem:[#allocation3 + $0x420] sm:$0xff]
        %v2566 = vld [vmem:[#allocation3 + $0x428] sm:$0xff]
        %v2567 = vld [vmem:[#allocation3 + $0x430] sm:$0xff]
        %v2568 = vld [vmem:[#allocation3 + $0x438] sm:$0xff]
        %v2569 = vld [vmem:[#allocation3 + $0x440] sm:$0xff]
        %v2570 = vld [vmem:[#allocation3 + $0x448] sm:$0xff]
        %v2571 = vld [vmem:[#allocation3 + $0x450] sm:$0xff]
        %v2572 = vld [vmem:[#allocation3 + $0x458] sm:$0xff]
        %v2573 = vld [vmem:[#allocation3 + $0x460] sm:$0xff]
        %v2574 = vld [vmem:[#allocation3 + $0x468] sm:$0xff]
        %v2575 = vld [vmem:[#allocation3 + $0x470] sm:$0xff]
        %v2576 = vld [vmem:[#allocation3 + $0x478] sm:$0xff]
        %v2577 = vld [vmem:[#allocation3 + $0x480] sm:$0xff]
        %v2578 = vld [vmem:[#allocation3 + $0x488] sm:$0xff]
        %v2579 = vld [vmem:[#allocation3 + $0x490] sm:$0xff]
        %v2580 = vld [vmem:[#allocation3 + $0x498] sm:$0xff]
        %v2581 = vld [vmem:[#allocation3 + $0x4a0] sm:$0xff]
        %v2582 = vld [vmem:[#allocation3 + $0x4a8] sm:$0xff]
        %v2583 = vld [vmem:[#allocation3 + $0x4b0] sm:$0xff]
        %v2584 = vld [vmem:[#allocation3 + $0x4b8] sm:$0xff]
        %v2585 = vld [vmem:[#allocation3 + $0x4c0] sm:$0xff]
        %v2586 = vld [vmem:[#allocation3 + $0x4c8] sm:$0xff]
        %v2587 = vld [vmem:[#allocation3 + $0x4d0] sm:$0xff]
        %v2588 = vld [vmem:[#allocation3 + $0x4d8] sm:$0xff]
        %v2589 = vld [vmem:[#allocation3 + $0x4e0] sm:$0xff]
        %v2590 = vld [vmem:[#allocation3 + $0x4e8] sm:$0xff]
        %v2591 = vld [vmem:[#allocation3 + $0x4f0] sm:$0xff]
        %v2592 = vld [vmem:[#allocation3 + $0x4f8] sm:$0xff]
        %v2593 = vld [vmem:[#allocation3 + $0x500] sm:$0xff]
        %v2594 = vld [vmem:[#allocation3 + $0x508] sm:$0xff]
        %v2595 = vld [vmem:[#allocation3 + $0x510] sm:$0xff]
        %v2596 = vld [vmem:[#allocation3 + $0x518] sm:$0xff]
        %v2597 = vld [vmem:[#allocation3 + $0x520] sm:$0xff]
        %v2598 = vld [vmem:[#allocation3 + $0x528] sm:$0xff]
        %v2599 = vld [vmem:[#allocation3 + $0x530] sm:$0xff]
        %v2600 = vld [vmem:[#allocation3 + $0x538] sm:$0xff]
        %v2601 = vld [vmem:[#allocation3 + $0x540] sm:$0xff]
        %v2602 = vld [vmem:[#allocation3 + $0x548] sm:$0xff]
        %v2603 = vld [vmem:[#allocation3 + $0x550] sm:$0xff]
        %v2604 = vld [vmem:[#allocation3 + $0x558] sm:$0xff]
        %v2605 = vld [vmem:[#allocation3 + $0x560] sm:$0xff]
        %v2606 = vld [vmem:[#allocation3 + $0x568] sm:$0xff]
        %v2607 = vld [vmem:[#allocation3 + $0x570] sm:$0xff]
        %v2608 = vld [vmem:[#allocation3 + $0x578] sm:$0xff]
        %v2609 = vld [vmem:[#allocation3 + $0x580] sm:$0xff]
        %v2610 = vld [vmem:[#allocation3 + $0x588] sm:$0xff]
        %v2611 = vld [vmem:[#allocation3 + $0x590] sm:$0xff]
        %v2612 = vld [vmem:[#allocation3 + $0x598] sm:$0xff]
        %v2613 = vld [vmem:[#allocation3 + $0x5a0] sm:$0xff]
        %v2614 = vld [vmem:[#allocation3 + $0x5a8] sm:$0xff]
        %v2615 = vld [vmem:[#allocation3 + $0x5b0] sm:$0xff]
        %v2616 = vld [vmem:[#allocation3 + $0x5b8] sm:$0xff]
        %v2617 = vld [vmem:[#allocation3 + $0x5c0] sm:$0xff]
        %v2618 = vld [vmem:[#allocation3 + $0x5c8] sm:$0xff]
        %v2619 = vld [vmem:[#allocation3 + $0x5d0] sm:$0xff]
        %v2620 = vld [vmem:[#allocation3 + $0x5d8] sm:$0xff]
        %v2621 = vld [vmem:[#allocation3 + $0x5e0] sm:$0xff]
        %v2622 = vld [vmem:[%s6] sm:$0xff]
        %2624 = vset.pattern.permute.xlu0 0
        %2625 = vperm.xlu0 %2624, %v2622
        %v2626 = vpop.permute.xlu0 %2625
        %vm2628 = vcmask 719872
        %v2630 = vsel %vm2628, %v2432, 0
        %2632 = vmatprep.subr.mxu0 %v2434
        %2633 = vmatpush1.msra.mxu0 %v2433
        %2634 = vmatprep.subr.mxu0 %v2441
        %2635 = vmatpush1.msra.mxu0 %v2440
        %2636 = vmatprep.subr.mxu0 %v2448
        %2637 = vmatpush1.msra.mxu0 %v2447
        %2638 = vmatprep.subr.mxu0 %v2455
        %2639 = vmatpush1.msra.mxu0 %v2454
        %2640 = vmatprep.subr.mxu0 %v2462
        %2641 = vmatpush1.msra.mxu0 %v2461
        %2642 = vmatprep.subr.mxu0 %v2469
        %2643 = vmatpush1.msra.mxu0 %v2468
        %2644 = vmatprep.subr.mxu0 %v2476
        %2645 = vmatpush1.msra.mxu0 %v2475
        %2646 = vmatprep.subr.mxu0 %v2483
        %2647 = vmatpush1.msra.mxu0 %v2482
        %2648 = vmatprep.subr.mxu0 %v2490
        %2649 = vmatpush1.msra.mxu0 %v2489
        %2650 = vmatprep.subr.mxu0 %v2497
        %2651 = vmatpush1.msra.mxu0 %v2496
        %2652 = vmatprep.subr.mxu0 %v2504
        %2653 = vmatpush1.msra.mxu0 %v2503
        %2654 = vmatprep.subr.mxu0 %v2511
        %2655 = vmatpush1.msra.mxu0 %v2510
        %2656 = vmatprep.subr.mxu0 %v2518
        %2657 = vmatpush1.msra.mxu0 %v2517
        %2658 = vmatprep.subr.mxu0 %v2525
        %2659 = vmatpush1.msra.mxu0 %v2524
        %2660 = vmatprep.subr.mxu0 %v2532
        %2661 = vmatpush1.msra.mxu0 %v2531
        %2662 = vmatprep.subr.mxu0 %v2539
        %2663 = vmatpush1.msra.mxu0 %v2538
        %2664 = vmatprep.subr.mxu0 %v2546
        %2665 = vmatpush1.msra.mxu0 %v2545
        %2666 = vmatprep.subr.mxu0 %v2553
        %2667 = vmatpush1.msra.mxu0 %v2552
        %2668 = vmatprep.subr.mxu0 %v2560
        %2669 = vmatpush1.msra.mxu0 %v2559
        %2670 = vmatprep.subr.mxu0 %v2567
        %2671 = vmatpush1.msra.mxu0 %v2566
        %2672 = vmatprep.subr.mxu0 %v2574
        %2673 = vmatpush1.msra.mxu0 %v2573
        %2674 = vmatprep.subr.mxu0 %v2581
        %2675 = vmatpush1.msra.mxu0 %v2580
        %2676 = vmatprep.subr.mxu0 %v2588
        %2677 = vmatpush1.msra.mxu0 %v2587
        %2678 = vmatprep.subr.mxu0 %v2595
        %2679 = vmatpush1.msra.mxu0 %v2594
        %2680 = vmatprep.subr.mxu0 %v2602
        %2681 = vmatpush1.msra.mxu0 %v2601
        %2682 = vmatprep.subr.mxu0 %v2609
        %2683 = vmatpush1.msra.mxu0 %v2608
        %2684 = vmatprep.subr.mxu0 %v2616
        %2685 = vmatpush1.msra.mxu0 %v2615
        %2686 = vmatprep.subr.mxu0 0.0
        %2687 = vmatpush1.msra.mxu0 0.0
        %2688 = vmatprep.subr.mxu0 0.0
        %2689 = vmatpush1.msra.mxu0 0.0
        %2690 = vmatprep.subr.mxu0 0.0
        %2691 = vmatpush1.msra.mxu0 0.0
        %2692 = vmatprep.subr.mxu0 0.0
        %2693 = vmatpush1.msra.mxu0 0.0
        %2694 = vmatprep.subr.mxu0 0.0
        %2695 = vmatpush1.msra.mxu0 0.0
        %2696 = vmatprep.mubr.f32.mxu0 %v2630
        %2697 = vmatmul.mubr.f32.gmra.mrb[0].mxu0 %v2431
        %v2698 = vpop.f32.mrb[0].mxu0
        %v2699 = vadd.f32 %v2626, %v2698
        %v2700 = vpop.f32.mrb[0].mxu0
        %v2701 = vadd.f32 %v2626, %v2700
        %2702 = vdwg.mxu0
        %2703 = vmatprep.subr.mxu0 %v2436
        %2704 = vmatpush1.msra.mxu0 %v2435
        %2705 = vmatprep.subr.mxu0 %v2443
        %2706 = vmatpush1.msra.mxu0 %v2442
        %2707 = vmatprep.subr.mxu0 %v2450
        %2708 = vmatpush1.msra.mxu0 %v2449
        %2709 = vmatprep.subr.mxu0 %v2457
        %2710 = vmatpush1.msra.mxu0 %v2456
        %2711 = vmatprep.subr.mxu0 %v2464
        %2712 = vmatpush1.msra.mxu0 %v2463
        %2713 = vmatprep.subr.mxu0 %v2471
        %2714 = vmatpush1.msra.mxu0 %v2470
        %2715 = vmatprep.subr.mxu0 %v2478
        %2716 = vmatpush1.msra.mxu0 %v2477
        %2717 = vmatprep.subr.mxu0 %v2485
        %2718 = vmatpush1.msra.mxu0 %v2484
        %2719 = vmatprep.subr.mxu0 %v2492
        %2720 = vmatpush1.msra.mxu0 %v2491
        %2721 = vmatprep.subr.mxu0 %v2499
        %2722 = vmatpush1.msra.mxu0 %v2498
        %2723 = vmatprep.subr.mxu0 %v2506
        %2724 = vmatpush1.msra.mxu0 %v2505
        %2725 = vmatprep.subr.mxu0 %v2513
        %2726 = vmatpush1.msra.mxu0 %v2512
        %2727 = vmatprep.subr.mxu0 %v2520
        %2728 = vmatpush1.msra.mxu0 %v2519
        %2729 = vmatprep.subr.mxu0 %v2527
        %2730 = vmatpush1.msra.mxu0 %v2526
        %2731 = vmatprep.subr.mxu0 %v2534
        %2732 = vmatpush1.msra.mxu0 %v2533
        %2733 = vmatprep.subr.mxu0 %v2541
        %2734 = vmatpush1.msra.mxu0 %v2540
        %2735 = vmatprep.subr.mxu0 %v2548
        %2736 = vmatpush1.msra.mxu0 %v2547
        %2737 = vmatprep.subr.mxu0 %v2555
        %2738 = vmatpush1.msra.mxu0 %v2554
        %2739 = vmatprep.subr.mxu0 %v2562
        %2740 = vmatpush1.msra.mxu0 %v2561
        %2741 = vmatprep.subr.mxu0 %v2569
        %2742 = vmatpush1.msra.mxu0 %v2568
        %2743 = vmatprep.subr.mxu0 %v2576
        %2744 = vmatpush1.msra.mxu0 %v2575
        %2745 = vmatprep.subr.mxu0 %v2583
        %2746 = vmatpush1.msra.mxu0 %v2582
        %2747 = vmatprep.subr.mxu0 %v2590
        %2748 = vmatpush1.msra.mxu0 %v2589
        %2749 = vmatprep.subr.mxu0 %v2597
        %2750 = vmatpush1.msra.mxu0 %v2596
        %2751 = vmatprep.subr.mxu0 %v2604
        %2752 = vmatpush1.msra.mxu0 %v2603
        %2753 = vmatprep.subr.mxu0 %v2611
        %2754 = vmatpush1.msra.mxu0 %v2610
        %2755 = vmatprep.subr.mxu0 %v2618
        %2756 = vmatpush1.msra.mxu0 %v2617
        %2757 = vmatprep.subr.mxu0 0.0
        %2758 = vmatpush1.msra.mxu0 0.0
        %2759 = vmatprep.subr.mxu0 0.0
        %2760 = vmatpush1.msra.mxu0 0.0
        %2761 = vmatprep.subr.mxu0 0.0
        %2762 = vmatpush1.msra.mxu0 0.0
        %2763 = vmatprep.subr.mxu0 0.0
        %2764 = vmatpush1.msra.mxu0 0.0
        %2765 = vmatprep.subr.mxu0 0.0
        %2766 = vmatpush1.msra.mxu0 0.0
        %2767 = vmatprep.mubr.f32.mxu0 %v2630
        %2768 = vmatmul.mubr.f32.gmra.mrb[0].mxu0 %v2431
        %v2769 = vpop.f32.mrb[0].mxu0
        %v2770 = vadd.f32 %v2626, %v2769
        %v2771 = vpop.f32.mrb[0].mxu0
        %v2772 = vadd.f32 %v2626, %v2771
        %2773 = vdwg.mxu0
        %2774 = vmatprep.subr.mxu0 %v2438
        %2775 = vmatpush1.msra.mxu0 %v2437
        %2776 = vmatprep.subr.mxu0 %v2445
        %2777 = vmatpush1.msra.mxu0 %v2444
        %2778 = vmatprep.subr.mxu0 %v2452
        %2779 = vmatpush1.msra.mxu0 %v2451
        %2780 = vmatprep.subr.mxu0 %v2459
        %2781 = vmatpush1.msra.mxu0 %v2458
        %2782 = vmatprep.subr.mxu0 %v2466
        %2783 = vmatpush1.msra.mxu0 %v2465
        %2784 = vmatprep.subr.mxu0 %v2473
        %2785 = vmatpush1.msra.mxu0 %v2472
        %2786 = vmatprep.subr.mxu0 %v2480
        %2787 = vmatpush1.msra.mxu0 %v2479
        %2788 = vmatprep.subr.mxu0 %v2487
        %2789 = vmatpush1.msra.mxu0 %v2486
        %2790 = vmatprep.subr.mxu0 %v2494
        %2791 = vmatpush1.msra.mxu0 %v2493
        %2792 = vmatprep.subr.mxu0 %v2501
        %2793 = vmatpush1.msra.mxu0 %v2500
        %2794 = vmatprep.subr.mxu0 %v2508
        %2795 = vmatpush1.msra.mxu0 %v2507
        %2796 = vmatprep.subr.mxu0 %v2515
        %2797 = vmatpush1.msra.mxu0 %v2514
        %2798 = vmatprep.subr.mxu0 %v2522
        %2799 = vmatpush1.msra.mxu0 %v2521
        %2800 = vmatprep.subr.mxu0 %v2529
        %2801 = vmatpush1.msra.mxu0 %v2528
        %2802 = vmatprep.subr.mxu0 %v2536
        %2803 = vmatpush1.msra.mxu0 %v2535
        %2804 = vmatprep.subr.mxu0 %v2543
        %2805 = vmatpush1.msra.mxu0 %v2542
        %2806 = vmatprep.subr.mxu0 %v2550
        %2807 = vmatpush1.msra.mxu0 %v2549
        %2808 = vmatprep.subr.mxu0 %v2557
        %2809 = vmatpush1.msra.mxu0 %v2556
        %2810 = vmatprep.subr.mxu0 %v2564
        %2811 = vmatpush1.msra.mxu0 %v2563
        %2812 = vmatprep.subr.mxu0 %v2571
        %2813 = vmatpush1.msra.mxu0 %v2570
        %2814 = vmatprep.subr.mxu0 %v2578
        %2815 = vmatpush1.msra.mxu0 %v2577
        %2816 = vmatprep.subr.mxu0 %v2585
        %2817 = vmatpush1.msra.mxu0 %v2584
        %2818 = vmatprep.subr.mxu0 %v2592
        %2819 = vmatpush1.msra.mxu0 %v2591
        %2820 = vmatprep.subr.mxu0 %v2599
        %2821 = vmatpush1.msra.mxu0 %v2598
        %2822 = vmatprep.subr.mxu0 %v2606
        %2823 = vmatpush1.msra.mxu0 %v2605
        %2824 = vmatprep.subr.mxu0 %v2613
        %2825 = vmatpush1.msra.mxu0 %v2612
        %2826 = vmatprep.subr.mxu0 %v2620
        %2827 = vmatpush1.msra.mxu0 %v2619
        %2828 = vmatprep.subr.mxu0 0.0
        %2829 = vmatpush1.msra.mxu0 0.0
        %2830 = vmatprep.subr.mxu0 0.0
        %2831 = vmatpush1.msra.mxu0 0.0
        %2832 = vmatprep.subr.mxu0 0.0
        %2833 = vmatpush1.msra.mxu0 0.0
        %2834 = vmatprep.subr.mxu0 0.0
        %2835 = vmatpush1.msra.mxu0 0.0
        %2836 = vmatprep.subr.mxu0 0.0
        %2837 = vmatpush1.msra.mxu0 0.0
        %2838 = vmatprep.mubr.f32.mxu0 %v2630
        %2839 = vmatmul.mubr.f32.gmra.mrb[0].mxu0 %v2431
        %v2840 = vpop.f32.mrb[0].mxu0
        %v2841 = vadd.f32 %v2626, %v2840
        %v2842 = vpop.f32.mrb[0].mxu0
        %v2843 = vadd.f32 %v2626, %v2842
        %2844 = vdwg.mxu0
        %2845 = vmatprep.subr.mxu0 0.0
        %2846 = vmatpush1.msra.mxu0 %v2439
        %2847 = vmatprep.subr.mxu0 0.0
        %2848 = vmatpush1.msra.mxu0 %v2446
        %2849 = vmatprep.subr.mxu0 0.0
        %2850 = vmatpush1.msra.mxu0 %v2453
        %2851 = vmatprep.subr.mxu0 0.0
        %2852 = vmatpush1.msra.mxu0 %v2460
        %2853 = vmatprep.subr.mxu0 0.0
        %2854 = vmatpush1.msra.mxu0 %v2467
        %2855 = vmatprep.subr.mxu0 0.0
        %2856 = vmatpush1.msra.mxu0 %v2474
        %2857 = vmatprep.subr.mxu0 0.0
        %2858 = vmatpush1.msra.mxu0 %v2481
        %2859 = vmatprep.subr.mxu0 0.0
        %2860 = vmatpush1.msra.mxu0 %v2488
        %2861 = vmatprep.subr.mxu0 0.0
        %2862 = vmatpush1.msra.mxu0 %v2495
        %2863 = vmatprep.subr.mxu0 0.0
        %2864 = vmatpush1.msra.mxu0 %v2502
        %2865 = vmatprep.subr.mxu0 0.0
        %2866 = vmatpush1.msra.mxu0 %v2509
        %2867 = vmatprep.subr.mxu0 0.0
        %2868 = vmatpush1.msra.mxu0 %v2516
        %2869 = vmatprep.subr.mxu0 0.0
        %2870 = vmatpush1.msra.mxu0 %v2523
        %2871 = vmatprep.subr.mxu0 0.0
        %2872 = vmatpush1.msra.mxu0 %v2530
        %2873 = vmatprep.subr.mxu0 0.0
        %2874 = vmatpush1.msra.mxu0 %v2537
        %2875 = vmatprep.subr.mxu0 0.0
        %2876 = vmatpush1.msra.mxu0 %v2544
        %2877 = vmatprep.subr.mxu0 0.0
        %2878 = vmatpush1.msra.mxu0 %v2551
        %2879 = vmatprep.subr.mxu0 0.0
        %2880 = vmatpush1.msra.mxu0 %v2558
        %2881 = vmatprep.subr.mxu0 0.0
        %2882 = vmatpush1.msra.mxu0 %v2565
        %2883 = vmatprep.subr.mxu0 0.0
        %2884 = vmatpush1.msra.mxu0 %v2572
        %2885 = vmatprep.subr.mxu0 0.0
        %2886 = vmatpush1.msra.mxu0 %v2579
        %2887 = vmatprep.subr.mxu0 0.0
        %2888 = vmatpush1.msra.mxu0 %v2586
        %2889 = vmatprep.subr.mxu0 0.0
        %2890 = vmatpush1.msra.mxu0 %v2593
        %2891 = vmatprep.subr.mxu0 0.0
        %2892 = vmatpush1.msra.mxu0 %v2600
        %2893 = vmatprep.subr.mxu0 0.0
        %2894 = vmatpush1.msra.mxu0 %v2607
        %2895 = vmatprep.subr.mxu0 0.0
        %2896 = vmatpush1.msra.mxu0 %v2614
        %2897 = vmatprep.subr.mxu0 0.0
        %2898 = vmatpush1.msra.mxu0 %v2621
        %2899 = vmatprep.subr.mxu0 0.0
        %2900 = vmatpush1.msra.mxu0 0.0
        %2901 = vmatprep.subr.mxu0 0.0
        %2902 = vmatpush1.msra.mxu0 0.0
        %2903 = vmatprep.subr.mxu0 0.0
        %2904 = vmatpush1.msra.mxu0 0.0
        %2905 = vmatprep.subr.mxu0 0.0
        %2906 = vmatpush1.msra.mxu0 0.0
        %2907 = vmatprep.subr.mxu0 0.0
        %2908 = vmatpush1.msra.mxu0 0.0
        %2909 = vmatprep.mubr.f32.mxu0 %v2630
        %2910 = vmatmul.mubr.f32.gmra.mrb[0].mxu0 %v2431
        %v2911 = vpop.f32.mrb[0].mxu0
        %v2912 = vadd.f32 %v2626, %v2911
        %v2913 = vpop.f32.mrb[0].mxu0
        %2914 = vdwg.mxu0
        %v2915 = vmax.f32 %v2699, 0.0
        %v2916 = vmax.f32 %v2701, 0.0
        %v2917 = vmax.f32 %v2770, 0.0
        %v2918 = vmax.f32 %v2772, 0.0
        %v2919 = vmax.f32 %v2841, 0.0
        %v2920 = vmax.f32 %v2843, 0.0
        %v2921 = vmax.f32 %v2912, 0.0
        %2922 = vst [vmem:[#allocation4 + $0xe0] sm:$0xff] %v2915
        %2923 = vst [vmem:[#allocation4 + $0xe8] sm:$0xff] %v2916
        %2924 = vst [vmem:[#allocation4 + $0xf0] sm:$0xff] %v2917
        %2925 = vst [vmem:[#allocation4 + $0xf8] sm:$0xff] %v2918
        %2926 = vst [vmem:[#allocation4 + $0x100] sm:$0xff] %v2919
        %2927 = vst [vmem:[#allocation4 + $0x108] sm:$0xff] %v2920
        %2928 = vst [vmem:[#allocation4 + $0x110] sm:$0xff] %v2921
        %v2929 = vld [vmem:[%s4] sm:$0xff]
        %v2930 = vld [vmem:[%s4 + $0x8] sm:$0xff]
        %v2931 = vld [vmem:[%s4 + $0x10] sm:$0xff]
        %v2932 = vld [vmem:[%s4 + $0x18] sm:$0xff]
        %v2933 = vld [vmem:[%s4 + $0x20] sm:$0xff]
        %v2934 = vld [vmem:[%s4 + $0x28] sm:$0xff]
        %v2935 = vld [vmem:[%s4 + $0x30] sm:$0xff]
        %v2936 = vld [vmem:[%s4 + $0x38] sm:$0xff]
        %v2937 = vld [vmem:[#allocation4] sm:$0xff]
        %v2938 = vld [vmem:[#allocation4 + $0x8] sm:$0xff]
        %v2939 = vld [vmem:[#allocation4 + $0x10] sm:$0xff]
        %v2940 = vld [vmem:[#allocation4 + $0x18] sm:$0xff]
        %v2941 = vld [vmem:[#allocation4 + $0x20] sm:$0xff]
        %v2942 = vld [vmem:[#allocation4 + $0x28] sm:$0xff]
        %v2943 = vld [vmem:[#allocation4 + $0x30] sm:$0xff]
        %v2944 = vld [vmem:[#allocation4 + $0x38] sm:$0xff]
        %v2945 = vld [vmem:[#allocation4 + $0x40] sm:$0xff]
        %v2946 = vld [vmem:[#allocation4 + $0x48] sm:$0xff]
        %v2947 = vld [vmem:[#allocation4 + $0x50] sm:$0xff]
        %v2948 = vld [vmem:[#allocation4 + $0x58] sm:$0xff]
        %v2949 = vld [vmem:[#allocation4 + $0x60] sm:$0xff]
        %v2950 = vld [vmem:[#allocation4 + $0x68] sm:$0xff]
        %v2951 = vld [vmem:[#allocation4 + $0x70] sm:$0xff]
        %v2952 = vld [vmem:[#allocation4 + $0x78] sm:$0xff]
        %v2953 = vld [vmem:[#allocation4 + $0x80] sm:$0xff]
        %v2954 = vld [vmem:[#allocation4 + $0x88] sm:$0xff]
        %v2955 = vld [vmem:[#allocation4 + $0x90] sm:$0xff]
        %v2956 = vld [vmem:[#allocation4 + $0x98] sm:$0xff]
        %v2957 = vld [vmem:[#allocation4 + $0xa0] sm:$0xff]
        %v2958 = vld [vmem:[#allocation4 + $0xa8] sm:$0xff]
        %v2959 = vld [vmem:[#allocation4 + $0xb0] sm:$0xff]
        %v2960 = vld [vmem:[#allocation4 + $0xb8] sm:$0xff]
        %v2961 = vld [vmem:[#allocation4 + $0xc0] sm:$0xff]
        %v2962 = vld [vmem:[#allocation4 + $0xc8] sm:$0xff]
        %v2963 = vld [vmem:[#allocation4 + $0xd0] sm:$0xff]
        %v2964 = vld [vmem:[#allocation4 + $0xd8] sm:$0xff]
        %v2965 = vld [vmem:[#allocation4 + $0xe0] sm:$0xff]
        %v2966 = vld [vmem:[#allocation4 + $0xe8] sm:$0xff]
        %v2967 = vld [vmem:[#allocation4 + $0xf0] sm:$0xff]
        %v2968 = vld [vmem:[#allocation4 + $0xf8] sm:$0xff]
        %v2969 = vld [vmem:[#allocation4 + $0x100] sm:$0xff]
        %v2970 = vld [vmem:[#allocation4 + $0x108] sm:$0xff]
        %v2971 = vld [vmem:[#allocation4 + $0x110] sm:$0xff]
        %v2972 = vld [vmem:[%s7] sm:$0xff]
        %v2973 = vld [vmem:[%s7 + $0x8] sm:$0xff]
        %v2974 = vld [vmem:[%s7 + $0x10] sm:$0xff]
        %v2975 = vld [vmem:[%s7 + $0x18] sm:$0xff]
        %v2976 = vld [vmem:[%s7 + $0x20] sm:$0xff]
        %v2977 = vld [vmem:[%s7 + $0x28] sm:$0xff]
        %v2978 = vld [vmem:[%s7 + $0x30] sm:$0xff]
        %v2979 = vld [vmem:[%s7 + $0x38] sm:$0xff]
        %2981 = vset.pattern.permute.xlu0 0
        %2982 = vperm.xlu0 %2981, %v2972
        %v2983 = vpop.permute.xlu0 %2982
        %2986 = vset.pattern.permute.xlu0 0
        %2987 = vperm.xlu0 %2986, %v2973
        %v2988 = vpop.permute.xlu0 %2987
        %2991 = vset.pattern.permute.xlu0 0
        %2992 = vperm.xlu0 %2991, %v2974
        %v2993 = vpop.permute.xlu0 %2992
        %2996 = vset.pattern.permute.xlu0 0
        %2997 = vperm.xlu0 %2996, %v2975
        %v2998 = vpop.permute.xlu0 %2997
        %3001 = vset.pattern.permute.xlu0 0
        %3002 = vperm.xlu0 %3001, %v2976
        %v3003 = vpop.permute.xlu0 %3002
        %3006 = vset.pattern.permute.xlu0 0
        %3007 = vperm.xlu0 %3006, %v2977
        %v3008 = vpop.permute.xlu0 %3007
        %3011 = vset.pattern.permute.xlu0 0
        %3012 = vperm.xlu0 %3011, %v2978
        %v3013 = vpop.permute.xlu0 %3012
        %3016 = vset.pattern.permute.xlu0 0
        %3017 = vperm.xlu0 %3016, %v2979
        %v3018 = vpop.permute.xlu0 %3017
        %vm3020 = vcmask 326656
        %v3022 = vsel %vm3020, %v2929, 0
        %v3025 = vsel %vm3020, %v2930, 0
        %v3028 = vsel %vm3020, %v2931, 0
        %v3031 = vsel %vm3020, %v2932, 0
        %v3034 = vsel %vm3020, %v2933, 0
        %v3037 = vsel %vm3020, %v2934, 0
        %v3040 = vsel %vm3020, %v2935, 0
        %v3043 = vsel %vm3020, %v2936, 0
        %3045 = vmatprep.subr.mxu0 %v2938
        %3046 = vmatpush1.msra.mxu0 %v2937
        %3047 = vmatprep.subr.mxu0 %v2945
        %3048 = vmatpush1.msra.mxu0 %v2944
        %3049 = vmatprep.subr.mxu0 %v2952
        %3050 = vmatpush1.msra.mxu0 %v2951
        %3051 = vmatprep.subr.mxu0 %v2959
        %3052 = vmatpush1.msra.mxu0 %v2958
        %3053 = vmatprep.subr.mxu0 %v2966
        %3054 = vmatpush1.msra.mxu0 %v2965
        %3055 = vmatprep.subr.mxu0 0.0
        %3056 = vmatpush1.msra.mxu0 0.0
        %3057 = vmatprep.subr.mxu0 0.0
        %3058 = vmatpush1.msra.mxu0 0.0
        %3059 = vmatprep.subr.mxu0 0.0
        %3060 = vmatpush1.msra.mxu0 0.0
        %3061 = vmatprep.subr.mxu0 0.0
        %3062 = vmatpush1.msra.mxu0 0.0
        %3063 = vmatprep.subr.mxu0 0.0
        %3064 = vmatpush1.msra.mxu0 0.0
        %3065 = vmatprep.subr.mxu0 0.0
        %3066 = vmatpush1.msra.mxu0 0.0
        %3067 = vmatprep.subr.mxu0 0.0
        %3068 = vmatpush1.msra.mxu0 0.0
        %3069 = vmatprep.subr.mxu0 0.0
        %3070 = vmatpush1.msra.mxu0 0.0
        %3071 = vmatprep.subr.mxu0 0.0
        %3072 = vmatpush1.msra.mxu0 0.0
        %3073 = vmatprep.subr.mxu0 0.0
        %3074 = vmatpush1.msra.mxu0 0.0
        %3075 = vmatprep.subr.mxu0 0.0
        %3076 = vmatpush1.msra.mxu0 0.0
        %3077 = vmatprep.subr.mxu0 0.0
        %3078 = vmatpush1.msra.mxu0 0.0
        %3079 = vmatprep.subr.mxu0 0.0
        %3080 = vmatpush1.msra.mxu0 0.0
        %3081 = vmatprep.subr.mxu0 0.0
        %3082 = vmatpush1.msra.mxu0 0.0
        %3083 = vmatprep.subr.mxu0 0.0
        %3084 = vmatpush1.msra.mxu0 0.0
        %3085 = vmatprep.subr.mxu0 0.0
        %3086 = vmatpush1.msra.mxu0 0.0
        %3087 = vmatprep.subr.mxu0 0.0
        %3088 = vmatpush1.msra.mxu0 0.0
        %3089 = vmatprep.subr.mxu0 0.0
        %3090 = vmatpush1.msra.mxu0 0.0
        %3091 = vmatprep.subr.mxu0 0.0
        %3092 = vmatpush1.msra.mxu0 0.0
        %3093 = vmatprep.subr.mxu0 0.0
        %3094 = vmatpush1.msra.mxu0 0.0
        %3095 = vmatprep.subr.mxu0 0.0
        %3096 = vmatpush1.msra.mxu0 0.0
        %3097 = vmatprep.subr.mxu0 0.0
        %3098 = vmatpush1.msra.mxu0 0.0
        %3099 = vmatprep.subr.mxu0 0.0
        %3100 = vmatpush1.msra.mxu0 0.0
        %3101 = vmatprep.subr.mxu0 0.0
        %3102 = vmatpush1.msra.mxu0 0.0
        %3103 = vmatprep.subr.mxu0 0.0
        %3104 = vmatpush1.msra.mxu0 0.0
        %3105 = vmatprep.subr.mxu0 0.0
        %3106 = vmatpush1.msra.mxu0 0.0
        %3107 = vmatprep.subr.mxu0 0.0
        %3108 = vmatpush1.msra.mxu0 0.0
        %3109 = vmatprep.mubr.f32.mxu0 0.0
        %3110 = vmatmul.mubr.f32.gmra.mrb[0].mxu0 %v3022
        %v3111 = vpop.f32.mrb[0].mxu0
        %v3112 = vadd.f32 %v2983, %v3111
        %v3113 = vpop.f32.mrb[0].mxu0
        %v3114 = vadd.f32 %v2983, %v3113
        %3115 = vmatprep.mubr.f32.mxu0 0.0
        %3116 = vmatmul.mubr.f32.gmra.mrb[0].mxu0 %v3025
        %v3117 = vpop.f32.mrb[0].mxu0
        %v3118 = vadd.f32 %v2988, %v3117
        %v3119 = vpop.f32.mrb[0].mxu0
        %v3120 = vadd.f32 %v2988, %v3119
        %3121 = vmatprep.mubr.f32.mxu0 0.0
        %3122 = vmatmul.mubr.f32.gmra.mrb[0].mxu0 %v3028
        %v3123 = vpop.f32.mrb[0].mxu0
        %v3124 = vadd.f32 %v2993, %v3123
        %v3125 = vpop.f32.mrb[0].mxu0
        %v3126 = vadd.f32 %v2993, %v3125
        %3127 = vmatprep.mubr.f32.mxu0 0.0
        %3128 = vmatmul.mubr.f32.gmra.mrb[0].mxu0 %v3031
        %v3129 = vpop.f32.mrb[0].mxu0
        %v3130 = vadd.f32 %v2998, %v3129
        %v3131 = vpop.f32.mrb[0].mxu0
        %v3132 = vadd.f32 %v2998, %v3131
        %3133 = vmatprep.mubr.f32.mxu0 0.0
        %3134 = vmatmul.mubr.f32.gmra.mrb[0].mxu0 %v3034
        %v3135 = vpop.f32.mrb[0].mxu0
        %v3136 = vadd.f32 %v3003, %v3135
        %v3137 = vpop.f32.mrb[0].mxu0
        %v3138 = vadd.f32 %v3003, %v3137
        %3139 = vmatprep.mubr.f32.mxu0 0.0
        %3140 = vmatmul.mubr.f32.gmra.mrb[0].mxu0 %v3037
        %v3141 = vpop.f32.mrb[0].mxu0
        %v3142 = vadd.f32 %v3008, %v3141
        %v3143 = vpop.f32.mrb[0].mxu0
        %v3144 = vadd.f32 %v3008, %v3143
        %3145 = vmatprep.mubr.f32.mxu0 0.0
        %3146 = vmatmul.mubr.f32.gmra.mrb[0].mxu0 %v3040
        %v3147 = vpop.f32.mrb[0].mxu0
        %v3148 = vadd.f32 %v3013, %v3147
        %v3149 = vpop.f32.mrb[0].mxu0
        %v3150 = vadd.f32 %v3013, %v3149
        %3151 = vmatprep.mubr.f32.mxu0 0.0
        %3152 = vmatmul.mubr.f32.gmra.mrb[0].mxu0 %v3043
        %v3153 = vpop.f32.mrb[0].mxu0
        %v3154 = vadd.f32 %v3018, %v3153
        %v3155 = vpop.f32.mrb[0].mxu0
        %v3156 = vadd.f32 %v3018, %v3155
        %3157 = vdwg.mxu0
        %3158 = vmatprep.subr.mxu0 %v2940
        %3159 = vmatpush1.msra.mxu0 %v2939
        %3160 = vmatprep.subr.mxu0 %v2947
        %3161 = vmatpush1.msra.mxu0 %v2946
        %3162 = vmatprep.subr.mxu0 %v2954
        %3163 = vmatpush1.msra.mxu0 %v2953
        %3164 = vmatprep.subr.mxu0 %v2961
        %3165 = vmatpush1.msra.mxu0 %v2960
        %3166 = vmatprep.subr.mxu0 %v2968
        %3167 = vmatpush1.msra.mxu0 %v2967
        %3168 = vmatprep.subr.mxu0 0.0
        %3169 = vmatpush1.msra.mxu0 0.0
        %3170 = vmatprep.subr.mxu0 0.0
        %3171 = vmatpush1.msra.mxu0 0.0
        %3172 = vmatprep.subr.mxu0 0.0
        %3173 = vmatpush1.msra.mxu0 0.0
        %3174 = vmatprep.subr.mxu0 0.0
        %3175 = vmatpush1.msra.mxu0 0.0
        %3176 = vmatprep.subr.mxu0 0.0
        %3177 = vmatpush1.msra.mxu0 0.0
        %3178 = vmatprep.subr.mxu0 0.0
        %3179 = vmatpush1.msra.mxu0 0.0
        %3180 = vmatprep.subr.mxu0 0.0
        %3181 = vmatpush1.msra.mxu0 0.0
        %3182 = vmatprep.subr.mxu0 0.0
        %3183 = vmatpush1.msra.mxu0 0.0
        %3184 = vmatprep.subr.mxu0 0.0
        %3185 = vmatpush1.msra.mxu0 0.0
        %3186 = vmatprep.subr.mxu0 0.0
        %3187 = vmatpush1.msra.mxu0 0.0
        %3188 = vmatprep.subr.mxu0 0.0
        %3189 = vmatpush1.msra.mxu0 0.0
        %3190 = vmatprep.subr.mxu0 0.0
        %3191 = vmatpush1.msra.mxu0 0.0
        %3192 = vmatprep.subr.mxu0 0.0
        %3193 = vmatpush1.msra.mxu0 0.0
        %3194 = vmatprep.subr.mxu0 0.0
        %3195 = vmatpush1.msra.mxu0 0.0
        %3196 = vmatprep.subr.mxu0 0.0
        %3197 = vmatpush1.msra.mxu0 0.0
        %3198 = vmatprep.subr.mxu0 0.0
        %3199 = vmatpush1.msra.mxu0 0.0
        %3200 = vmatprep.subr.mxu0 0.0
        %3201 = vmatpush1.msra.mxu0 0.0
        %3202 = vmatprep.subr.mxu0 0.0
        %3203 = vmatpush1.msra.mxu0 0.0
        %3204 = vmatprep.subr.mxu0 0.0
        %3205 = vmatpush1.msra.mxu0 0.0
        %3206 = vmatprep.subr.mxu0 0.0
        %3207 = vmatpush1.msra.mxu0 0.0
        %3208 = vmatprep.subr.mxu0 0.0
        %3209 = vmatpush1.msra.mxu0 0.0
        %3210 = vmatprep.subr.mxu0 0.0
        %3211 = vmatpush1.msra.mxu0 0.0
        %3212 = vmatprep.subr.mxu0 0.0
        %3213 = vmatpush1.msra.mxu0 0.0
        %3214 = vmatprep.subr.mxu0 0.0
        %3215 = vmatpush1.msra.mxu0 0.0
        %3216 = vmatprep.subr.mxu0 0.0
        %3217 = vmatpush1.msra.mxu0 0.0
        %3218 = vmatprep.subr.mxu0 0.0
        %3219 = vmatpush1.msra.mxu0 0.0
        %3220 = vmatprep.subr.mxu0 0.0
        %3221 = vmatpush1.msra.mxu0 0.0
        %3222 = vmatprep.mubr.f32.mxu0 0.0
        %3223 = vmatmul.mubr.f32.gmra.mrb[0].mxu0 %v3022
        %v3224 = vpop.f32.mrb[0].mxu0
        %v3225 = vadd.f32 %v2983, %v3224
        %v3226 = vpop.f32.mrb[0].mxu0
        %v3227 = vadd.f32 %v2983, %v3226
        %3228 = vmatprep.mubr.f32.mxu0 0.0
        %3229 = vmatmul.mubr.f32.gmra.mrb[0].mxu0 %v3025
        %v3230 = vpop.f32.mrb[0].mxu0
        %v3231 = vadd.f32 %v2988, %v3230
        %v3232 = vpop.f32.mrb[0].mxu0
        %v3233 = vadd.f32 %v2988, %v3232
        %3234 = vmatprep.mubr.f32.mxu0 0.0
        %3235 = vmatmul.mubr.f32.gmra.mrb[0].mxu0 %v3028
        %v3236 = vpop.f32.mrb[0].mxu0
        %v3237 = vadd.f32 %v2993, %v3236
        %v3238 = vpop.f32.mrb[0].mxu0
        %v3239 = vadd.f32 %v2993, %v3238
        %3240 = vmatprep.mubr.f32.mxu0 0.0
        %3241 = vmatmul.mubr.f32.gmra.mrb[0].mxu0 %v3031
        %v3242 = vpop.f32.mrb[0].mxu0
        %v3243 = vadd.f32 %v2998, %v3242
        %v3244 = vpop.f32.mrb[0].mxu0
        %v3245 = vadd.f32 %v2998, %v3244
        %3246 = vmatprep.mubr.f32.mxu0 0.0
        %3247 = vmatmul.mubr.f32.gmra.mrb[0].mxu0 %v3034
        %v3248 = vpop.f32.mrb[0].mxu0
        %v3249 = vadd.f32 %v3003, %v3248
        %v3250 = vpop.f32.mrb[0].mxu0
        %v3251 = vadd.f32 %v3003, %v3250
        %3252 = vmatprep.mubr.f32.mxu0 0.0
        %3253 = vmatmul.mubr.f32.gmra.mrb[0].mxu0 %v3037
        %v3254 = vpop.f32.mrb[0].mxu0
        %v3255 = vadd.f32 %v3008, %v3254
        %v3256 = vpop.f32.mrb[0].mxu0
        %v3257 = vadd.f32 %v3008, %v3256
        %3258 = vmatprep.mubr.f32.mxu0 0.0
        %3259 = vmatmul.mubr.f32.gmra.mrb[0].mxu0 %v3040
        %v3260 = vpop.f32.mrb[0].mxu0
        %v3261 = vadd.f32 %v3013, %v3260
        %v3262 = vpop.f32.mrb[0].mxu0
        %v3263 = vadd.f32 %v3013, %v3262
        %3264 = vmatprep.mubr.f32.mxu0 0.0
        %3265 = vmatmul.mubr.f32.gmra.mrb[0].mxu0 %v3043
        %v3266 = vpop.f32.mrb[0].mxu0
        %v3267 = vadd.f32 %v3018, %v3266
        %v3268 = vpop.f32.mrb[0].mxu0
        %v3269 = vadd.f32 %v3018, %v3268
        %3270 = vdwg.mxu0
        %3271 = vmatprep.subr.mxu0 %v2942
        %3272 = vmatpush1.msra.mxu0 %v2941
        %3273 = vmatprep.subr.mxu0 %v2949
        %3274 = vmatpush1.msra.mxu0 %v2948
        %3275 = vmatprep.subr.mxu0 %v2956
        %3276 = vmatpush1.msra.mxu0 %v2955
        %3277 = vmatprep.subr.mxu0 %v2963
        %3278 = vmatpush1.msra.mxu0 %v2962
        %3279 = vmatprep.subr.mxu0 %v2970
        %3280 = vmatpush1.msra.mxu0 %v2969
        %3281 = vmatprep.subr.mxu0 0.0
        %3282 = vmatpush1.msra.mxu0 0.0
        %3283 = vmatprep.subr.mxu0 0.0
        %3284 = vmatpush1.msra.mxu0 0.0
        %3285 = vmatprep.subr.mxu0 0.0
        %3286 = vmatpush1.msra.mxu0 0.0
        %3287 = vmatprep.subr.mxu0 0.0
        %3288 = vmatpush1.msra.mxu0 0.0
        %3289 = vmatprep.subr.mxu0 0.0
        %3290 = vmatpush1.msra.mxu0 0.0
        %3291 = vmatprep.subr.mxu0 0.0
        %3292 = vmatpush1.msra.mxu0 0.0
        %3293 = vmatprep.subr.mxu0 0.0
        %3294 = vmatpush1.msra.mxu0 0.0
        %3295 = vmatprep.subr.mxu0 0.0
        %3296 = vmatpush1.msra.mxu0 0.0
        %3297 = vmatprep.subr.mxu0 0.0
        %3298 = vmatpush1.msra.mxu0 0.0
        %3299 = vmatprep.subr.mxu0 0.0
        %3300 = vmatpush1.msra.mxu0 0.0
        %3301 = vmatprep.subr.mxu0 0.0
        %3302 = vmatpush1.msra.mxu0 0.0
        %3303 = vmatprep.subr.mxu0 0.0
        %3304 = vmatpush1.msra.mxu0 0.0
        %3305 = vmatprep.subr.mxu0 0.0
        %3306 = vmatpush1.msra.mxu0 0.0
        %3307 = vmatprep.subr.mxu0 0.0
        %3308 = vmatpush1.msra.mxu0 0.0
        %3309 = vmatprep.subr.mxu0 0.0
        %3310 = vmatpush1.msra.mxu0 0.0
        %3311 = vmatprep.subr.mxu0 0.0
        %3312 = vmatpush1.msra.mxu0 0.0
        %3313 = vmatprep.subr.mxu0 0.0
        %3314 = vmatpush1.msra.mxu0 0.0
        %3315 = vmatprep.subr.mxu0 0.0
        %3316 = vmatpush1.msra.mxu0 0.0
        %3317 = vmatprep.subr.mxu0 0.0
        %3318 = vmatpush1.msra.mxu0 0.0
        %3319 = vmatprep.subr.mxu0 0.0
        %3320 = vmatpush1.msra.mxu0 0.0
        %3321 = vmatprep.subr.mxu0 0.0
        %3322 = vmatpush1.msra.mxu0 0.0
        %3323 = vmatprep.subr.mxu0 0.0
        %3324 = vmatpush1.msra.mxu0 0.0
        %3325 = vmatprep.subr.mxu0 0.0
        %3326 = vmatpush1.msra.mxu0 0.0
        %3327 = vmatprep.subr.mxu0 0.0
        %3328 = vmatpush1.msra.mxu0 0.0
        %3329 = vmatprep.subr.mxu0 0.0
        %3330 = vmatpush1.msra.mxu0 0.0
        %3331 = vmatprep.subr.mxu0 0.0
        %3332 = vmatpush1.msra.mxu0 0.0
        %3333 = vmatprep.subr.mxu0 0.0
        %3334 = vmatpush1.msra.mxu0 0.0
        %3335 = vmatprep.mubr.f32.mxu0 0.0
        %3336 = vmatmul.mubr.f32.gmra.mrb[0].mxu0 %v3022
        %v3337 = vpop.f32.mrb[0].mxu0
        %v3338 = vadd.f32 %v2983, %v3337
        %v3339 = vpop.f32.mrb[0].mxu0
        %v3340 = vadd.f32 %v2983, %v3339
        %3341 = vmatprep.mubr.f32.mxu0 0.0
        %3342 = vmatmul.mubr.f32.gmra.mrb[0].mxu0 %v3025
        %v3343 = vpop.f32.mrb[0].mxu0
        %v3344 = vadd.f32 %v2988, %v3343
        %v3345 = vpop.f32.mrb[0].mxu0
        %v3346 = vadd.f32 %v2988, %v3345
        %3347 = vmatprep.mubr.f32.mxu0 0.0
        %3348 = vmatmul.mubr.f32.gmra.mrb[0].mxu0 %v3028
        %v3349 = vpop.f32.mrb[0].mxu0
        %v3350 = vadd.f32 %v2993, %v3349
        %v3351 = vpop.f32.mrb[0].mxu0
        %v3352 = vadd.f32 %v2993, %v3351
        %3353 = vmatprep.mubr.f32.mxu0 0.0
        %3354 = vmatmul.mubr.f32.gmra.mrb[0].mxu0 %v3031
        %v3355 = vpop.f32.mrb[0].mxu0
        %v3356 = vadd.f32 %v2998, %v3355
        %v3357 = vpop.f32.mrb[0].mxu0
        %v3358 = vadd.f32 %v2998, %v3357
        %3359 = vmatprep.mubr.f32.mxu0 0.0
        %3360 = vmatmul.mubr.f32.gmra.mrb[0].mxu0 %v3034
        %v3361 = vpop.f32.mrb[0].mxu0
        %v3362 = vadd.f32 %v3003, %v3361
        %v3363 = vpop.f32.mrb[0].mxu0
        %v3364 = vadd.f32 %v3003, %v3363
        %3365 = vmatprep.mubr.f32.mxu0 0.0
        %3366 = vmatmul.mubr.f32.gmra.mrb[0].mxu0 %v3037
        %v3367 = vpop.f32.mrb[0].mxu0
        %v3368 = vadd.f32 %v3008, %v3367
        %v3369 = vpop.f32.mrb[0].mxu0
        %v3370 = vadd.f32 %v3008, %v3369
        %3371 = vmatprep.mubr.f32.mxu0 0.0
        %3372 = vmatmul.mubr.f32.gmra.mrb[0].mxu0 %v3040
        %v3373 = vpop.f32.mrb[0].mxu0
        %v3374 = vadd.f32 %v3013, %v3373
        %v3375 = vpop.f32.mrb[0].mxu0
        %v3376 = vadd.f32 %v3013, %v3375
        %3377 = vmatprep.mubr.f32.mxu0 0.0
        %3378 = vmatmul.mubr.f32.gmra.mrb[0].mxu0 %v3043
        %v3379 = vpop.f32.mrb[0].mxu0
        %v3380 = vadd.f32 %v3018, %v3379
        %v3381 = vpop.f32.mrb[0].mxu0
        %v3382 = vadd.f32 %v3018, %v3381
        %3383 = vdwg.mxu0
        %3384 = vmatprep.subr.mxu0 0.0
        %3385 = vmatpush1.msra.mxu0 %v2943
        %3386 = vmatprep.subr.mxu0 0.0
        %3387 = vmatpush1.msra.mxu0 %v2950
        %3388 = vmatprep.subr.mxu0 0.0
        %3389 = vmatpush1.msra.mxu0 %v2957
        %3390 = vmatprep.subr.mxu0 0.0
        %3391 = vmatpush1.msra.mxu0 %v2964
        %3392 = vmatprep.subr.mxu0 0.0
        %3393 = vmatpush1.msra.mxu0 %v2971
        %3394 = vmatprep.subr.mxu0 0.0
        %3395 = vmatpush1.msra.mxu0 0.0
        %3396 = vmatprep.subr.mxu0 0.0
        %3397 = vmatpush1.msra.mxu0 0.0
        %3398 = vmatprep.subr.mxu0 0.0
        %3399 = vmatpush1.msra.mxu0 0.0
        %3400 = vmatprep.subr.mxu0 0.0
        %3401 = vmatpush1.msra.mxu0 0.0
        %3402 = vmatprep.subr.mxu0 0.0
        %3403 = vmatpush1.msra.mxu0 0.0
        %3404 = vmatprep.subr.mxu0 0.0
        %3405 = vmatpush1.msra.mxu0 0.0
        %3406 = vmatprep.subr.mxu0 0.0
        %3407 = vmatpush1.msra.mxu0 0.0
        %3408 = vmatprep.subr.mxu0 0.0
        %3409 = vmatpush1.msra.mxu0 0.0
        %3410 = vmatprep.subr.mxu0 0.0
        %3411 = vmatpush1.msra.mxu0 0.0
        %3412 = vmatprep.subr.mxu0 0.0
        %3413 = vmatpush1.msra.mxu0 0.0
        %3414 = vmatprep.subr.mxu0 0.0
        %3415 = vmatpush1.msra.mxu0 0.0
        %3416 = vmatprep.subr.mxu0 0.0
        %3417 = vmatpush1.msra.mxu0 0.0
        %3418 = vmatprep.subr.mxu0 0.0
        %3419 = vmatpush1.msra.mxu0 0.0
        %3420 = vmatprep.subr.mxu0 0.0
        %3421 = vmatpush1.msra.mxu0 0.0
        %3422 = vmatprep.subr.mxu0 0.0
        %3423 = vmatpush1.msra.mxu0 0.0
        %3424 = vmatprep.subr.mxu0 0.0
        %3425 = vmatpush1.msra.mxu0 0.0
        %3426 = vmatprep.subr.mxu0 0.0
        %3427 = vmatpush1.msra.mxu0 0.0
        %3428 = vmatprep.subr.mxu0 0.0
        %3429 = vmatpush1.msra.mxu0 0.0
        %3430 = vmatprep.subr.mxu0 0.0
        %3431 = vmatpush1.msra.mxu0 0.0
        %3432 = vmatprep.subr.mxu0 0.0
        %3433 = vmatpush1.msra.mxu0 0.0
        %3434 = vmatprep.subr.mxu0 0.0
        %3435 = vmatpush1.msra.mxu0 0.0
        %3436 = vmatprep.subr.mxu0 0.0
        %3437 = vmatpush1.msra.mxu0 0.0
        %3438 = vmatprep.subr.mxu0 0.0
        %3439 = vmatpush1.msra.mxu0 0.0
        %3440 = vmatprep.subr.mxu0 0.0
        %3441 = vmatpush1.msra.mxu0 0.0
        %3442 = vmatprep.subr.mxu0 0.0
        %3443 = vmatpush1.msra.mxu0 0.0
        %3444 = vmatprep.subr.mxu0 0.0
        %3445 = vmatpush1.msra.mxu0 0.0
        %3446 = vmatprep.subr.mxu0 0.0
        %3447 = vmatpush1.msra.mxu0 0.0
        %3448 = vmatprep.mubr.f32.mxu0 0.0
        %3449 = vmatmul.mubr.f32.gmra.mrb[0].mxu0 %v3022
        %v3450 = vpop.f32.mrb[0].mxu0
        %v3451 = vadd.f32 %v2983, %v3450
        %v3452 = vpop.f32.mrb[0].mxu0
        %3453 = vmatprep.mubr.f32.mxu0 0.0
        %3454 = vmatmul.mubr.f32.gmra.mrb[0].mxu0 %v3025
        %v3455 = vpop.f32.mrb[0].mxu0
        %v3456 = vadd.f32 %v2988, %v3455
        %v3457 = vpop.f32.mrb[0].mxu0
        %3458 = vmatprep.mubr.f32.mxu0 0.0
        %3459 = vmatmul.mubr.f32.gmra.mrb[0].mxu0 %v3028
        %v3460 = vpop.f32.mrb[0].mxu0
        %v3461 = vadd.f32 %v2993, %v3460
        %v3462 = vpop.f32.mrb[0].mxu0
        %3463 = vmatprep.mubr.f32.mxu0 0.0
        %3464 = vmatmul.mubr.f32.gmra.mrb[0].mxu0 %v3031
        %v3465 = vpop.f32.mrb[0].mxu0
        %v3466 = vadd.f32 %v2998, %v3465
        %v3467 = vpop.f32.mrb[0].mxu0
        %3468 = vmatprep.mubr.f32.mxu0 0.0
        %3469 = vmatmul.mubr.f32.gmra.mrb[0].mxu0 %v3034
        %v3470 = vpop.f32.mrb[0].mxu0
        %v3471 = vadd.f32 %v3003, %v3470
        %v3472 = vpop.f32.mrb[0].mxu0
        %3473 = vmatprep.mubr.f32.mxu0 0.0
        %3474 = vmatmul.mubr.f32.gmra.mrb[0].mxu0 %v3037
        %v3475 = vpop.f32.mrb[0].mxu0
        %v3476 = vadd.f32 %v3008, %v3475
        %v3477 = vpop.f32.mrb[0].mxu0
        %3478 = vmatprep.mubr.f32.mxu0 0.0
        %3479 = vmatmul.mubr.f32.gmra.mrb[0].mxu0 %v3040
        %v3480 = vpop.f32.mrb[0].mxu0
        %v3481 = vadd.f32 %v3013, %v3480
        %v3482 = vpop.f32.mrb[0].mxu0
        %3483 = vmatprep.mubr.f32.mxu0 0.0
        %3484 = vmatmul.mubr.f32.gmra.mrb[0].mxu0 %v3043
        %v3485 = vpop.f32.mrb[0].mxu0
        %v3486 = vadd.f32 %v3018, %v3485
        %v3487 = vpop.f32.mrb[0].mxu0
        %3488 = vdwg.mxu0
        %v3489 = vmax.f32 %v3112, 0.0
        %v3490 = vmax.f32 %v3114, 0.0
        %v3491 = vmax.f32 %v3225, 0.0
        %v3492 = vmax.f32 %v3227, 0.0
        %v3493 = vmax.f32 %v3338, 0.0
        %v3494 = vmax.f32 %v3340, 0.0
        %v3495 = vmax.f32 %v3451, 0.0
        %v3496 = vmax.f32 %v3118, 0.0
        %v3497 = vmax.f32 %v3120, 0.0
        %v3498 = vmax.f32 %v3231, 0.0
        %v3499 = vmax.f32 %v3233, 0.0
        %v3500 = vmax.f32 %v3344, 0.0
        %v3501 = vmax.f32 %v3346, 0.0
        %v3502 = vmax.f32 %v3456, 0.0
        %v3503 = vmax.f32 %v3124, 0.0
        %v3504 = vmax.f32 %v3126, 0.0
        %v3505 = vmax.f32 %v3237, 0.0
        %v3506 = vmax.f32 %v3239, 0.0
        %v3507 = vmax.f32 %v3350, 0.0
        %v3508 = vmax.f32 %v3352, 0.0
        %v3509 = vmax.f32 %v3461, 0.0
        %v3510 = vmax.f32 %v3130, 0.0
        %v3511 = vmax.f32 %v3132, 0.0
        %v3512 = vmax.f32 %v3243, 0.0
        %v3513 = vmax.f32 %v3245, 0.0
        %v3514 = vmax.f32 %v3356, 0.0
        %v3515 = vmax.f32 %v3358, 0.0
        %v3516 = vmax.f32 %v3466, 0.0
        %v3517 = vmax.f32 %v3136, 0.0
        %v3518 = vmax.f32 %v3138, 0.0
        %v3519 = vmax.f32 %v3249, 0.0
        %v3520 = vmax.f32 %v3251, 0.0
        %v3521 = vmax.f32 %v3362, 0.0
        %v3522 = vmax.f32 %v3364, 0.0
        %v3523 = vmax.f32 %v3471, 0.0
        %v3524 = vmax.f32 %v3142, 0.0
        %v3525 = vmax.f32 %v3144, 0.0
        %v3526 = vmax.f32 %v3255, 0.0
        %v3527 = vmax.f32 %v3257, 0.0
        %v3528 = vmax.f32 %v3368, 0.0
        %v3529 = vmax.f32 %v3370, 0.0
        %v3530 = vmax.f32 %v3476, 0.0
        %v3531 = vmax.f32 %v3148, 0.0
        %v3532 = vmax.f32 %v3150, 0.0
        %v3533 = vmax.f32 %v3261, 0.0
        %v3534 = vmax.f32 %v3263, 0.0
        %v3535 = vmax.f32 %v3374, 0.0
        %v3536 = vmax.f32 %v3376, 0.0
        %v3537 = vmax.f32 %v3481, 0.0
        %v3538 = vmax.f32 %v3154, 0.0
        %v3539 = vmax.f32 %v3156, 0.0
        %v3540 = vmax.f32 %v3267, 0.0
        %v3541 = vmax.f32 %v3269, 0.0
        %v3542 = vmax.f32 %v3380, 0.0
        %v3543 = vmax.f32 %v3382, 0.0
        %v3544 = vmax.f32 %v3486, 0.0
        %3545 = vst [vmem:[%s323] sm:$0xff] %v3489
        %3546 = vst [vmem:[%s323 + $0x8] sm:$0xff] %v3490
        %3547 = vst [vmem:[%s323 + $0x10] sm:$0xff] %v3491
        %3548 = vst [vmem:[%s323 + $0x18] sm:$0xff] %v3492
        %3549 = vst [vmem:[%s323 + $0x20] sm:$0xff] %v3493
        %3550 = vst [vmem:[%s323 + $0x28] sm:$0xff] %v3494
        %3551 = vst [vmem:[%s323 + $0x30] sm:$0xff] %v3495
        %3552 = vst [vmem:[%s323 + $0x38] sm:$0xff] %v3496
        %3553 = vst [vmem:[%s323 + $0x40] sm:$0xff] %v3497
        %3554 = vst [vmem:[%s323 + $0x48] sm:$0xff] %v3498
        %3555 = vst [vmem:[%s323 + $0x50] sm:$0xff] %v3499
        %3556 = vst [vmem:[%s323 + $0x58] sm:$0xff] %v3500
        %3557 = vst [vmem:[%s323 + $0x60] sm:$0xff] %v3501
        %3558 = vst [vmem:[%s323 + $0x68] sm:$0xff] %v3502
        %3559 = vst [vmem:[%s323 + $0x70] sm:$0xff] %v3503
        %3560 = vst [vmem:[%s323 + $0x78] sm:$0xff] %v3504
        %3561 = vst [vmem:[%s323 + $0x80] sm:$0xff] %v3505
        %3562 = vst [vmem:[%s323 + $0x88] sm:$0xff] %v3506
        %3563 = vst [vmem:[%s323 + $0x90] sm:$0xff] %v3507
        %3564 = vst [vmem:[%s323 + $0x98] sm:$0xff] %v3508
        %3565 = vst [vmem:[%s323 + $0xa0] sm:$0xff] %v3509
        %3566 = vst [vmem:[%s323 + $0xa8] sm:$0xff] %v3510
        %3567 = vst [vmem:[%s323 + $0xb0] sm:$0xff] %v3511
        %3568 = vst [vmem:[%s323 + $0xb8] sm:$0xff] %v3512
        %3569 = vst [vmem:[%s323 + $0xc0] sm:$0xff] %v3513
        %3570 = vst [vmem:[%s323 + $0xc8] sm:$0xff] %v3514
        %3571 = vst [vmem:[%s323 + $0xd0] sm:$0xff] %v3515
        %3572 = vst [vmem:[%s323 + $0xd8] sm:$0xff] %v3516
        %3573 = vst [vmem:[%s323 + $0xe0] sm:$0xff] %v3517
        %3574 = vst [vmem:[%s323 + $0xe8] sm:$0xff] %v3518
        %3575 = vst [vmem:[%s323 + $0xf0] sm:$0xff] %v3519
        %3576 = vst [vmem:[%s323 + $0xf8] sm:$0xff] %v3520
        %3577 = vst [vmem:[%s323 + $0x100] sm:$0xff] %v3521
        %3578 = vst [vmem:[%s323 + $0x108] sm:$0xff] %v3522
        %3579 = vst [vmem:[%s323 + $0x110] sm:$0xff] %v3523
        %3580 = vst [vmem:[%s323 + $0x118] sm:$0xff] %v3524
        %3581 = vst [vmem:[%s323 + $0x120] sm:$0xff] %v3525
        %3582 = vst [vmem:[%s323 + $0x128] sm:$0xff] %v3526
        %3583 = vst [vmem:[%s323 + $0x130] sm:$0xff] %v3527
        %3584 = vst [vmem:[%s323 + $0x138] sm:$0xff] %v3528
        %3585 = vst [vmem:[%s323 + $0x140] sm:$0xff] %v3529
        %3586 = vst [vmem:[%s323 + $0x148] sm:$0xff] %v3530
        %3587 = vst [vmem:[%s323 + $0x150] sm:$0xff] %v3531
        %3588 = vst [vmem:[%s323 + $0x158] sm:$0xff] %v3532
        %3589 = vst [vmem:[%s323 + $0x160] sm:$0xff] %v3533
        %3590 = vst [vmem:[%s323 + $0x168] sm:$0xff] %v3534
        %3591 = vst [vmem:[%s323 + $0x170] sm:$0xff] %v3535
        %3592 = vst [vmem:[%s323 + $0x178] sm:$0xff] %v3536
        %3593 = vst [vmem:[%s323 + $0x180] sm:$0xff] %v3537
        %3594 = vst [vmem:[%s323 + $0x188] sm:$0xff] %v3538
        %3595 = vst [vmem:[%s323 + $0x190] sm:$0xff] %v3539
        %3596 = vst [vmem:[%s323 + $0x198] sm:$0xff] %v3540
        %3597 = vst [vmem:[%s323 + $0x1a0] sm:$0xff] %v3541
        %3598 = vst [vmem:[%s323 + $0x1a8] sm:$0xff] %v3542
        %3599 = vst [vmem:[%s323 + $0x1b0] sm:$0xff] %v3543
        %3600 = vst [vmem:[%s323 + $0x1b8] sm:$0xff] %v3544
        %s3601 = sand.u32 %s206, 1
        %s3602 = scalar_lea.sflag [#allocation7], %s3601
        %s3603 = sand.u32 %s206, 1
        %s3604 = smul.addr %s3603, 448
        %s3605 = scalar_lea.vmem [#allocation8], %s3604
        // Predicated region
        $region57: #{tpu_custom_call.1} parent=51 // pred_check
          %p3606 = pneg %p216
        $region58: #{tpu_custom_call.1} parent=51 // pred_check_branch
          %3608 = sbr.rel (%p3606) target = $region60
        $region59: #{tpu_custom_call.1} parent=51 // pred_region
          %s3610 = ssub.s32 7168, 7168
          %3611 = vsyncadd %s3602, %s3610
          %s3612 = smul.addr %s25, 56
          %s3613 = smul.addr %s3612, 128
          %s3614 = scalar_lea.hbm %s8, %s3613
          %s3615 = sshll.u32 %s3605, 4
          %s3616 = int_to_ptr.vmem [resolvable:$true] %s3615
          %3621 = dma.vmem_to_hbm [thread:$0]  %s3616, 7168, %s3614, %s3602, 896, 896, 56
        $region60: #{tpu_custom_call.1} parent=51 // pred_fallthru
          _
      $region52: #{tpu_custom_call.1} parent=5 // pred_fallthru
        _
      %p3622 = scmp.le.s32.totalorder 2, %s20
      // Predicated region
      $region61: #{tpu_custom_call.1} parent=5 // pred_check
        %p3623 = pneg %p3622
      $region62: #{tpu_custom_call.1} parent=5 // pred_check_branch
        %3625 = sbr.rel (%p3623) target = $region64
      $region63: #{tpu_custom_call.1} parent=5 // pred_region
        %s3626 = ssub.s32 %s20, 2
        // Predicated region
        $region65: #{tpu_custom_call.1} parent=63 // pred_check
          %p3627 = pneg %p222
        $region66: #{tpu_custom_call.1} parent=63 // pred_check_branch
          %3629 = sbr.rel (%p3627) target = $region68
        $region67: #{tpu_custom_call.1} parent=63 // pred_region
          %s3630 = sand.u32 %s207, 1
          %s3631 = scalar_lea.sflag [#allocation7], %s3630
          %s3632 = sand.u32 %s207, 1
          %s3633 = smul.addr %s3632, 448
          %s3634 = scalar_lea.vmem [#allocation8], %s3633
          %3635 = dma.done %s3631, 7168
        $region68: #{tpu_custom_call.1} parent=63 // pred_fallthru
          _
      $region64: #{tpu_custom_call.1} parent=5 // pred_fallthru
        _
    $region6: #{tpu_custom_call.1} parent=1 // loop_footer
      %s24 = sadd.s32 1, %s20
    $region7: #{tpu_custom_call.1} parent=1 // loop_footer_branch
      %19 = sbr.rel target = $region3
    $region8: #{tpu_custom_call.1} parent=1 // loop_exit
      _
    %3636 = vsyncpa [#allocation6], 1
    %s3637 = scalar_lea.sflag [#allocation6], 1
    %3638 = vsyncpa %s3637, 1
    %3639 = vsyncpa [#allocation7], 1
    %s3640 = scalar_lea.sflag [#allocation7], 1
    %3641 = vsyncpa %s3640, 1

</llo_original>
